<compile_context>
chip_gen: v7x
topology: tpu7x:2x2x1
jax: 0.10.0
libtpu: 0.0.40
codegen_flags: <defaults>
</compile_context>

<pallas_src>
import jax
import jax.numpy as jnp
import numpy as np
from jax.experimental import pallas as pl
from jax.experimental.pallas import tpu as pltpu

_EPS = 1e-5


def _round_up(x, m):
    return ((x + m - 1) // m) * m


def _resnet_block_kernel(x_ref, w1_ref, w2_ref, o_ref, pad_ref, stage_ref):
    """Fused ResnetBlock forward for one batch element.

    x_ref    : (H, W, C)        input activations (batch dim squeezed by BlockSpec)
    w*_ref   : (3, 3C, C)       conv weights, ky-major / kx packed into K, bf16
    o_ref    : (H, W, C)        output
    pad_ref  : (H+2, Wp, C)     bf16 scratch — reused reflection-pad buffer (Wp >= W+2)
    stage_ref: (H+2, W, 3C)     bf16 scratch — kx-packed im2col staging buffer
    """
    H, W, C = x_ref.shape
    HW = H * W
    K3 = 3 * C

    def reflect_pad(interior_bf16):
        # PyTorch ReflectionPad2d(1): mirror WITHOUT repeating the edge pixel.
        pad_ref[1:H + 1, 1:W + 1, :] = interior_bf16
        pad_ref[0:1, 1:W + 1, :] = pad_ref[2:3, 1:W + 1, :]              # row -1 <- row 1
        pad_ref[H + 1:H + 2, 1:W + 1, :] = pad_ref[H - 1:H, 1:W + 1, :]  # row  H <- row H-2
        # Column reflection across the full padded height (fixes corners too).
        pad_ref[:, 0:1, :] = pad_ref[:, 2:3, :]
        pad_ref[:, W + 1:W + 2, :] = pad_ref[:, W - 1:W, :]

    def build_stage():
        # stage[r, w, kx*C + c] = pad[r, w + kx, c]  (three kx shifts packed on lanes)
        for kx in range(3):
            stage_ref[:, :, kx * C:(kx + 1) * C] = pad_ref[:, kx:kx + W, :]

    def conv3x3(w_ref):
        # 3 MXU matmuls with K = 3C, accumulated in a local value (no ref RMW, no bias:
        # bias cancels inside InstanceNorm(affine=False)).
        acc = jnp.dot(stage_ref[0:H].reshape(HW, K3), w_ref[0],
                      preferred_element_type=jnp.float32)
        for ky in (1, 2):
            acc = acc + jnp.dot(stage_ref[ky:ky + H].reshape(HW, K3), w_ref[ky],
                                preferred_element_type=jnp.float32)
        return acc                                           # (HW, C) f32

    def inst_norm_stats(y):
        # One pass over y: sum and sum-of-squares; biased variance; eps inside rsqrt.
        inv_hw = 1.0 / HW
        m = jnp.sum(y, axis=0, keepdims=True) * inv_hw
        ez2 = jnp.sum(y * y, axis=0, keepdims=True) * inv_hw
        return m, jax.lax.rsqrt(ez2 - m * m + _EPS)

    # ---- reflpad -> conv1 -> IN -> ReLU (epilogue fused into conv2's pad write) ----
    reflect_pad(x_ref[...].astype(jnp.bfloat16))
    build_stage()
    y = conv3x3(w1_ref)
    m, r = inst_norm_stats(y)
    h = jnp.maximum((y - m) * r, 0.0).astype(jnp.bfloat16)   # normalize + ReLU + cast
    # (use_dropout=False, so no dropout layer here)

    # ---- reflpad -> conv2 -> IN ----
    reflect_pad(h.reshape(H, W, C))
    build_stage()
    y = conv3x3(w2_ref)
    m, r = inst_norm_stats(y)

    # ---- residual add in f32; x re-read from the resident input block ----
    out = x_ref[...].astype(jnp.float32) + ((y - m) * r).reshape(H, W, C)
    o_ref[...] = out.astype(o_ref.dtype)


def _prep_weight(w, C):
    # PyTorch (Cout, Cin, kh, kw) -> (kh, kw*Cin, Cout) = (3, 3C, C), bf16 for the MXU.
    return jnp.transpose(w, (2, 3, 1, 0)).reshape(3, 3 * C, C).astype(jnp.bfloat16)


def _vmem_limit_bytes():
    # Generation-aware scoped-VMEM limit: ~3/4 of physical VMEM (48 MiB on v7x,
    # 96 MiB on v5e/v6e), leaving headroom for compiler-internal scratch/double buffers.
    try:
        cap = int(pltpu.get_tpu_info().vmem_capacity_bytes)
        return (cap * 3) // 4
    except Exception:
        return 48 * 1024 * 1024   # conservative fallback that fits every generation


def resnet_block_nhwc(x_nhwc, w1, w2):
    """x_nhwc: (N, H, W, C); w*: PyTorch layout (Cout, Cin, 3, 3). Biases are omitted:
    they are exact no-ops under InstanceNorm2d(affine=False)."""
    N, H, W, C = x_nhwc.shape
    assert H >= 2 and W >= 2, "ReflectionPad2d(1) requires H, W >= 2"
    W_pad = _round_up(W + 2, 8)   # align the pad scratch sublane dim

    w1t = _prep_weight(w1, C)
    w2t = _prep_weight(w2, C)

    grid_spec = pltpu.PrefetchScalarGridSpec(
        num_scalar_prefetch=0,
        grid=(N,),
        in_specs=[
            pl.BlockSpec((None, H, W, C), lambda n: (n, 0, 0, 0)),   # per-batch block
            # Constant index_map -> weights stay resident in VMEM across grid steps.
            pl.BlockSpec((3, 3 * C, C), lambda n: (0, 0, 0)),
            pl.BlockSpec((3, 3 * C, C), lambda n: (0, 0, 0)),
        ],
        out_specs=pl.BlockSpec((None, H, W, C), lambda n: (n, 0, 0, 0)),
        scratch_shapes=[
            pltpu.VMEM((H + 2, W_pad, C), jnp.bfloat16),     # reused reflection-pad buf
            pltpu.VMEM((H + 2, W, 3 * C), jnp.bfloat16),     # kx-packed im2col staging
        ],
    )

    return pl.pallas_call(
        _resnet_block_kernel,
        out_shape=jax.ShapeDtypeStruct((N, H, W, C), x_nhwc.dtype),
        grid_spec=grid_spec,
        compiler_params=pltpu.CompilerParams(
            dimension_semantics=("parallel",),       # batch axis -> megacore split
            vmem_limit_bytes=_vmem_limit_bytes(),
        ),
    )(x_nhwc, w1t, w2t)


@jax.jit
def resnet_block_nchw(x_nchw, w1, w2):
    """PyTorch-interface wrapper: NCHW in/out."""
    x_nhwc = jnp.transpose(x_nchw, (0, 2, 3, 1))
    y = resnet_block_nhwc(x_nhwc, w1, w2)
    return jnp.transpose(y, (0, 3, 1, 2))


@jax.jit
def _reference_forward(x_nchw, w1, b1, w2, b2):
    """Pure-JAX f32 reference with full PyTorch semantics (including conv biases)."""
    def conv_in(h, w, b):
        hp = jnp.pad(h, ((0, 0), (0, 0), (1, 1), (1, 1)), mode='reflect')
        y = jax.lax.conv_general_dilated(
            hp, w, window_strides=(1, 1), padding='VALID',
            dimension_numbers=('NCHW', 'OIHW', 'NCHW'))
        y = y + b[None, :, None, None]
        m = jnp.mean(y, axis=(2, 3), keepdims=True)
        v = jnp.mean(jnp.square(y - m), axis=(2, 3), keepdims=True)
        return (y - m) * jax.lax.rsqrt(v + _EPS)

    y = jax.nn.relu(conv_in(x_nchw, w1, b1))
    y = conv_in(y, w2, b2)
    return x_nchw + y


if __name__ == "__main__":
    root = jax.random.PRNGKey(0)

    def check(N, C, H, W, tol):
        kx, kw1, kb1, kw2, kb2 = jax.random.split(jax.random.fold_in(root, C * 1000 + H), 5)
        x = jax.random.normal(kx, (N, C, H, W), jnp.float32)
        k = 1.0 / float(np.sqrt(C * 9))                      # PyTorch conv init scale
        w1 = jax.random.uniform(kw1, (C, C, 3, 3), jnp.float32, -k, k)
        b1 = jax.random.uniform(kb1, (C,), jnp.float32, -k, k)
        w2 = jax.random.uniform(kw2, (C, C, 3, 3), jnp.float32, -k, k)
        b2 = jax.random.uniform(kb2, (C,), jnp.float32, -k, k)

        out = jax.block_until_ready(resnet_block_nchw(x, w1, w2))
        # Reference keeps the biases; they cancel exactly inside InstanceNorm
        # (affine=False), so the bias-free kernel must match bit-for-math.
        ref = jax.block_until_ready(_reference_forward(x, w1, b1, w2, b2))
        np.testing.assert_allclose(np.asarray(out), np.asarray(ref), atol=tol, rtol=tol)

    # Small shape consistent with the module interface.
    check(N=2, C=4, H=16, W=16, tol=5e-2)
    # Lane-tiling-exercising shape (C multiple of 128) with bf16-appropriate tolerance.
    check(N=1, C=128, H=32, W=32, tol=5e-2)

    print("KERNEL_OK")
</pallas_src>

<mosaic_0001>
module attributes {stable_mosaic.version = 11 : i64} {
  func.func @_resnet_block_kernel(%arg0: i32, %arg1: memref<1x16x16x4xf32, #tpu.memory_space<vmem>>, %arg2: memref<3x12x4xbf16, #tpu.memory_space<vmem>>, %arg3: memref<3x12x4xbf16, #tpu.memory_space<vmem>>, %arg4: memref<1x16x16x4xf32, #tpu.memory_space<vmem>>, %arg5: memref<18x24x4xbf16, #tpu.memory_space<vmem>>, %arg6: memref<18x16x12xbf16, #tpu.memory_space<vmem>>) attributes {dimension_semantics = [#tpu.dimension_semantics<parallel>], iteration_bounds = array<i64: 2>, scalar_prefetch = 0 : i64, scratch_operands = 2 : i64, tpu.core_type = #tpu.core_type<tc>, window_params = [{transform_indices = @transform_0, window_bounds = array<i64: 1, 16, 16, 4>}, {pipeline_mode = #tpu.pipeline_mode<synchronous>, transform_indices = @transform_1, window_bounds = array<i64: 3, 12, 4>}, {pipeline_mode = #tpu.pipeline_mode<synchronous>, transform_indices = @transform_2, window_bounds = array<i64: 3, 12, 4>}, {transform_indices = @transform_3, window_bounds = array<i64: 1, 16, 16, 4>}]} {
    %c0 = arith.constant 0 : index
    %c0_0 = arith.constant 0 : index
    %c0_1 = arith.constant 0 : index
    %c0_2 = arith.constant 0 : index
    %0 = vector.load %arg1[%c0, %c0_0, %c0_1, %c0_2] : memref<1x16x16x4xf32, #tpu.memory_space<vmem>>, vector<1x16x16x4xf32>
    %1 = vector.shape_cast %0 : vector<1x16x16x4xf32> to vector<16x16x4xf32>
    %2 = arith.truncf %1 : vector<16x16x4xf32> to vector<16x16x4xbf16>
    %c1 = arith.constant 1 : index
    %c1_3 = arith.constant 1 : index
    %c0_4 = arith.constant 0 : index
    %3 = vector.load %arg5[%c1, %c1_3, %c0_4] : memref<18x24x4xbf16, #tpu.memory_space<vmem>>, vector<16x16x4xbf16>
    tpu.vector_store %arg5[%c1, %c1_3, %c0_4], %2 {strides = array<i32>} : memref<18x24x4xbf16, #tpu.memory_space<vmem>>, vector<16x16x4xbf16>,
    %c2 = arith.constant 2 : index
    %c1_5 = arith.constant 1 : index
    %c0_6 = arith.constant 0 : index
    %4 = vector.load %arg5[%c2, %c1_5, %c0_6] : memref<18x24x4xbf16, #tpu.memory_space<vmem>>, vector<1x16x4xbf16>
    %c0_7 = arith.constant 0 : index
    %c1_8 = arith.constant 1 : index
    %c0_9 = arith.constant 0 : index
    %5 = vector.load %arg5[%c0_7, %c1_8, %c0_9] : memref<18x24x4xbf16, #tpu.memory_space<vmem>>, vector<1x16x4xbf16>
    tpu.vector_store %arg5[%c0_7, %c1_8, %c0_9], %4 {strides = array<i32>} : memref<18x24x4xbf16, #tpu.memory_space<vmem>>, vector<1x16x4xbf16>,
    %c15 = arith.constant 15 : index
    %c1_10 = arith.constant 1 : index
    %c0_11 = arith.constant 0 : index
    %6 = vector.load %arg5[%c15, %c1_10, %c0_11] : memref<18x24x4xbf16, #tpu.memory_space<vmem>>, vector<1x16x4xbf16>
    %c17 = arith.constant 17 : index
    %c1_12 = arith.constant 1 : index
    %c0_13 = arith.constant 0 : index
    %7 = vector.load %arg5[%c17, %c1_12, %c0_13] : memref<18x24x4xbf16, #tpu.memory_space<vmem>>, vector<1x16x4xbf16>
    tpu.vector_store %arg5[%c17, %c1_12, %c0_13], %6 {strides = array<i32>} : memref<18x24x4xbf16, #tpu.memory_space<vmem>>, vector<1x16x4xbf16>,
    %c0_14 = arith.constant 0 : index
    %c2_15 = arith.constant 2 : index
    %c0_16 = arith.constant 0 : index
    %8 = vector.load %arg5[%c0_14, %c2_15, %c0_16] : memref<18x24x4xbf16, #tpu.memory_space<vmem>>, vector<18x1x4xbf16>
    %c0_17 = arith.constant 0 : index
    %c0_18 = arith.constant 0 : index
    %c0_19 = arith.constant 0 : index
    %9 = vector.load %arg5[%c0_17, %c0_18, %c0_19] : memref<18x24x4xbf16, #tpu.memory_space<vmem>>, vector<18x1x4xbf16>
    tpu.vector_store %arg5[%c0_17, %c0_18, %c0_19], %8 {strides = array<i32>} : memref<18x24x4xbf16, #tpu.memory_space<vmem>>, vector<18x1x4xbf16>,
    %c0_20 = arith.constant 0 : index
    %c15_21 = arith.constant 15 : index
    %c0_22 = arith.constant 0 : index
    %10 = vector.load %arg5[%c0_20, %c15_21, %c0_22] : memref<18x24x4xbf16, #tpu.memory_space<vmem>>, vector<18x1x4xbf16>
    %c0_23 = arith.constant 0 : index
    %c17_24 = arith.constant 17 : index
    %c0_25 = arith.constant 0 : index
    %11 = vector.load %arg5[%c0_23, %c17_24, %c0_25] : memref<18x24x4xbf16, #tpu.memory_space<vmem>>, vector<18x1x4xbf16>
    tpu.vector_store %arg5[%c0_23, %c17_24, %c0_25], %10 {strides = array<i32>} : memref<18x24x4xbf16, #tpu.memory_space<vmem>>, vector<18x1x4xbf16>,
    %c0_26 = arith.constant 0 : index
    %c0_27 = arith.constant 0 : index
    %c0_28 = arith.constant 0 : index
    %12 = vector.load %arg5[%c0_26, %c0_27, %c0_28] : memref<18x24x4xbf16, #tpu.memory_space<vmem>>, vector<18x16x4xbf16>
    %c0_29 = arith.constant 0 : index
    %c0_30 = arith.constant 0 : index
    %c0_31 = arith.constant 0 : index
    %13 = vector.load %arg6[%c0_29, %c0_30, %c0_31] : memref<18x16x12xbf16, #tpu.memory_space<vmem>>, vector<18x16x4xbf16>
    tpu.vector_store %arg6[%c0_29, %c0_30, %c0_31], %12 {strides = array<i32>} : memref<18x16x12xbf16, #tpu.memory_space<vmem>>, vector<18x16x4xbf16>,
    %c0_32 = arith.constant 0 : index
    %c1_33 = arith.constant 1 : index
    %c0_34 = arith.constant 0 : index
    %14 = vector.load %arg5[%c0_32, %c1_33, %c0_34] : memref<18x24x4xbf16, #tpu.memory_space<vmem>>, vector<18x16x4xbf16>
    %c0_35 = arith.constant 0 : index
    %c0_36 = arith.constant 0 : index
    %c4 = arith.constant 4 : index
    %15 = vector.load %arg6[%c0_35, %c0_36, %c4] : memref<18x16x12xbf16, #tpu.memory_space<vmem>>, vector<18x16x4xbf16>
    tpu.vector_store %arg6[%c0_35, %c0_36, %c4], %14 {strides = array<i32>} : memref<18x16x12xbf16, #tpu.memory_space<vmem>>, vector<18x16x4xbf16>,
    %c0_37 = arith.constant 0 : index
    %c2_38 = arith.constant 2 : index
    %c0_39 = arith.constant 0 : index
    %16 = vector.load %arg5[%c0_37, %c2_38, %c0_39] : memref<18x24x4xbf16, #tpu.memory_space<vmem>>, vector<18x16x4xbf16>
    %c0_40 = arith.constant 0 : index
    %c0_41 = arith.constant 0 : index
    %c8 = arith.constant 8 : index
    %17 = vector.load %arg6[%c0_40, %c0_41, %c8] : memref<18x16x12xbf16, #tpu.memory_space<vmem>>, vector<18x16x4xbf16>
    tpu.vector_store %arg6[%c0_40, %c0_41, %c8], %16 {strides = array<i32>} : memref<18x16x12xbf16, #tpu.memory_space<vmem>>, vector<18x16x4xbf16>,
    %c0_42 = arith.constant 0 : index
    %c0_43 = arith.constant 0 : index
    %c0_44 = arith.constant 0 : index
    %18 = vector.load %arg6[%c0_42, %c0_43, %c0_44] : memref<18x16x12xbf16, #tpu.memory_space<vmem>>, vector<16x16x12xbf16>
    %19 = vector.shape_cast %18 : vector<16x16x12xbf16> to vector<256x12xbf16>
    %c0_45 = arith.constant 0 : index
    %c0_46 = arith.constant 0 : index
    %c0_47 = arith.constant 0 : index
    %20 = vector.load %arg2[%c0_45, %c0_46, %c0_47] : memref<3x12x4xbf16, #tpu.memory_space<vmem>>, vector<1x12x4xbf16>
    %21 = vector.shape_cast %20 : vector<1x12x4xbf16> to vector<12x4xbf16>
    %cst = arith.constant dense<0.000000e+00> : vector<256x4xf32>
    %22 = tpu.matmul %19, %21, %cst {dimension_numbers = #tpu.dot_dimension_numbers<[1], [0], [0], [1], [0, 0, 1, 1], [], []>} : vector<256x12xbf16>, vector<12x4xbf16>, vector<256x4xf32> -> vector<256x4xf32>
    %c1_48 = arith.constant 1 : index
    %c0_49 = arith.constant 0 : index
    %c0_50 = arith.constant 0 : index
    %23 = vector.load %arg6[%c1_48, %c0_49, %c0_50] : memref<18x16x12xbf16, #tpu.memory_space<vmem>>, vector<16x16x12xbf16>
    %24 = vector.shape_cast %23 : vector<16x16x12xbf16> to vector<256x12xbf16>
    %c1_51 = arith.constant 1 : index
    %c0_52 = arith.constant 0 : index
    %c0_53 = arith.constant 0 : index
    %25 = vector.load %arg2[%c1_51, %c0_52, %c0_53] : memref<3x12x4xbf16, #tpu.memory_space<vmem>>, vector<1x12x4xbf16>
    %26 = vector.shape_cast %25 : vector<1x12x4xbf16> to vector<12x4xbf16>
    %cst_54 = arith.constant dense<0.000000e+00> : vector<256x4xf32>
    %27 = tpu.matmul %24, %26, %cst_54 {dimension_numbers = #tpu.dot_dimension_numbers<[1], [0], [0], [1], [0, 0, 1, 1], [], []>} : vector<256x12xbf16>, vector<12x4xbf16>, vector<256x4xf32> -> vector<256x4xf32>
    %28 = arith.addf %22, %27 : vector<256x4xf32>
    %c2_55 = arith.constant 2 : index
    %c0_56 = arith.constant 0 : index
    %c0_57 = arith.constant 0 : index
    %29 = vector.load %arg6[%c2_55, %c0_56, %c0_57] : memref<18x16x12xbf16, #tpu.memory_space<vmem>>, vector<16x16x12xbf16>
    %30 = vector.shape_cast %29 : vector<16x16x12xbf16> to vector<256x12xbf16>
    %c2_58 = arith.constant 2 : index
    %c0_59 = arith.constant 0 : index
    %c0_60 = arith.constant 0 : index
    %31 = vector.load %arg2[%c2_58, %c0_59, %c0_60] : memref<3x12x4xbf16, #tpu.memory_space<vmem>>, vector<1x12x4xbf16>
    %32 = vector.shape_cast %31 : vector<1x12x4xbf16> to vector<12x4xbf16>
    %cst_61 = arith.constant dense<0.000000e+00> : vector<256x4xf32>
    %33 = tpu.matmul %30, %32, %cst_61 {dimension_numbers = #tpu.dot_dimension_numbers<[1], [0], [0], [1], [0, 0, 1, 1], [], []>} : vector<256x12xbf16>, vector<12x4xbf16>, vector<256x4xf32> -> vector<256x4xf32>
    %34 = arith.addf %28, %33 : vector<256x4xf32>
    %cst_62 = arith.constant dense<0.000000e+00> : vector<4xf32>
    %35 = vector.multi_reduction <add>, %34, %cst_62 [0] : vector<256x4xf32> to vector<4xf32>
    %36 = vector.shape_cast %35 : vector<4xf32> to vector<1x4xf32>
    %cst_63 = arith.constant 3.906250e-03 : f32
    %37 = vector.broadcast %cst_63 : f32 to vector<1x4xf32>
    %38 = arith.mulf %36, %37 : vector<1x4xf32>
    %39 = arith.mulf %34, %34 : vector<256x4xf32>
    %cst_64 = arith.constant dense<0.000000e+00> : vector<4xf32>
    %40 = vector.multi_reduction <add>, %39, %cst_64 [0] : vector<256x4xf32> to vector<4xf32>
    %41 = vector.shape_cast %40 : vector<4xf32> to vector<1x4xf32>
    %cst_65 = arith.constant 3.906250e-03 : f32
    %42 = vector.broadcast %cst_65 : f32 to vector<1x4xf32>
    %43 = arith.mulf %41, %42 : vector<1x4xf32>
    %44 = arith.mulf %38, %38 : vector<1x4xf32>
    %45 = arith.subf %43, %44 : vector<1x4xf32>
    %cst_66 = arith.constant 9.99999974E-6 : f32
    %46 = vector.broadcast %cst_66 : f32 to vector<1x4xf32>
    %47 = arith.addf %45, %46 : vector<1x4xf32>
    %48 = math.rsqrt %47 : vector<1x4xf32>
    %49 = vector.broadcast %38 : vector<1x4xf32> to vector<256x4xf32>
    %50 = arith.subf %34, %49 : vector<256x4xf32>
    %51 = vector.broadcast %48 : vector<1x4xf32> to vector<256x4xf32>
    %52 = arith.mulf %50, %51 : vector<256x4xf32>
    %cst_67 = arith.constant 0.000000e+00 : f32
    %53 = vector.broadcast %cst_67 : f32 to vector<256x4xf32>
    %54 = arith.maximumf %52, %53 : vector<256x4xf32>
    %55 = arith.truncf %54 : vector<256x4xf32> to vector<256x4xbf16>
    %56 = vector.shape_cast %55 : vector<256x4xbf16> to vector<16x16x4xbf16>
    %c1_68 = arith.constant 1 : index
    %c1_69 = arith.constant 1 : index
    %c0_70 = arith.constant 0 : index
    %57 = vector.load %arg5[%c1_68, %c1_69, %c0_70] : memref<18x24x4xbf16, #tpu.memory_space<vmem>>, vector<16x16x4xbf16>
    tpu.vector_store %arg5[%c1_68, %c1_69, %c0_70], %56 {strides = array<i32>} : memref<18x24x4xbf16, #tpu.memory_space<vmem>>, vector<16x16x4xbf16>,
    %c2_71 = arith.constant 2 : index
    %c1_72 = arith.constant 1 : index
    %c0_73 = arith.constant 0 : index
    %58 = vector.load %arg5[%c2_71, %c1_72, %c0_73] : memref<18x24x4xbf16, #tpu.memory_space<vmem>>, vector<1x16x4xbf16>
    %c0_74 = arith.constant 0 : index
    %c1_75 = arith.constant 1 : index
    %c0_76 = arith.constant 0 : index
    %59 = vector.load %arg5[%c0_74, %c1_75, %c0_76] : memref<18x24x4xbf16, #tpu.memory_space<vmem>>, vector<1x16x4xbf16>
    tpu.vector_store %arg5[%c0_74, %c1_75, %c0_76], %58 {strides = array<i32>} : memref<18x24x4xbf16, #tpu.memory_space<vmem>>, vector<1x16x4xbf16>,
    %c15_77 = arith.constant 15 : index
    %c1_78 = arith.constant 1 : index
    %c0_79 = arith.constant 0 : index
    %60 = vector.load %arg5[%c15_77, %c1_78, %c0_79] : memref<18x24x4xbf16, #tpu.memory_space<vmem>>, vector<1x16x4xbf16>
    %c17_80 = arith.constant 17 : index
    %c1_81 = arith.constant 1 : index
    %c0_82 = arith.constant 0 : index
    %61 = vector.load %arg5[%c17_80, %c1_81, %c0_82] : memref<18x24x4xbf16, #tpu.memory_space<vmem>>, vector<1x16x4xbf16>
    tpu.vector_store %arg5[%c17_80, %c1_81, %c0_82], %60 {strides = array<i32>} : memref<18x24x4xbf16, #tpu.memory_space<vmem>>, vector<1x16x4xbf16>,
    %c0_83 = arith.constant 0 : index
    %c2_84 = arith.constant 2 : index
    %c0_85 = arith.constant 0 : index
    %62 = vector.load %arg5[%c0_83, %c2_84, %c0_85] : memref<18x24x4xbf16, #tpu.memory_space<vmem>>, vector<18x1x4xbf16>
    %c0_86 = arith.constant 0 : index
    %c0_87 = arith.constant 0 : index
    %c0_88 = arith.constant 0 : index
    %63 = vector.load %arg5[%c0_86, %c0_87, %c0_88] : memref<18x24x4xbf16, #tpu.memory_space<vmem>>, vector<18x1x4xbf16>
    tpu.vector_store %arg5[%c0_86, %c0_87, %c0_88], %62 {strides = array<i32>} : memref<18x24x4xbf16, #tpu.memory_space<vmem>>, vector<18x1x4xbf16>,
    %c0_89 = arith.constant 0 : index
    %c15_90 = arith.constant 15 : index
    %c0_91 = arith.constant 0 : index
    %64 = vector.load %arg5[%c0_89, %c15_90, %c0_91] : memref<18x24x4xbf16, #tpu.memory_space<vmem>>, vector<18x1x4xbf16>
    %c0_92 = arith.constant 0 : index
    %c17_93 = arith.constant 17 : index
    %c0_94 = arith.constant 0 : index
    %65 = vector.load %arg5[%c0_92, %c17_93, %c0_94] : memref<18x24x4xbf16, #tpu.memory_space<vmem>>, vector<18x1x4xbf16>
    tpu.vector_store %arg5[%c0_92, %c17_93, %c0_94], %64 {strides = array<i32>} : memref<18x24x4xbf16, #tpu.memory_space<vmem>>, vector<18x1x4xbf16>,
    %c0_95 = arith.constant 0 : index
    %c0_96 = arith.constant 0 : index
    %c0_97 = arith.constant 0 : index
    %66 = vector.load %arg5[%c0_95, %c0_96, %c0_97] : memref<18x24x4xbf16, #tpu.memory_space<vmem>>, vector<18x16x4xbf16>
    %c0_98 = arith.constant 0 : index
    %c0_99 = arith.constant 0 : index
    %c0_100 = arith.constant 0 : index
    %67 = vector.load %arg6[%c0_98, %c0_99, %c0_100] : memref<18x16x12xbf16, #tpu.memory_space<vmem>>, vector<18x16x4xbf16>
    tpu.vector_store %arg6[%c0_98, %c0_99, %c0_100], %66 {strides = array<i32>} : memref<18x16x12xbf16, #tpu.memory_space<vmem>>, vector<18x16x4xbf16>,
    %c0_101 = arith.constant 0 : index
    %c1_102 = arith.constant 1 : index
    %c0_103 = arith.constant 0 : index
    %68 = vector.load %arg5[%c0_101, %c1_102, %c0_103] : memref<18x24x4xbf16, #tpu.memory_space<vmem>>, vector<18x16x4xbf16>
    %c0_104 = arith.constant 0 : index
    %c0_105 = arith.constant 0 : index
    %c4_106 = arith.constant 4 : index
    %69 = vector.load %arg6[%c0_104, %c0_105, %c4_106] : memref<18x16x12xbf16, #tpu.memory_space<vmem>>, vector<18x16x4xbf16>
    tpu.vector_store %arg6[%c0_104, %c0_105, %c4_106], %68 {strides = array<i32>} : memref<18x16x12xbf16, #tpu.memory_space<vmem>>, vector<18x16x4xbf16>,
    %c0_107 = arith.constant 0 : index
    %c2_108 = arith.constant 2 : index
    %c0_109 = arith.constant 0 : index
    %70 = vector.load %arg5[%c0_107, %c2_108, %c0_109] : memref<18x24x4xbf16, #tpu.memory_space<vmem>>, vector<18x16x4xbf16>
    %c0_110 = arith.constant 0 : index
    %c0_111 = arith.constant 0 : index
    %c8_112 = arith.constant 8 : index
    %71 = vector.load %arg6[%c0_110, %c0_111, %c8_112] : memref<18x16x12xbf16, #tpu.memory_space<vmem>>, vector<18x16x4xbf16>
    tpu.vector_store %arg6[%c0_110, %c0_111, %c8_112], %70 {strides = array<i32>} : memref<18x16x12xbf16, #tpu.memory_space<vmem>>, vector<18x16x4xbf16>,
    %c0_113 = arith.constant 0 : index
    %c0_114 = arith.constant 0 : index
    %c0_115 = arith.constant 0 : index
    %72 = vector.load %arg6[%c0_113, %c0_114, %c0_115] : memref<18x16x12xbf16, #tpu.memory_space<vmem>>, vector<16x16x12xbf16>
    %73 = vector.shape_cast %72 : vector<16x16x12xbf16> to vector<256x12xbf16>
    %c0_116 = arith.constant 0 : index
    %c0_117 = arith.constant 0 : index
    %c0_118 = arith.constant 0 : index
    %74 = vector.load %arg3[%c0_116, %c0_117, %c0_118] : memref<3x12x4xbf16, #tpu.memory_space<vmem>>, vector<1x12x4xbf16>
    %75 = vector.shape_cast %74 : vector<1x12x4xbf16> to vector<12x4xbf16>
    %cst_119 = arith.constant dense<0.000000e+00> : vector<256x4xf32>
    %76 = tpu.matmul %73, %75, %cst_119 {dimension_numbers = #tpu.dot_dimension_numbers<[1], [0], [0], [1], [0, 0, 1, 1], [], []>} : vector<256x12xbf16>, vector<12x4xbf16>, vector<256x4xf32> -> vector<256x4xf32>
    %c1_120 = arith.constant 1 : index
    %c0_121 = arith.constant 0 : index
    %c0_122 = arith.constant 0 : index
    %77 = vector.load %arg6[%c1_120, %c0_121, %c0_122] : memref<18x16x12xbf16, #tpu.memory_space<vmem>>, vector<16x16x12xbf16>
    %78 = vector.shape_cast %77 : vector<16x16x12xbf16> to vector<256x12xbf16>
    %c1_123 = arith.constant 1 : index
    %c0_124 = arith.constant 0 : index
    %c0_125 = arith.constant 0 : index
    %79 = vector.load %arg3[%c1_123, %c0_124, %c0_125] : memref<3x12x4xbf16, #tpu.memory_space<vmem>>, vector<1x12x4xbf16>
    %80 = vector.shape_cast %79 : vector<1x12x4xbf16> to vector<12x4xbf16>
    %cst_126 = arith.constant dense<0.000000e+00> : vector<256x4xf32>
    %81 = tpu.matmul %78, %80, %cst_126 {dimension_numbers = #tpu.dot_dimension_numbers<[1], [0], [0], [1], [0, 0, 1, 1], [], []>} : vector<256x12xbf16>, vector<12x4xbf16>, vector<256x4xf32> -> vector<256x4xf32>
    %82 = arith.addf %76, %81 : vector<256x4xf32>
    %c2_127 = arith.constant 2 : index
    %c0_128 = arith.constant 0 : index
    %c0_129 = arith.constant 0 : index
    %83 = vector.load %arg6[%c2_127, %c0_128, %c0_129] : memref<18x16x12xbf16, #tpu.memory_space<vmem>>, vector<16x16x12xbf16>
    %84 = vector.shape_cast %83 : vector<16x16x12xbf16> to vector<256x12xbf16>
    %c2_130 = arith.constant 2 : index
    %c0_131 = arith.constant 0 : index
    %c0_132 = arith.constant 0 : index
    %85 = vector.load %arg3[%c2_130, %c0_131, %c0_132] : memref<3x12x4xbf16, #tpu.memory_space<vmem>>, vector<1x12x4xbf16>
    %86 = vector.shape_cast %85 : vector<1x12x4xbf16> to vector<12x4xbf16>
    %cst_133 = arith.constant dense<0.000000e+00> : vector<256x4xf32>
    %87 = tpu.matmul %84, %86, %cst_133 {dimension_numbers = #tpu.dot_dimension_numbers<[1], [0], [0], [1], [0, 0, 1, 1], [], []>} : vector<256x12xbf16>, vector<12x4xbf16>, vector<256x4xf32> -> vector<256x4xf32>
    %88 = arith.addf %82, %87 : vector<256x4xf32>
    %cst_134 = arith.constant dense<0.000000e+00> : vector<4xf32>
    %89 = vector.multi_reduction <add>, %88, %cst_134 [0] : vector<256x4xf32> to vector<4xf32>
    %90 = vector.shape_cast %89 : vector<4xf32> to vector<1x4xf32>
    %cst_135 = arith.constant 3.906250e-03 : f32
    %91 = vector.broadcast %cst_135 : f32 to vector<1x4xf32>
    %92 = arith.mulf %90, %91 : vector<1x4xf32>
    %93 = arith.mulf %88, %88 : vector<256x4xf32>
    %cst_136 = arith.constant dense<0.000000e+00> : vector<4xf32>
    %94 = vector.multi_reduction <add>, %93, %cst_136 [0] : vector<256x4xf32> to vector<4xf32>
    %95 = vector.shape_cast %94 : vector<4xf32> to vector<1x4xf32>
    %cst_137 = arith.constant 3.906250e-03 : f32
    %96 = vector.broadcast %cst_137 : f32 to vector<1x4xf32>
    %97 = arith.mulf %95, %96 : vector<1x4xf32>
    %98 = arith.mulf %92, %92 : vector<1x4xf32>
    %99 = arith.subf %97, %98 : vector<1x4xf32>
    %cst_138 = arith.constant 9.99999974E-6 : f32
    %100 = vector.broadcast %cst_138 : f32 to vector<1x4xf32>
    %101 = arith.addf %99, %100 : vector<1x4xf32>
    %102 = math.rsqrt %101 : vector<1x4xf32>
    %c0_139 = arith.constant 0 : index
    %c0_140 = arith.constant 0 : index
    %c0_141 = arith.constant 0 : index
    %c0_142 = arith.constant 0 : index
    %103 = vector.load %arg1[%c0_139, %c0_140, %c0_141, %c0_142] : memref<1x16x16x4xf32, #tpu.memory_space<vmem>>, vector<1x16x16x4xf32>
    %104 = vector.shape_cast %103 : vector<1x16x16x4xf32> to vector<16x16x4xf32>
    %105 = vector.broadcast %92 : vector<1x4xf32> to vector<256x4xf32>
    %106 = arith.subf %88, %105 : vector<256x4xf32>
    %107 = vector.broadcast %102 : vector<1x4xf32> to vector<256x4xf32>
    %108 = arith.mulf %106, %107 : vector<256x4xf32>
    %109 = vector.shape_cast %108 : vector<256x4xf32> to vector<16x16x4xf32>
    %110 = arith.addf %104, %109 : vector<16x16x4xf32>
    %c0_143 = arith.constant 0 : index
    %c0_144 = arith.constant 0 : index
    %c0_145 = arith.constant 0 : index
    %c0_146 = arith.constant 0 : index
    %111 = vector.load %arg4[%c0_143, %c0_144, %c0_145, %c0_146] : memref<1x16x16x4xf32, #tpu.memory_space<vmem>>, vector<1x16x16x4xf32>
    %112 = vector.shape_cast %111 : vector<1x16x16x4xf32> to vector<16x16x4xf32>
    %113 = vector.shape_cast %110 : vector<16x16x4xf32> to vector<1x16x16x4xf32>
    tpu.vector_store %arg4[%c0_143, %c0_144, %c0_145, %c0_146], %113 {strides = array<i32>} : memref<1x16x16x4xf32, #tpu.memory_space<vmem>>, vector<1x16x16x4xf32>,
    return
  }
  func.func @transform_0(%arg0: i32) -> (i32, i32, i32, i32) {
    %c0_i32 = arith.constant 0 : i32
    %c0_i32_0 = arith.constant 0 : i32
    %c0_i32_1 = arith.constant 0 : i32
    %c0_i32_2 = arith.constant 0 : i32
    return %arg0, %c0_i32, %c0_i32_0, %c0_i32_1 : i32, i32, i32, i32
  }
  func.func @transform_1(%arg0: i32) -> (i32, i32, i32) {
    %c0_i32 = arith.constant 0 : i32
    %c0_i32_0 = arith.constant 0 : i32
    %c0_i32_1 = arith.constant 0 : i32
    %c0_i32_2 = arith.constant 0 : i32
    return %c0_i32, %c0_i32_0, %c0_i32_1 : i32, i32, i32
  }
  func.func @transform_2(%arg0: i32) -> (i32, i32, i32) {
    %c0_i32 = arith.constant 0 : i32
    %c0_i32_0 = arith.constant 0 : i32
    %c0_i32_1 = arith.constant 0 : i32
    %c0_i32_2 = arith.constant 0 : i32
    return %c0_i32, %c0_i32_0, %c0_i32_1 : i32, i32, i32
  }
  func.func @transform_3(%arg0: i32) -> (i32, i32, i32, i32) {
    %c0_i32 = arith.constant 0 : i32
    %c0_i32_0 = arith.constant 0 : i32
    %c0_i32_1 = arith.constant 0 : i32
    %c0_i32_2 = arith.constant 0 : i32
    return %arg0, %c0_i32, %c0_i32_0, %c0_i32_1 : i32, i32, i32, i32
  }
}

</mosaic_0001>

<llo_original>
// kernel: resnet_block_nchw.1
$region0: #{resnet_block_nchw.1}
  #allocation0 [shape = 'u32[]', space=smem, size = 0x4, offset = 0x4, fixed_abs, tag = 'smem constant byte address 0x4 - core index']
  #allocation1 [shape = 'u32[144,128]{1,0:T(1,128)}', space=vmem, size = 0x12000, scoped, tag = 'internal scratch']
  #allocation2 [shape = 'bf16[18,24,4]{2,1,0:T(8,128)(2,1)}', space=vmem, size = 0x1b000, scoped, tag = 'scratch operand']
  #allocation3 [shape = 'bf16[18,16,12]{2,1,0:T(16,128)(2,1)}', space=vmem, size = 0x12000, scoped, tag = 'scratch operand']
  %s0 = inlined_call_operand.vmem [shape: f32[2,16,16,4], index: 0, kind: input, shape index: {}]
  %s1 = inlined_call_operand.vmem [shape: bf16[3,12,4], index: 1, kind: input, shape index: {}]
  %s2 = inlined_call_operand.vmem [shape: bf16[3,12,4], index: 2, kind: input, shape index: {}]
  %s3 = inlined_call_operand.vmem [shape: f32[2,16,16,4], index: 3, kind: output, shape index: {}]
  %s4 = sld [smem:[#allocation0]]
  $region45: #{resnet_block_nchw.1} parent=0
    _
  %s6 = ssub.s32 1, %s4
  %s7 = scalar_select 0, %s6, %s4
  loop: start=0, step=1, limit=4
  $region2: #{resnet_block_nchw.1} parent=0 // loop_pre_header
    _
  $region3: #{resnet_block_nchw.1} parent=0 // loop_header
    %s9 = sphi 0, %s13
    %p10 = scmp.ge.s32.totalorder %s9, 4
    %s19 = sphi 0, %s21
    %s22 = sphi 0, %s19
    %s23 = sphi 0, %s22
    %s39 = sphi 0, %s23
    %s43 = sphi 0, %s43
    %s45 = sphi 0, %s43
    %s46 = sphi 0, %s45
    %s60 = sphi 0, %s46
    %s64 = sphi 0, %s64
    %s66 = sphi 0, %s64
    %s67 = sphi 0, %s66
    %s81 = sphi 0, %s67
    %s87 = sphi 0, %s89
    %s90 = sphi 0, %s87
    %s91 = sphi 0, %s90
    %s107 = sphi 0, %s91
  $region4: #{resnet_block_nchw.1} parent=0 // loop_header_branch
    %12 = sbr.rel (%p10) target = $region8
  $region5: #{resnet_block_nchw.1} parent=0 // loop_body
    %s14 = ssub.s32 %s9, 1
    %s15 = ssub.s32 %s9, 2
    %s16 = sadd.s32 %s9, 1
    %s17 = ssub.s32 %s9, %s16
    %p18 = scmp.eq.s32.totalorder %s17, 0
    %s20 = sadd.s32 %s19, 1
    %s21 = scalar_select %p18, %s19, %s20
    %p24 = pneg %p18
    %p25 = scmp.eq.s32.totalorder %s9, 1
    %p26 = por %p24, %p25
    %p27 = scmp.ne.s32.totalorder %s19, %s22
    %p28 = scmp.eq.s32.totalorder %s9, 0
    %p29 = por %p27, %p28
    %p30 = scmp.ne.s32.totalorder %s19, %s22
    %p31 = scmp.eq.s32.totalorder %s14, 1
    %p32 = por %p30, %p31
    %p33 = scmp.ne.s32.totalorder %s22, %s23
    %p34 = scmp.eq.s32.totalorder %s14, 0
    %p35 = por %p33, %p34
    %p36 = scmp.ne.s32.totalorder %s22, %s23
    %p37 = scmp.eq.s32.totalorder %s15, 1
    %p38 = por %p36, %p37
    %p40 = scmp.ne.s32.totalorder %s23, %s39
    %p41 = scmp.eq.s32.totalorder %s15, 0
    %p42 = por %p40, %p41
    %s44 = sadd.s32 %s43, 1
    %p47 = scmp.eq.s32.totalorder %s9, 1
    %p48 = scmp.ne.s32.totalorder %s43, %s45
    %p49 = scmp.eq.s32.totalorder %s9, 0
    %p50 = por %p48, %p49
    %p51 = scmp.ne.s32.totalorder %s43, %s45
    %p52 = scmp.eq.s32.totalorder %s14, 1
    %p53 = por %p51, %p52
    %p54 = scmp.ne.s32.totalorder %s45, %s46
    %p55 = scmp.eq.s32.totalorder %s14, 0
    %p56 = por %p54, %p55
    %p57 = scmp.ne.s32.totalorder %s45, %s46
    %p58 = scmp.eq.s32.totalorder %s15, 1
    %p59 = por %p57, %p58
    %p61 = scmp.ne.s32.totalorder %s46, %s60
    %p62 = scmp.eq.s32.totalorder %s15, 0
    %p63 = por %p61, %p62
    %s65 = sadd.s32 %s64, 1
    %p68 = scmp.eq.s32.totalorder %s9, 1
    %p69 = scmp.ne.s32.totalorder %s64, %s66
    %p70 = scmp.eq.s32.totalorder %s9, 0
    %p71 = por %p69, %p70
    %p72 = scmp.ne.s32.totalorder %s64, %s66
    %p73 = scmp.eq.s32.totalorder %s14, 1
    %p74 = por %p72, %p73
    %p75 = scmp.ne.s32.totalorder %s66, %s67
    %p76 = scmp.eq.s32.totalorder %s14, 0
    %p77 = por %p75, %p76
    %p78 = scmp.ne.s32.totalorder %s66, %s67
    %p79 = scmp.eq.s32.totalorder %s15, 1
    %p80 = por %p78, %p79
    %p82 = scmp.ne.s32.totalorder %s67, %s81
    %p83 = scmp.eq.s32.totalorder %s15, 0
    %p84 = por %p82, %p83
    %s85 = ssub.s32 %s9, %s16
    %p86 = scmp.eq.s32.totalorder %s85, 0
    %s88 = sadd.s32 %s87, 1
    %s89 = scalar_select %p86, %s87, %s88
    %p92 = pneg %p86
    %p93 = scmp.eq.s32.totalorder %s9, 1
    %p94 = por %p92, %p93
    %p95 = scmp.ne.s32.totalorder %s87, %s90
    %p96 = scmp.eq.s32.totalorder %s9, 0
    %p97 = por %p95, %p96
    %p98 = scmp.ne.s32.totalorder %s87, %s90
    %p99 = scmp.eq.s32.totalorder %s14, 1
    %p100 = por %p98, %p99
    %p101 = scmp.ne.s32.totalorder %s90, %s91
    %p102 = scmp.eq.s32.totalorder %s14, 0
    %p103 = por %p101, %p102
    %p104 = scmp.ne.s32.totalorder %s90, %s91
    %p105 = scmp.eq.s32.totalorder %s15, 1
    %p106 = por %p104, %p105
    %p108 = scmp.ne.s32.totalorder %s91, %s107
    %p109 = scmp.eq.s32.totalorder %s15, 0
    %p110 = por %p108, %p109
    %p111 = scmp.le.s32.totalorder 1, %s9
    %p112 = scmp.lt.s32.totalorder %s9, 3
    %p113 = pnand %p111, %p112
    %p114 = pneg %p113
    // Predicated region
    $region9: #{resnet_block_nchw.1} parent=5 // pred_check
      _
    $region10: #{resnet_block_nchw.1} parent=5 // pred_check_branch
      %116 = sbr.rel (%p113) target = $region12
    $region11: #{resnet_block_nchw.1} parent=5 // pred_region
      %s117 = ssub.s32 %s9, 1
      // Predicated region
      $region13: #{resnet_block_nchw.1} parent=11 // pred_check
        %p118 = pneg %p56
      $region14: #{resnet_block_nchw.1} parent=11 // pred_check_branch
        %120 = sbr.rel (%p118) target = $region16
      $region15: #{resnet_block_nchw.1} parent=11 // pred_region
        _
      $region16: #{resnet_block_nchw.1} parent=11 // pred_fallthru
        _
      // Predicated region
      $region17: #{resnet_block_nchw.1} parent=11 // pred_check
        %p121 = pneg %p77
      $region18: #{resnet_block_nchw.1} parent=11 // pred_check_branch
        %123 = sbr.rel (%p121) target = $region20
      $region19: #{resnet_block_nchw.1} parent=11 // pred_region
        _
      $region20: #{resnet_block_nchw.1} parent=11 // pred_fallthru
        _
    $region12: #{resnet_block_nchw.1} parent=5 // pred_fallthru
      _
    %p124 = scmp.lt.s32.totalorder %s9, 2
    // Predicated region
    $region21: #{resnet_block_nchw.1} parent=5 // pred_check
      %p125 = pneg %p124
    $region22: #{resnet_block_nchw.1} parent=5 // pred_check_branch
      %127 = sbr.rel (%p125) target = $region24
    $region23: #{resnet_block_nchw.1} parent=5 // pred_region
      // Predicated region
      $region25: #{resnet_block_nchw.1} parent=23 // pred_check
        %p128 = pneg %p29
      $region26: #{resnet_block_nchw.1} parent=23 // pred_check_branch
        %130 = sbr.rel (%p128) target = $region28
      $region27: #{resnet_block_nchw.1} parent=23 // pred_region
        %p131 = scmp.lt.s32.totalorder %s9, 1
        %s132 = scalar_select %p131, %s9, 1
        %s133 = smul.addr %s132, 32
        %s134 = smul.addr %s133, 8
        %s135 = scalar_lea.vmem %s0, %s134
      $region28: #{resnet_block_nchw.1} parent=23 // pred_fallthru
        _
    $region24: #{resnet_block_nchw.1} parent=5 // pred_fallthru
      _
    %p136 = scmp.le.s32.totalorder 1, %s9
    %p137 = scmp.lt.s32.totalorder %s9, 3
    %p138 = pnand %p136, %p137
    %p139 = pneg %p138
    // Predicated region
    $region29: #{resnet_block_nchw.1} parent=5 // pred_check
      _
    $region30: #{resnet_block_nchw.1} parent=5 // pred_check_branch
      %141 = sbr.rel (%p138) target = $region32
    $region31: #{resnet_block_nchw.1} parent=5 // pred_region
      %s142 = ssub.s32 %s9, 1
      %p143 = scmp.lt.s32.totalorder %s14, 1
      %s144 = scalar_select %p143, %s14, 1
      %s145 = smul.addr %s144, 32
      %s146 = smul.addr %s145, 8
      %s147 = scalar_lea.vmem %s0, %s146
      %p148 = pneg %p35
      %p149 = pneg %p32
      %p150 = pneg %p56
      %p151 = pneg %p53
      %p152 = pneg %p77
      %p153 = pneg %p74
      %p154 = pneg %p103
      %p155 = pneg %p100
      %p156 = scmp.lt.s32.totalorder %s14, 1
      %s157 = scalar_select %p156, %s14, 1
      %s158 = smul.addr %s157, 32
      %s159 = smul.addr %s158, 8
      %s160 = scalar_lea.vmem %s3, %s159
      %p161 = scmp.lt.s32.totalorder %s14, 1
      %s162 = scalar_select %p161, %s14, 1
      %s163 = smul.addr %s162, 32
      %s164 = smul.addr %s163, 8
      %s165 = scalar_lea.vmem %s0, %s164
      %p166 = scmp.lt.s32.totalorder %s14, 1
      %s167 = scalar_select %p166, %s14, 1
      %s168 = smul.addr %s167, 32
      %s169 = smul.addr %s168, 8
      %s170 = scalar_lea.vmem %s3, %s169
      %v172 = vld [vmem:[%s165] sm:$0xff]
      %v173 = vld [vmem:[%s165 + $0x8] sm:$0xff]
      %v174 = vld [vmem:[%s165 + $0x10] sm:$0xff]
      %v175 = vld [vmem:[%s165 + $0x18] sm:$0xff]
      %v176 = vld [vmem:[%s165 + $0x20] sm:$0xff]
      %v177 = vld [vmem:[%s165 + $0x28] sm:$0xff]
      %v178 = vld [vmem:[%s165 + $0x30] sm:$0xff]
      %v179 = vld [vmem:[%s165 + $0x38] sm:$0xff]
      %v180 = vld [vmem:[%s165 + $0x40] sm:$0xff]
      %v181 = vld [vmem:[%s165 + $0x48] sm:$0xff]
      %v182 = vld [vmem:[%s165 + $0x50] sm:$0xff]
      %v183 = vld [vmem:[%s165 + $0x58] sm:$0xff]
      %v184 = vld [vmem:[%s165 + $0x60] sm:$0xff]
      %v185 = vld [vmem:[%s165 + $0x68] sm:$0xff]
      %v186 = vld [vmem:[%s165 + $0x70] sm:$0xff]
      %v187 = vld [vmem:[%s165 + $0x78] sm:$0xff]
      %v188 = vld [vmem:[%s165 + $0x80] sm:$0xff]
      %v189 = vld [vmem:[%s165 + $0x88] sm:$0xff]
      %v190 = vld [vmem:[%s165 + $0x90] sm:$0xff]
      %v191 = vld [vmem:[%s165 + $0x98] sm:$0xff]
      %v192 = vld [vmem:[%s165 + $0xa0] sm:$0xff]
      %v193 = vld [vmem:[%s165 + $0xa8] sm:$0xff]
      %v194 = vld [vmem:[%s165 + $0xb0] sm:$0xff]
      %v195 = vld [vmem:[%s165 + $0xb8] sm:$0xff]
      %v196 = vld [vmem:[%s165 + $0xc0] sm:$0xff]
      %v197 = vld [vmem:[%s165 + $0xc8] sm:$0xff]
      %v198 = vld [vmem:[%s165 + $0xd0] sm:$0xff]
      %v199 = vld [vmem:[%s165 + $0xd8] sm:$0xff]
      %v200 = vld [vmem:[%s165 + $0xe0] sm:$0xff]
      %v201 = vld [vmem:[%s165 + $0xe8] sm:$0xff]
      %v202 = vld [vmem:[%s165 + $0xf0] sm:$0xff]
      %v203 = vld [vmem:[%s165 + $0xf8] sm:$0xff]
      %v204 = vpack.c.bf16 %v173, %v172
      %v205 = vpack.c.bf16 %v175, %v174
      %v206 = vpack.c.bf16 %v177, %v176
      %v207 = vpack.c.bf16 %v179, %v178
      %v208 = vpack.c.bf16 %v181, %v180
      %v209 = vpack.c.bf16 %v183, %v182
      %v210 = vpack.c.bf16 %v185, %v184
      %v211 = vpack.c.bf16 %v187, %v186
      %v212 = vpack.c.bf16 %v189, %v188
      %v213 = vpack.c.bf16 %v191, %v190
      %v214 = vpack.c.bf16 %v193, %v192
      %v215 = vpack.c.bf16 %v195, %v194
      %v216 = vpack.c.bf16 %v197, %v196
      %v217 = vpack.c.bf16 %v199, %v198
      %v218 = vpack.c.bf16 %v201, %v200
      %v219 = vpack.c.bf16 %v203, %v202
      %v236 = vunpack.c.l.b16 %v204
      %v237 = vunpack.c.h.b16 %v204
      %v238 = vunpack.c.l.b16 %v205
      %v239 = vunpack.c.h.b16 %v205
      %v240 = vunpack.c.l.b16 %v206
      %v241 = vunpack.c.h.b16 %v206
      %v242 = vunpack.c.l.b16 %v207
      %v243 = vunpack.c.h.b16 %v207
      %v244 = vunpack.c.l.b16 %v208
      %v245 = vunpack.c.h.b16 %v208
      %v246 = vunpack.c.l.b16 %v209
      %v247 = vunpack.c.h.b16 %v209
      %v248 = vunpack.c.l.b16 %v210
      %v249 = vunpack.c.h.b16 %v210
      %v250 = vunpack.c.l.b16 %v211
      %v251 = vunpack.c.h.b16 %v211
      %v252 = vunpack.c.l.b16 %v212
      %v253 = vunpack.c.h.b16 %v212
      %v254 = vunpack.c.l.b16 %v213
      %v255 = vunpack.c.h.b16 %v213
      %v256 = vunpack.c.l.b16 %v214
      %v257 = vunpack.c.h.b16 %v214
      %v258 = vunpack.c.l.b16 %v215
      %v259 = vunpack.c.h.b16 %v215
      %v260 = vunpack.c.l.b16 %v216
      %v261 = vunpack.c.h.b16 %v216
      %v262 = vunpack.c.l.b16 %v217
      %v263 = vunpack.c.h.b16 %v217
      %v264 = vunpack.c.l.b16 %v218
      %v265 = vunpack.c.h.b16 %v218
      %v266 = vunpack.c.l.b16 %v219
      %v267 = vunpack.c.h.b16 %v219
      %v268 = vpack.c.b16 %v236, %v236
      %v269 = vpack.c.b16 %v237, %v237
      %v270 = vpack.c.b16 %v238, %v238
      %v271 = vpack.c.b16 %v239, %v239
      %v272 = vpack.c.b16 %v240, %v240
      %v273 = vpack.c.b16 %v241, %v241
      %v274 = vpack.c.b16 %v242, %v242
      %v275 = vpack.c.b16 %v243, %v243
      %v276 = vpack.c.b16 %v244, %v244
      %v277 = vpack.c.b16 %v245, %v245
      %v278 = vpack.c.b16 %v246, %v246
      %v279 = vpack.c.b16 %v247, %v247
      %v280 = vpack.c.b16 %v248, %v248
      %v281 = vpack.c.b16 %v249, %v249
      %v282 = vpack.c.b16 %v250, %v250
      %v283 = vpack.c.b16 %v251, %v251
      %v284 = vpack.c.b16 %v252, %v252
      %v285 = vpack.c.b16 %v253, %v253
      %v286 = vpack.c.b16 %v254, %v254
      %v287 = vpack.c.b16 %v255, %v255
      %v288 = vpack.c.b16 %v256, %v256
      %v289 = vpack.c.b16 %v257, %v257
      %v290 = vpack.c.b16 %v258, %v258
      %v291 = vpack.c.b16 %v259, %v259
      %v292 = vpack.c.b16 %v260, %v260
      %v293 = vpack.c.b16 %v261, %v261
      %v294 = vpack.c.b16 %v262, %v262
      %v295 = vpack.c.b16 %v263, %v263
      %v296 = vpack.c.b16 %v264, %v264
      %v297 = vpack.c.b16 %v265, %v265
      %v298 = vpack.c.b16 %v266, %v266
      %v299 = vpack.c.b16 %v267, %v267
      %vm300 = vsmask.f32 256
      %vm301 = vsmask.f32 4368
      %vm302 = vmor %vm300, %vm301
      %v304 = vshrl.u32 %v268, 16
      %v306 = vrot.slane %v304, 7
      %v307 = vshll.u32 %v268, 16
      %v309 = vor.u32 %v306, %v307
      %v310 = vrot.slane %v306, 4
      %v312 = vshrl.u32 %v269, 16
      %v314 = vrot.slane %v312, 7
      %v315 = vshll.u32 %v269, 16
      %v317 = vor.u32 %v314, %v315
      %v318 = vsel %vm302, %v310, %v317
      %v319 = vrot.slane %v314, 4
      %v321 = vshrl.u32 %v270, 16
      %v323 = vrot.slane %v321, 7
      %v324 = vshll.u32 %v270, 16
      %v326 = vor.u32 %v323, %v324
      %v327 = vrot.slane %v323, 4
      %v329 = vshrl.u32 %v271, 16
      %v331 = vrot.slane %v329, 7
      %v332 = vshll.u32 %v271, 16
      %v334 = vor.u32 %v331, %v332
      %v335 = vsel %vm302, %v327, %v334
      %v336 = vrot.slane %v331, 4
      %v338 = vshrl.u32 %v272, 16
      %v340 = vrot.slane %v338, 7
      %v341 = vshll.u32 %v272, 16
      %v343 = vor.u32 %v340, %v341
      %v344 = vrot.slane %v340, 4
      %v346 = vshrl.u32 %v273, 16
      %v348 = vrot.slane %v346, 7
      %v349 = vshll.u32 %v273, 16
      %v351 = vor.u32 %v348, %v349
      %v352 = vsel %vm302, %v344, %v351
      %v353 = vrot.slane %v348, 4
      %v355 = vshrl.u32 %v274, 16
      %v357 = vrot.slane %v355, 7
      %v358 = vshll.u32 %v274, 16
      %v360 = vor.u32 %v357, %v358
      %v361 = vrot.slane %v357, 4
      %v363 = vshrl.u32 %v275, 16
      %v365 = vrot.slane %v363, 7
      %v366 = vshll.u32 %v275, 16
      %v368 = vor.u32 %v365, %v366
      %v369 = vsel %vm302, %v361, %v368
      %v370 = vrot.slane %v365, 4
      %v372 = vshrl.u32 %v276, 16
      %v374 = vrot.slane %v372, 7
      %v375 = vshll.u32 %v276, 16
      %v377 = vor.u32 %v374, %v375
      %v378 = vrot.slane %v374, 4
      %v380 = vshrl.u32 %v277, 16
      %v382 = vrot.slane %v380, 7
      %v383 = vshll.u32 %v277, 16
      %v385 = vor.u32 %v382, %v383
      %v386 = vsel %vm302, %v378, %v385
      %v387 = vrot.slane %v382, 4
      %v389 = vshrl.u32 %v278, 16
      %v391 = vrot.slane %v389, 7
      %v392 = vshll.u32 %v278, 16
      %v394 = vor.u32 %v391, %v392
      %v395 = vrot.slane %v391, 4
      %v397 = vshrl.u32 %v279, 16
      %v399 = vrot.slane %v397, 7
      %v400 = vshll.u32 %v279, 16
      %v402 = vor.u32 %v399, %v400
      %v403 = vsel %vm302, %v395, %v402
      %v404 = vrot.slane %v399, 4
      %v406 = vshrl.u32 %v280, 16
      %v408 = vrot.slane %v406, 7
      %v409 = vshll.u32 %v280, 16
      %v411 = vor.u32 %v408, %v409
      %v412 = vrot.slane %v408, 4
      %v414 = vshrl.u32 %v281, 16
      %v416 = vrot.slane %v414, 7
      %v417 = vshll.u32 %v281, 16
      %v419 = vor.u32 %v416, %v417
      %v420 = vsel %vm302, %v412, %v419
      %v421 = vrot.slane %v416, 4
      %v423 = vshrl.u32 %v282, 16
      %v425 = vrot.slane %v423, 7
      %v426 = vshll.u32 %v282, 16
      %v428 = vor.u32 %v425, %v426
      %v429 = vrot.slane %v425, 4
      %v431 = vshrl.u32 %v283, 16
      %v433 = vrot.slane %v431, 7
      %v434 = vshll.u32 %v283, 16
      %v436 = vor.u32 %v433, %v434
      %v437 = vsel %vm302, %v429, %v436
      %v438 = vrot.slane %v433, 4
      %v440 = vshrl.u32 %v284, 16
      %v442 = vrot.slane %v440, 7
      %v443 = vshll.u32 %v284, 16
      %v445 = vor.u32 %v442, %v443
      %v446 = vrot.slane %v442, 4
      %v448 = vshrl.u32 %v285, 16
      %v450 = vrot.slane %v448, 7
      %v451 = vshll.u32 %v285, 16
      %v453 = vor.u32 %v450, %v451
      %v454 = vsel %vm302, %v446, %v453
      %v455 = vrot.slane %v450, 4
      %v457 = vshrl.u32 %v286, 16
      %v459 = vrot.slane %v457, 7
      %v460 = vshll.u32 %v286, 16
      %v462 = vor.u32 %v459, %v460
      %v463 = vrot.slane %v459, 4
      %v465 = vshrl.u32 %v287, 16
      %v467 = vrot.slane %v465, 7
      %v468 = vshll.u32 %v287, 16
      %v470 = vor.u32 %v467, %v468
      %v471 = vsel %vm302, %v463, %v470
      %v472 = vrot.slane %v467, 4
      %v474 = vshrl.u32 %v288, 16
      %v476 = vrot.slane %v474, 7
      %v477 = vshll.u32 %v288, 16
      %v479 = vor.u32 %v476, %v477
      %v480 = vrot.slane %v476, 4
      %v482 = vshrl.u32 %v289, 16
      %v484 = vrot.slane %v482, 7
      %v485 = vshll.u32 %v289, 16
      %v487 = vor.u32 %v484, %v485
      %v488 = vsel %vm302, %v480, %v487
      %v489 = vrot.slane %v484, 4
      %v491 = vshrl.u32 %v290, 16
      %v493 = vrot.slane %v491, 7
      %v494 = vshll.u32 %v290, 16
      %v496 = vor.u32 %v493, %v494
      %v497 = vrot.slane %v493, 4
      %v499 = vshrl.u32 %v291, 16
      %v501 = vrot.slane %v499, 7
      %v502 = vshll.u32 %v291, 16
      %v504 = vor.u32 %v501, %v502
      %v505 = vsel %vm302, %v497, %v504
      %v506 = vrot.slane %v501, 4
      %v508 = vshrl.u32 %v292, 16
      %v510 = vrot.slane %v508, 7
      %v511 = vshll.u32 %v292, 16
      %v513 = vor.u32 %v510, %v511
      %v514 = vrot.slane %v510, 4
      %v516 = vshrl.u32 %v293, 16
      %v518 = vrot.slane %v516, 7
      %v519 = vshll.u32 %v293, 16
      %v521 = vor.u32 %v518, %v519
      %v522 = vsel %vm302, %v514, %v521
      %v523 = vrot.slane %v518, 4
      %v525 = vshrl.u32 %v294, 16
      %v527 = vrot.slane %v525, 7
      %v528 = vshll.u32 %v294, 16
      %v530 = vor.u32 %v527, %v528
      %v531 = vrot.slane %v527, 4
      %v533 = vshrl.u32 %v295, 16
      %v535 = vrot.slane %v533, 7
      %v536 = vshll.u32 %v295, 16
      %v538 = vor.u32 %v535, %v536
      %v539 = vsel %vm302, %v531, %v538
      %v540 = vrot.slane %v535, 4
      %v542 = vshrl.u32 %v296, 16
      %v544 = vrot.slane %v542, 7
      %v545 = vshll.u32 %v296, 16
      %v547 = vor.u32 %v544, %v545
      %v548 = vrot.slane %v544, 4
      %v550 = vshrl.u32 %v297, 16
      %v552 = vrot.slane %v550, 7
      %v553 = vshll.u32 %v297, 16
      %v555 = vor.u32 %v552, %v553
      %v556 = vsel %vm302, %v548, %v555
      %v557 = vrot.slane %v552, 4
      %v559 = vshrl.u32 %v298, 16
      %v561 = vrot.slane %v559, 7
      %v562 = vshll.u32 %v298, 16
      %v564 = vor.u32 %v561, %v562
      %v565 = vrot.slane %v561, 4
      %v567 = vshrl.u32 %v299, 16
      %v569 = vrot.slane %v567, 7
      %v570 = vshll.u32 %v299, 16
      %v572 = vor.u32 %v569, %v570
      %v573 = vsel %vm302, %v565, %v572
      %v574 = vrot.slane %v569, 4
      %s623 = scalar_lea.vmem [#allocation2], 12
      %vm624 = vcmask 27648
      %vm625 = vsmask.f32 7938
      %vm626 = vmand %vm624, %vm625
      %v627 = vld [vmem:[%s623] sm:$0xf]
      %v628 = vsel %vm626, %v309, %v627
      %629 = vst [vmem:[%s623] sm:$0xf] %v628
      %vm630 = vcmask 27648
      %631 = vst.msk [vmem:[%s623 + $0x4] sm:$0xf] %vm630, %v318
      %vm632 = vcmask 24576
      %vm633 = vmand %vm632, %vm300
      %v634 = vld [vmem:[%s623 + $0x8] sm:$0x1]
      %v635 = vsel %vm633, %v319, %v634
      %636 = vst [vmem:[%s623 + $0x8] sm:$0x1] %v635
      %v637 = vld [vmem:[%s623 + $0xc] sm:$0xf]
      %v638 = vsel %vm626, %v326, %v637
      %639 = vst [vmem:[%s623 + $0xc] sm:$0xf] %v638
      %640 = vst.msk [vmem:[%s623 + $0x10] sm:$0xf] %vm630, %v335
      %v641 = vld [vmem:[%s623 + $0x14] sm:$0x1]
      %v642 = vsel %vm633, %v336, %v641
      %643 = vst [vmem:[%s623 + $0x14] sm:$0x1] %v642
      %v644 = vld [vmem:[%s623 + $0x18] sm:$0xf]
      %v645 = vsel %vm626, %v343, %v644
      %646 = vst [vmem:[%s623 + $0x18] sm:$0xf] %v645
      %647 = vst.msk [vmem:[%s623 + $0x1c] sm:$0xf] %vm630, %v352
      %v648 = vld [vmem:[%s623 + $0x20] sm:$0x1]
      %v649 = vsel %vm633, %v353, %v648
      %650 = vst [vmem:[%s623 + $0x20] sm:$0x1] %v649
      %v651 = vld [vmem:[%s623 + $0x24] sm:$0xf]
      %v652 = vsel %vm626, %v360, %v651
      %653 = vst [vmem:[%s623 + $0x24] sm:$0xf] %v652
      %654 = vst.msk [vmem:[%s623 + $0x28] sm:$0xf] %vm630, %v369
      %v655 = vld [vmem:[%s623 + $0x2c] sm:$0x1]
      %v656 = vsel %vm633, %v370, %v655
      %657 = vst [vmem:[%s623 + $0x2c] sm:$0x1] %v656
      %v658 = vld [vmem:[%s623 + $0x30] sm:$0xf]
      %v659 = vsel %vm626, %v377, %v658
      %660 = vst [vmem:[%s623 + $0x30] sm:$0xf] %v659
      %661 = vst.msk [vmem:[%s623 + $0x34] sm:$0xf] %vm630, %v386
      %v662 = vld [vmem:[%s623 + $0x38] sm:$0x1]
      %v663 = vsel %vm633, %v387, %v662
      %664 = vst [vmem:[%s623 + $0x38] sm:$0x1] %v663
      %v665 = vld [vmem:[%s623 + $0x3c] sm:$0xf]
      %v666 = vsel %vm626, %v394, %v665
      %667 = vst [vmem:[%s623 + $0x3c] sm:$0xf] %v666
      %668 = vst.msk [vmem:[%s623 + $0x40] sm:$0xf] %vm630, %v403
      %v669 = vld [vmem:[%s623 + $0x44] sm:$0x1]
      %v670 = vsel %vm633, %v404, %v669
      %671 = vst [vmem:[%s623 + $0x44] sm:$0x1] %v670
      %v672 = vld [vmem:[%s623 + $0x48] sm:$0xf]
      %v673 = vsel %vm626, %v411, %v672
      %674 = vst [vmem:[%s623 + $0x48] sm:$0xf] %v673
      %675 = vst.msk [vmem:[%s623 + $0x4c] sm:$0xf] %vm630, %v420
      %v676 = vld [vmem:[%s623 + $0x50] sm:$0x1]
      %v677 = vsel %vm633, %v421, %v676
      %678 = vst [vmem:[%s623 + $0x50] sm:$0x1] %v677
      %v679 = vld [vmem:[%s623 + $0x54] sm:$0xf]
      %v680 = vsel %vm626, %v428, %v679
      %681 = vst [vmem:[%s623 + $0x54] sm:$0xf] %v680
      %682 = vst.msk [vmem:[%s623 + $0x58] sm:$0xf] %vm630, %v437
      %v683 = vld [vmem:[%s623 + $0x5c] sm:$0x1]
      %v684 = vsel %vm633, %v438, %v683
      %685 = vst [vmem:[%s623 + $0x5c] sm:$0x1] %v684
      %v686 = vld [vmem:[%s623 + $0x60] sm:$0xf]
      %v687 = vsel %vm626, %v445, %v686
      %688 = vst [vmem:[%s623 + $0x60] sm:$0xf] %v687
      %689 = vst.msk [vmem:[%s623 + $0x64] sm:$0xf] %vm630, %v454
      %v690 = vld [vmem:[%s623 + $0x68] sm:$0x1]
      %v691 = vsel %vm633, %v455, %v690
      %692 = vst [vmem:[%s623 + $0x68] sm:$0x1] %v691
      %v693 = vld [vmem:[%s623 + $0x6c] sm:$0xf]
      %v694 = vsel %vm626, %v462, %v693
      %695 = vst [vmem:[%s623 + $0x6c] sm:$0xf] %v694
      %696 = vst.msk [vmem:[%s623 + $0x70] sm:$0xf] %vm630, %v471
      %v697 = vld [vmem:[%s623 + $0x74] sm:$0x1]
      %v698 = vsel %vm633, %v472, %v697
      %699 = vst [vmem:[%s623 + $0x74] sm:$0x1] %v698
      %v700 = vld [vmem:[%s623 + $0x78] sm:$0xf]
      %v701 = vsel %vm626, %v479, %v700
      %702 = vst [vmem:[%s623 + $0x78] sm:$0xf] %v701
      %703 = vst.msk [vmem:[%s623 + $0x7c] sm:$0xf] %vm630, %v488
      %v704 = vld [vmem:[%s623 + $0x80] sm:$0x1]
      %v705 = vsel %vm633, %v489, %v704
      %706 = vst [vmem:[%s623 + $0x80] sm:$0x1] %v705
      %v707 = vld [vmem:[%s623 + $0x84] sm:$0xf]
      %v708 = vsel %vm626, %v496, %v707
      %709 = vst [vmem:[%s623 + $0x84] sm:$0xf] %v708
      %710 = vst.msk [vmem:[%s623 + $0x88] sm:$0xf] %vm630, %v505
      %v711 = vld [vmem:[%s623 + $0x8c] sm:$0x1]
      %v712 = vsel %vm633, %v506, %v711
      %713 = vst [vmem:[%s623 + $0x8c] sm:$0x1] %v712
      %v714 = vld [vmem:[%s623 + $0x90] sm:$0xf]
      %v715 = vsel %vm626, %v513, %v714
      %716 = vst [vmem:[%s623 + $0x90] sm:$0xf] %v715
      %717 = vst.msk [vmem:[%s623 + $0x94] sm:$0xf] %vm630, %v522
      %v718 = vld [vmem:[%s623 + $0x98] sm:$0x1]
      %v719 = vsel %vm633, %v523, %v718
      %720 = vst [vmem:[%s623 + $0x98] sm:$0x1] %v719
      %v721 = vld [vmem:[%s623 + $0x9c] sm:$0xf]
      %v722 = vsel %vm626, %v530, %v721
      %723 = vst [vmem:[%s623 + $0x9c] sm:$0xf] %v722
      %724 = vst.msk [vmem:[%s623 + $0xa0] sm:$0xf] %vm630, %v539
      %v725 = vld [vmem:[%s623 + $0xa4] sm:$0x1]
      %v726 = vsel %vm633, %v540, %v725
      %727 = vst [vmem:[%s623 + $0xa4] sm:$0x1] %v726
      %v728 = vld [vmem:[%s623 + $0xa8] sm:$0xf]
      %v729 = vsel %vm626, %v547, %v728
      %730 = vst [vmem:[%s623 + $0xa8] sm:$0xf] %v729
      %731 = vst.msk [vmem:[%s623 + $0xac] sm:$0xf] %vm630, %v556
      %v732 = vld [vmem:[%s623 + $0xb0] sm:$0x1]
      %v733 = vsel %vm633, %v557, %v732
      %734 = vst [vmem:[%s623 + $0xb0] sm:$0x1] %v733
      %v735 = vld [vmem:[%s623 + $0xb4] sm:$0xf]
      %v736 = vsel %vm626, %v564, %v735
      %737 = vst [vmem:[%s623 + $0xb4] sm:$0xf] %v736
      %738 = vst.msk [vmem:[%s623 + $0xb8] sm:$0xf] %vm630, %v573
      %v739 = vld [vmem:[%s623 + $0xbc] sm:$0x1]
      %v740 = vsel %vm633, %v574, %v739
      %741 = vst [vmem:[%s623 + $0xbc] sm:$0x1] %v740
      %s742 = scalar_lea.vmem [#allocation2], 24
      %v743 = vld [vmem:[%s742] sm:$0xf]
      %v744 = vld [vmem:[%s742 + $0x4] sm:$0xf]
      %v745 = vld [vmem:[%s742 + $0x8] sm:$0x1]
      %v746 = vld [vmem:[#allocation2] sm:$0xf]
      %v747 = vsel %vm626, %v743, %v746
      %748 = vst [vmem:[#allocation2] sm:$0xf] %v747
      %749 = vst.msk [vmem:[#allocation2 + $0x4] sm:$0xf] %vm630, %v744
      %v750 = vld [vmem:[#allocation2 + $0x8] sm:$0x1]
      %v751 = vsel %vm633, %v745, %v750
      %752 = vst [vmem:[#allocation2 + $0x8] sm:$0x1] %v751
      %s753 = scalar_lea.vmem [#allocation2], 180
      %v754 = vld [vmem:[%s753] sm:$0xf]
      %v755 = vld [vmem:[%s753 + $0x4] sm:$0xf]
      %v756 = vld [vmem:[%s753 + $0x8] sm:$0x1]
      %s757 = scalar_lea.vmem [#allocation2], 204
      %v758 = vld [vmem:[%s757] sm:$0xf]
      %v759 = vsel %vm626, %v754, %v758
      %760 = vst [vmem:[%s757] sm:$0xf] %v759
      %761 = vst.msk [vmem:[%s757 + $0x4] sm:$0xf] %vm630, %v755
      %v762 = vld [vmem:[%s757 + $0x8] sm:$0x1]
      %v763 = vsel %vm633, %v756, %v762
      %764 = vst [vmem:[%s757 + $0x8] sm:$0x1] %v763
      %v765 = vld [vmem:[#allocation2] sm:$0x2]
      %v766 = vld [vmem:[#allocation2 + $0xc] sm:$0x2]
      %v767 = vld [vmem:[#allocation2 + $0x18] sm:$0x2]
      %v768 = vld [vmem:[#allocation2 + $0x24] sm:$0x2]
      %v769 = vld [vmem:[#allocation2 + $0x30] sm:$0x2]
      %v770 = vld [vmem:[#allocation2 + $0x3c] sm:$0x2]
      %v771 = vld [vmem:[#allocation2 + $0x48] sm:$0x2]
      %v772 = vld [vmem:[#allocation2 + $0x54] sm:$0x2]
      %v773 = vld [vmem:[#allocation2 + $0x60] sm:$0x2]
      %v774 = vld [vmem:[#allocation2 + $0x6c] sm:$0x2]
      %v775 = vld [vmem:[#allocation2 + $0x78] sm:$0x2]
      %v776 = vld [vmem:[#allocation2 + $0x84] sm:$0x2]
      %v777 = vld [vmem:[#allocation2 + $0x90] sm:$0x2]
      %v778 = vld [vmem:[#allocation2 + $0x9c] sm:$0x2]
      %v779 = vld [vmem:[#allocation2 + $0xa8] sm:$0x2]
      %v780 = vld [vmem:[#allocation2 + $0xb4] sm:$0x2]
      %v781 = vld [vmem:[#allocation2 + $0xc0] sm:$0x2]
      %v782 = vld [vmem:[#allocation2 + $0xcc] sm:$0x2]
      %v801 = vrot.slane %v765, 5
      %v802 = vrot.slane %v801, 4
      %v803 = vrot.slane %v766, 5
      %v804 = vrot.slane %v803, 4
      %v805 = vrot.slane %v767, 5
      %v806 = vrot.slane %v805, 4
      %v807 = vrot.slane %v768, 5
      %v808 = vrot.slane %v807, 4
      %v809 = vrot.slane %v769, 5
      %v810 = vrot.slane %v809, 4
      %v811 = vrot.slane %v770, 5
      %v812 = vrot.slane %v811, 4
      %v813 = vrot.slane %v771, 5
      %v814 = vrot.slane %v813, 4
      %v815 = vrot.slane %v772, 5
      %v816 = vrot.slane %v815, 4
      %v817 = vrot.slane %v773, 5
      %v818 = vrot.slane %v817, 4
      %v819 = vrot.slane %v774, 5
      %v820 = vrot.slane %v819, 4
      %v821 = vrot.slane %v775, 5
      %v822 = vrot.slane %v821, 4
      %v823 = vrot.slane %v776, 5
      %v824 = vrot.slane %v823, 4
      %v825 = vrot.slane %v777, 5
      %v826 = vrot.slane %v825, 4
      %v827 = vrot.slane %v778, 5
      %v828 = vrot.slane %v827, 4
      %v829 = vrot.slane %v779, 5
      %v830 = vrot.slane %v829, 4
      %v831 = vrot.slane %v780, 5
      %v832 = vrot.slane %v831, 4
      %v833 = vrot.slane %v781, 5
      %v834 = vrot.slane %v833, 4
      %v835 = vrot.slane %v782, 5
      %v836 = vrot.slane %v835, 4
      %v855 = vld [vmem:[#allocation2] sm:$0x1]
      %v856 = vsel %vm633, %v802, %v855
      %857 = vst [vmem:[#allocation2] sm:$0x1] %v856
      %v858 = vld [vmem:[#allocation2 + $0xc] sm:$0x1]
      %v859 = vsel %vm633, %v804, %v858
      %860 = vst [vmem:[#allocation2 + $0xc] sm:$0x1] %v859
      %v861 = vld [vmem:[#allocation2 + $0x18] sm:$0x1]
      %v862 = vsel %vm633, %v806, %v861
      %863 = vst [vmem:[#allocation2 + $0x18] sm:$0x1] %v862
      %v864 = vld [vmem:[#allocation2 + $0x24] sm:$0x1]
      %v865 = vsel %vm633, %v808, %v864
      %866 = vst [vmem:[#allocation2 + $0x24] sm:$0x1] %v865
      %v867 = vld [vmem:[#allocation2 + $0x30] sm:$0x1]
      %v868 = vsel %vm633, %v810, %v867
      %869 = vst [vmem:[#allocation2 + $0x30] sm:$0x1] %v868
      %v870 = vld [vmem:[#allocation2 + $0x3c] sm:$0x1]
      %v871 = vsel %vm633, %v812, %v870
      %872 = vst [vmem:[#allocation2 + $0x3c] sm:$0x1] %v871
      %v873 = vld [vmem:[#allocation2 + $0x48] sm:$0x1]
      %v874 = vsel %vm633, %v814, %v873
      %875 = vst [vmem:[#allocation2 + $0x48] sm:$0x1] %v874
      %v876 = vld [vmem:[#allocation2 + $0x54] sm:$0x1]
      %v877 = vsel %vm633, %v816, %v876
      %878 = vst [vmem:[#allocation2 + $0x54] sm:$0x1] %v877
      %v879 = vld [vmem:[#allocation2 + $0x60] sm:$0x1]
      %v880 = vsel %vm633, %v818, %v879
      %881 = vst [vmem:[#allocation2 + $0x60] sm:$0x1] %v880
      %v882 = vld [vmem:[#allocation2 + $0x6c] sm:$0x1]
      %v883 = vsel %vm633, %v820, %v882
      %884 = vst [vmem:[#allocation2 + $0x6c] sm:$0x1] %v883
      %v885 = vld [vmem:[#allocation2 + $0x78] sm:$0x1]
      %v886 = vsel %vm633, %v822, %v885
      %887 = vst [vmem:[#allocation2 + $0x78] sm:$0x1] %v886
      %v888 = vld [vmem:[#allocation2 + $0x84] sm:$0x1]
      %v889 = vsel %vm633, %v824, %v888
      %890 = vst [vmem:[#allocation2 + $0x84] sm:$0x1] %v889
      %v891 = vld [vmem:[#allocation2 + $0x90] sm:$0x1]
      %v892 = vsel %vm633, %v826, %v891
      %893 = vst [vmem:[#allocation2 + $0x90] sm:$0x1] %v892
      %v894 = vld [vmem:[#allocation2 + $0x9c] sm:$0x1]
      %v895 = vsel %vm633, %v828, %v894
      %896 = vst [vmem:[#allocation2 + $0x9c] sm:$0x1] %v895
      %v897 = vld [vmem:[#allocation2 + $0xa8] sm:$0x1]
      %v898 = vsel %vm633, %v830, %v897
      %899 = vst [vmem:[#allocation2 + $0xa8] sm:$0x1] %v898
      %v900 = vld [vmem:[#allocation2 + $0xb4] sm:$0x1]
      %v901 = vsel %vm633, %v832, %v900
      %902 = vst [vmem:[#allocation2 + $0xb4] sm:$0x1] %v901
      %v903 = vld [vmem:[#allocation2 + $0xc0] sm:$0x1]
      %v904 = vsel %vm633, %v834, %v903
      %905 = vst [vmem:[#allocation2 + $0xc0] sm:$0x1] %v904
      %v906 = vld [vmem:[#allocation2 + $0xcc] sm:$0x1]
      %v907 = vsel %vm633, %v836, %v906
      %908 = vst [vmem:[#allocation2 + $0xcc] sm:$0x1] %v907
      %v909 = vld [vmem:[#allocation2 + $0x4] sm:$0x8]
      %v910 = vld [vmem:[#allocation2 + $0x10] sm:$0x8]
      %v911 = vld [vmem:[#allocation2 + $0x1c] sm:$0x8]
      %v912 = vld [vmem:[#allocation2 + $0x28] sm:$0x8]
      %v913 = vld [vmem:[#allocation2 + $0x34] sm:$0x8]
      %v914 = vld [vmem:[#allocation2 + $0x40] sm:$0x8]
      %v915 = vld [vmem:[#allocation2 + $0x4c] sm:$0x8]
      %v916 = vld [vmem:[#allocation2 + $0x58] sm:$0x8]
      %v917 = vld [vmem:[#allocation2 + $0x64] sm:$0x8]
      %v918 = vld [vmem:[#allocation2 + $0x70] sm:$0x8]
      %v919 = vld [vmem:[#allocation2 + $0x7c] sm:$0x8]
      %v920 = vld [vmem:[#allocation2 + $0x88] sm:$0x8]
      %v921 = vld [vmem:[#allocation2 + $0x94] sm:$0x8]
      %v922 = vld [vmem:[#allocation2 + $0xa0] sm:$0x8]
      %v923 = vld [vmem:[#allocation2 + $0xac] sm:$0x8]
      %v924 = vld [vmem:[#allocation2 + $0xb8] sm:$0x8]
      %v925 = vld [vmem:[#allocation2 + $0xc4] sm:$0x8]
      %v926 = vld [vmem:[#allocation2 + $0xd0] sm:$0x8]
      %v945 = vrot.slane %v909, 7
      %v946 = vrot.slane %v945, 4
      %v947 = vrot.slane %v910, 7
      %v948 = vrot.slane %v947, 4
      %v949 = vrot.slane %v911, 7
      %v950 = vrot.slane %v949, 4
      %v951 = vrot.slane %v912, 7
      %v952 = vrot.slane %v951, 4
      %v953 = vrot.slane %v913, 7
      %v954 = vrot.slane %v953, 4
      %v955 = vrot.slane %v914, 7
      %v956 = vrot.slane %v955, 4
      %v957 = vrot.slane %v915, 7
      %v958 = vrot.slane %v957, 4
      %v959 = vrot.slane %v916, 7
      %v960 = vrot.slane %v959, 4
      %v961 = vrot.slane %v917, 7
      %v962 = vrot.slane %v961, 4
      %v963 = vrot.slane %v918, 7
      %v964 = vrot.slane %v963, 4
      %v965 = vrot.slane %v919, 7
      %v966 = vrot.slane %v965, 4
      %v967 = vrot.slane %v920, 7
      %v968 = vrot.slane %v967, 4
      %v969 = vrot.slane %v921, 7
      %v970 = vrot.slane %v969, 4
      %v971 = vrot.slane %v922, 7
      %v972 = vrot.slane %v971, 4
      %v973 = vrot.slane %v923, 7
      %v974 = vrot.slane %v973, 4
      %v975 = vrot.slane %v924, 7
      %v976 = vrot.slane %v975, 4
      %v977 = vrot.slane %v925, 7
      %v978 = vrot.slane %v977, 4
      %v979 = vrot.slane %v926, 7
      %v980 = vrot.slane %v979, 4
      %vm999 = vmand %vm632, %vm625
      %v1000 = vld [vmem:[#allocation2 + $0x8] sm:$0x1]
      %v1001 = vsel %vm999, %v946, %v1000
      %1002 = vst [vmem:[#allocation2 + $0x8] sm:$0x1] %v1001
      %v1003 = vld [vmem:[#allocation2 + $0x14] sm:$0x1]
      %v1004 = vsel %vm999, %v948, %v1003
      %1005 = vst [vmem:[#allocation2 + $0x14] sm:$0x1] %v1004
      %v1006 = vld [vmem:[#allocation2 + $0x20] sm:$0x1]
      %v1007 = vsel %vm999, %v950, %v1006
      %1008 = vst [vmem:[#allocation2 + $0x20] sm:$0x1] %v1007
      %v1009 = vld [vmem:[#allocation2 + $0x2c] sm:$0x1]
      %v1010 = vsel %vm999, %v952, %v1009
      %1011 = vst [vmem:[#allocation2 + $0x2c] sm:$0x1] %v1010
      %v1012 = vld [vmem:[#allocation2 + $0x38] sm:$0x1]
      %v1013 = vsel %vm999, %v954, %v1012
      %1014 = vst [vmem:[#allocation2 + $0x38] sm:$0x1] %v1013
      %v1015 = vld [vmem:[#allocation2 + $0x44] sm:$0x1]
      %v1016 = vsel %vm999, %v956, %v1015
      %1017 = vst [vmem:[#allocation2 + $0x44] sm:$0x1] %v1016
      %v1018 = vld [vmem:[#allocation2 + $0x50] sm:$0x1]
      %v1019 = vsel %vm999, %v958, %v1018
      %1020 = vst [vmem:[#allocation2 + $0x50] sm:$0x1] %v1019
      %v1021 = vld [vmem:[#allocation2 + $0x5c] sm:$0x1]
      %v1022 = vsel %vm999, %v960, %v1021
      %1023 = vst [vmem:[#allocation2 + $0x5c] sm:$0x1] %v1022
      %v1024 = vld [vmem:[#allocation2 + $0x68] sm:$0x1]
      %v1025 = vsel %vm999, %v962, %v1024
      %1026 = vst [vmem:[#allocation2 + $0x68] sm:$0x1] %v1025
      %v1027 = vld [vmem:[#allocation2 + $0x74] sm:$0x1]
      %v1028 = vsel %vm999, %v964, %v1027
      %1029 = vst [vmem:[#allocation2 + $0x74] sm:$0x1] %v1028
      %v1030 = vld [vmem:[#allocation2 + $0x80] sm:$0x1]
      %v1031 = vsel %vm999, %v966, %v1030
      %1032 = vst [vmem:[#allocation2 + $0x80] sm:$0x1] %v1031
      %v1033 = vld [vmem:[#allocation2 + $0x8c] sm:$0x1]
      %v1034 = vsel %vm999, %v968, %v1033
      %1035 = vst [vmem:[#allocation2 + $0x8c] sm:$0x1] %v1034
      %v1036 = vld [vmem:[#allocation2 + $0x98] sm:$0x1]
      %v1037 = vsel %vm999, %v970, %v1036
      %1038 = vst [vmem:[#allocation2 + $0x98] sm:$0x1] %v1037
      %v1039 = vld [vmem:[#allocation2 + $0xa4] sm:$0x1]
      %v1040 = vsel %vm999, %v972, %v1039
      %1041 = vst [vmem:[#allocation2 + $0xa4] sm:$0x1] %v1040
      %v1042 = vld [vmem:[#allocation2 + $0xb0] sm:$0x1]
      %v1043 = vsel %vm999, %v974, %v1042
      %1044 = vst [vmem:[#allocation2 + $0xb0] sm:$0x1] %v1043
      %v1045 = vld [vmem:[#allocation2 + $0xbc] sm:$0x1]
      %v1046 = vsel %vm999, %v976, %v1045
      %1047 = vst [vmem:[#allocation2 + $0xbc] sm:$0x1] %v1046
      %v1048 = vld [vmem:[#allocation2 + $0xc8] sm:$0x1]
      %v1049 = vsel %vm999, %v978, %v1048
      %1050 = vst [vmem:[#allocation2 + $0xc8] sm:$0x1] %v1049
      %v1051 = vld [vmem:[#allocation2 + $0xd4] sm:$0x1]
      %v1052 = vsel %vm999, %v980, %v1051
      %1053 = vst [vmem:[#allocation2 + $0xd4] sm:$0x1] %v1052
      %v1054 = vld [vmem:[#allocation2] sm:$0xf]
      %v1055 = vld [vmem:[#allocation2 + $0x4] sm:$0xf]
      %v1056 = vld [vmem:[#allocation2 + $0xc] sm:$0xf]
      %v1057 = vld [vmem:[#allocation2 + $0x10] sm:$0xf]
      %v1058 = vld [vmem:[#allocation2 + $0x18] sm:$0xf]
      %v1059 = vld [vmem:[#allocation2 + $0x1c] sm:$0xf]
      %v1060 = vld [vmem:[#allocation2 + $0x24] sm:$0xf]
      %v1061 = vld [vmem:[#allocation2 + $0x28] sm:$0xf]
      %v1062 = vld [vmem:[#allocation2 + $0x30] sm:$0xf]
      %v1063 = vld [vmem:[#allocation2 + $0x34] sm:$0xf]
      %v1064 = vld [vmem:[#allocation2 + $0x3c] sm:$0xf]
      %v1065 = vld [vmem:[#allocation2 + $0x40] sm:$0xf]
      %v1066 = vld [vmem:[#allocation2 + $0x48] sm:$0xf]
      %v1067 = vld [vmem:[#allocation2 + $0x4c] sm:$0xf]
      %v1068 = vld [vmem:[#allocation2 + $0x54] sm:$0xf]
      %v1069 = vld [vmem:[#allocation2 + $0x58] sm:$0xf]
      %v1070 = vld [vmem:[#allocation2 + $0x60] sm:$0xf]
      %v1071 = vld [vmem:[#allocation2 + $0x64] sm:$0xf]
      %v1072 = vld [vmem:[#allocation2 + $0x6c] sm:$0xf]
      %v1073 = vld [vmem:[#allocation2 + $0x70] sm:$0xf]
      %v1074 = vld [vmem:[#allocation2 + $0x78] sm:$0xf]
      %v1075 = vld [vmem:[#allocation2 + $0x7c] sm:$0xf]
      %v1076 = vld [vmem:[#allocation2 + $0x84] sm:$0xf]
      %v1077 = vld [vmem:[#allocation2 + $0x88] sm:$0xf]
      %v1078 = vld [vmem:[#allocation2 + $0x90] sm:$0xf]
      %v1079 = vld [vmem:[#allocation2 + $0x94] sm:$0xf]
      %v1080 = vld [vmem:[#allocation2 + $0x9c] sm:$0xf]
      %v1081 = vld [vmem:[#allocation2 + $0xa0] sm:$0xf]
      %v1082 = vld [vmem:[#allocation2 + $0xa8] sm:$0xf]
      %v1083 = vld [vmem:[#allocation2 + $0xac] sm:$0xf]
      %v1084 = vld [vmem:[#allocation2 + $0xb4] sm:$0xf]
      %v1085 = vld [vmem:[#allocation2 + $0xb8] sm:$0xf]
      %v1086 = vld [vmem:[#allocation2 + $0xc0] sm:$0xf]
      %v1087 = vld [vmem:[#allocation2 + $0xc4] sm:$0xf]
      %v1088 = vld [vmem:[#allocation2 + $0xcc] sm:$0xf]
      %v1089 = vld [vmem:[#allocation2 + $0xd0] sm:$0xf]
      %v1126 = vunpack.c.l.b16 %v1054
      %v1127 = vunpack.c.l.b16 %v1055
      %v1128 = vunpack.c.l.b16 %v1056
      %v1129 = vunpack.c.l.b16 %v1057
      %v1130 = vunpack.c.l.b16 %v1058
      %v1131 = vunpack.c.l.b16 %v1059
      %v1132 = vunpack.c.l.b16 %v1060
      %v1133 = vunpack.c.l.b16 %v1061
      %v1134 = vunpack.c.l.b16 %v1062
      %v1135 = vunpack.c.l.b16 %v1063
      %v1136 = vunpack.c.l.b16 %v1064
      %v1137 = vunpack.c.l.b16 %v1065
      %v1138 = vunpack.c.l.b16 %v1066
      %v1139 = vunpack.c.l.b16 %v1067
      %v1140 = vunpack.c.l.b16 %v1068
      %v1141 = vunpack.c.l.b16 %v1069
      %v1142 = vunpack.c.l.b16 %v1070
      %v1143 = vunpack.c.l.b16 %v1071
      %v1144 = vunpack.c.l.b16 %v1072
      %v1145 = vunpack.c.l.b16 %v1073
      %v1146 = vunpack.c.l.b16 %v1074
      %v1147 = vunpack.c.l.b16 %v1075
      %v1148 = vunpack.c.l.b16 %v1076
      %v1149 = vunpack.c.l.b16 %v1077
      %v1150 = vunpack.c.l.b16 %v1078
      %v1151 = vunpack.c.l.b16 %v1079
      %v1152 = vunpack.c.l.b16 %v1080
      %v1153 = vunpack.c.l.b16 %v1081
      %v1154 = vunpack.c.l.b16 %v1082
      %v1155 = vunpack.c.l.b16 %v1083
      %v1156 = vunpack.c.l.b16 %v1084
      %v1157 = vunpack.c.l.b16 %v1085
      %v1158 = vunpack.c.l.b16 %v1086
      %v1159 = vunpack.c.l.b16 %v1087
      %v1160 = vunpack.c.l.b16 %v1088
      %v1161 = vunpack.c.l.b16 %v1089
      %v1162 = vpack.c.b16 %v1127, %v1126
      %v1163 = vpack.c.b16 %v1129, %v1128
      %v1164 = vpack.c.b16 %v1131, %v1130
      %v1165 = vpack.c.b16 %v1133, %v1132
      %v1166 = vpack.c.b16 %v1135, %v1134
      %v1167 = vpack.c.b16 %v1137, %v1136
      %v1168 = vpack.c.b16 %v1139, %v1138
      %v1169 = vpack.c.b16 %v1141, %v1140
      %v1170 = vpack.c.b16 %v1143, %v1142
      %v1171 = vpack.c.b16 %v1145, %v1144
      %v1172 = vpack.c.b16 %v1147, %v1146
      %v1173 = vpack.c.b16 %v1149, %v1148
      %v1174 = vpack.c.b16 %v1151, %v1150
      %v1175 = vpack.c.b16 %v1153, %v1152
      %v1176 = vpack.c.b16 %v1155, %v1154
      %v1177 = vpack.c.b16 %v1157, %v1156
      %v1178 = vpack.c.b16 %v1159, %v1158
      %v1179 = vpack.c.b16 %v1161, %v1160
      %vm1198 = vcmask 31744
      %1199 = vst.msk [vmem:[#allocation3] sm:$0xff] %vm1198, %v1162
      %1200 = vst.msk [vmem:[#allocation3 + $0x8] sm:$0xff] %vm1198, %v1163
      %1201 = vst.msk [vmem:[#allocation3 + $0x10] sm:$0xff] %vm1198, %v1164
      %1202 = vst.msk [vmem:[#allocation3 + $0x18] sm:$0xff] %vm1198, %v1165
      %1203 = vst.msk [vmem:[#allocation3 + $0x20] sm:$0xff] %vm1198, %v1166
      %1204 = vst.msk [vmem:[#allocation3 + $0x28] sm:$0xff] %vm1198, %v1167
      %1205 = vst.msk [vmem:[#allocation3 + $0x30] sm:$0xff] %vm1198, %v1168
      %1206 = vst.msk [vmem:[#allocation3 + $0x38] sm:$0xff] %vm1198, %v1169
      %1207 = vst.msk [vmem:[#allocation3 + $0x40] sm:$0xff] %vm1198, %v1170
      %1208 = vst.msk [vmem:[#allocation3 + $0x48] sm:$0xff] %vm1198, %v1171
      %1209 = vst.msk [vmem:[#allocation3 + $0x50] sm:$0xff] %vm1198, %v1172
      %1210 = vst.msk [vmem:[#allocation3 + $0x58] sm:$0xff] %vm1198, %v1173
      %1211 = vst.msk [vmem:[#allocation3 + $0x60] sm:$0xff] %vm1198, %v1174
      %1212 = vst.msk [vmem:[#allocation3 + $0x68] sm:$0xff] %vm1198, %v1175
      %1213 = vst.msk [vmem:[#allocation3 + $0x70] sm:$0xff] %vm1198, %v1176
      %1214 = vst.msk [vmem:[#allocation3 + $0x78] sm:$0xff] %vm1198, %v1177
      %1215 = vst.msk [vmem:[#allocation3 + $0x80] sm:$0xff] %vm1198, %v1178
      %1216 = vst.msk [vmem:[#allocation3 + $0x88] sm:$0xff] %vm1198, %v1179
      %v1217 = vld [vmem:[#allocation2] sm:$0xf]
      %v1218 = vld [vmem:[#allocation2 + $0x4] sm:$0xf]
      %v1219 = vld [vmem:[#allocation2 + $0x8] sm:$0x1]
      %v1220 = vld [vmem:[#allocation2 + $0xc] sm:$0xf]
      %v1221 = vld [vmem:[#allocation2 + $0x10] sm:$0xf]
      %v1222 = vld [vmem:[#allocation2 + $0x14] sm:$0x1]
      %v1223 = vld [vmem:[#allocation2 + $0x18] sm:$0xf]
      %v1224 = vld [vmem:[#allocation2 + $0x1c] sm:$0xf]
      %v1225 = vld [vmem:[#allocation2 + $0x20] sm:$0x1]
      %v1226 = vld [vmem:[#allocation2 + $0x24] sm:$0xf]
      %v1227 = vld [vmem:[#allocation2 + $0x28] sm:$0xf]
      %v1228 = vld [vmem:[#allocation2 + $0x2c] sm:$0x1]
      %v1229 = vld [vmem:[#allocation2 + $0x30] sm:$0xf]
      %v1230 = vld [vmem:[#allocation2 + $0x34] sm:$0xf]
      %v1231 = vld [vmem:[#allocation2 + $0x38] sm:$0x1]
      %v1232 = vld [vmem:[#allocation2 + $0x3c] sm:$0xf]
      %v1233 = vld [vmem:[#allocation2 + $0x40] sm:$0xf]
      %v1234 = vld [vmem:[#allocation2 + $0x44] sm:$0x1]
      %v1235 = vld [vmem:[#allocation2 + $0x48] sm:$0xf]
      %v1236 = vld [vmem:[#allocation2 + $0x4c] sm:$0xf]
      %v1237 = vld [vmem:[#allocation2 + $0x50] sm:$0x1]
      %v1238 = vld [vmem:[#allocation2 + $0x54] sm:$0xf]
      %v1239 = vld [vmem:[#allocation2 + $0x58] sm:$0xf]
      %v1240 = vld [vmem:[#allocation2 + $0x5c] sm:$0x1]
      %v1241 = vld [vmem:[#allocation2 + $0x60] sm:$0xf]
      %v1242 = vld [vmem:[#allocation2 + $0x64] sm:$0xf]
      %v1243 = vld [vmem:[#allocation2 + $0x68] sm:$0x1]
      %v1244 = vld [vmem:[#allocation2 + $0x6c] sm:$0xf]
      %v1245 = vld [vmem:[#allocation2 + $0x70] sm:$0xf]
      %v1246 = vld [vmem:[#allocation2 + $0x74] sm:$0x1]
      %v1247 = vld [vmem:[#allocation2 + $0x78] sm:$0xf]
      %v1248 = vld [vmem:[#allocation2 + $0x7c] sm:$0xf]
      %v1249 = vld [vmem:[#allocation2 + $0x80] sm:$0x1]
      %v1250 = vld [vmem:[#allocation2 + $0x84] sm:$0xf]
      %v1251 = vld [vmem:[#allocation2 + $0x88] sm:$0xf]
      %v1252 = vld [vmem:[#allocation2 + $0x8c] sm:$0x1]
      %v1253 = vld [vmem:[#allocation2 + $0x90] sm:$0xf]
      %v1254 = vld [vmem:[#allocation2 + $0x94] sm:$0xf]
      %v1255 = vld [vmem:[#allocation2 + $0x98] sm:$0x1]
      %v1256 = vld [vmem:[#allocation2 + $0x9c] sm:$0xf]
      %v1257 = vld [vmem:[#allocation2 + $0xa0] sm:$0xf]
      %v1258 = vld [vmem:[#allocation2 + $0xa4] sm:$0x1]
      %v1259 = vld [vmem:[#allocation2 + $0xa8] sm:$0xf]
      %v1260 = vld [vmem:[#allocation2 + $0xac] sm:$0xf]
      %v1261 = vld [vmem:[#allocation2 + $0xb0] sm:$0x1]
      %v1262 = vld [vmem:[#allocation2 + $0xb4] sm:$0xf]
      %v1263 = vld [vmem:[#allocation2 + $0xb8] sm:$0xf]
      %v1264 = vld [vmem:[#allocation2 + $0xbc] sm:$0x1]
      %v1265 = vld [vmem:[#allocation2 + $0xc0] sm:$0xf]
      %v1266 = vld [vmem:[#allocation2 + $0xc4] sm:$0xf]
      %v1267 = vld [vmem:[#allocation2 + $0xc8] sm:$0x1]
      %v1268 = vld [vmem:[#allocation2 + $0xcc] sm:$0xf]
      %v1269 = vld [vmem:[#allocation2 + $0xd0] sm:$0xf]
      %v1270 = vld [vmem:[#allocation2 + $0xd4] sm:$0x1]
      %v1325 = vunpack.c.l.b16 %v1217
      %v1326 = vunpack.c.l.b16 %v1218
      %v1327 = vunpack.c.l.b16 %v1219
      %v1328 = vunpack.c.l.b16 %v1220
      %v1329 = vunpack.c.l.b16 %v1221
      %v1330 = vunpack.c.l.b16 %v1222
      %v1331 = vunpack.c.l.b16 %v1223
      %v1332 = vunpack.c.l.b16 %v1224
      %v1333 = vunpack.c.l.b16 %v1225
      %v1334 = vunpack.c.l.b16 %v1226
      %v1335 = vunpack.c.l.b16 %v1227
      %v1336 = vunpack.c.l.b16 %v1228
      %v1337 = vunpack.c.l.b16 %v1229
      %v1338 = vunpack.c.l.b16 %v1230
      %v1339 = vunpack.c.l.b16 %v1231
      %v1340 = vunpack.c.l.b16 %v1232
      %v1341 = vunpack.c.l.b16 %v1233
      %v1342 = vunpack.c.l.b16 %v1234
      %v1343 = vunpack.c.l.b16 %v1235
      %v1344 = vunpack.c.l.b16 %v1236
      %v1345 = vunpack.c.l.b16 %v1237
      %v1346 = vunpack.c.l.b16 %v1238
      %v1347 = vunpack.c.l.b16 %v1239
      %v1348 = vunpack.c.l.b16 %v1240
      %v1349 = vunpack.c.l.b16 %v1241
      %v1350 = vunpack.c.l.b16 %v1242
      %v1351 = vunpack.c.l.b16 %v1243
      %v1352 = vunpack.c.l.b16 %v1244
      %v1353 = vunpack.c.l.b16 %v1245
      %v1354 = vunpack.c.l.b16 %v1246
      %v1355 = vunpack.c.l.b16 %v1247
      %v1356 = vunpack.c.l.b16 %v1248
      %v1357 = vunpack.c.l.b16 %v1249
      %v1358 = vunpack.c.l.b16 %v1250
      %v1359 = vunpack.c.l.b16 %v1251
      %v1360 = vunpack.c.l.b16 %v1252
      %v1361 = vunpack.c.l.b16 %v1253
      %v1362 = vunpack.c.l.b16 %v1254
      %v1363 = vunpack.c.l.b16 %v1255
      %v1364 = vunpack.c.l.b16 %v1256
      %v1365 = vunpack.c.l.b16 %v1257
      %v1366 = vunpack.c.l.b16 %v1258
      %v1367 = vunpack.c.l.b16 %v1259
      %v1368 = vunpack.c.l.b16 %v1260
      %v1369 = vunpack.c.l.b16 %v1261
      %v1370 = vunpack.c.l.b16 %v1262
      %v1371 = vunpack.c.l.b16 %v1263
      %v1372 = vunpack.c.l.b16 %v1264
      %v1373 = vunpack.c.l.b16 %v1265
      %v1374 = vunpack.c.l.b16 %v1266
      %v1375 = vunpack.c.l.b16 %v1267
      %v1376 = vunpack.c.l.b16 %v1268
      %v1377 = vunpack.c.l.b16 %v1269
      %v1378 = vunpack.c.l.b16 %v1270
      %v1379 = vpack.c.b16 %v1326, %v1325
      %v1380 = vpack.c.b16 %v1327, %v1327
      %v1381 = vpack.c.b16 %v1329, %v1328
      %v1382 = vpack.c.b16 %v1330, %v1330
      %v1383 = vpack.c.b16 %v1332, %v1331
      %v1384 = vpack.c.b16 %v1333, %v1333
      %v1385 = vpack.c.b16 %v1335, %v1334
      %v1386 = vpack.c.b16 %v1336, %v1336
      %v1387 = vpack.c.b16 %v1338, %v1337
      %v1388 = vpack.c.b16 %v1339, %v1339
      %v1389 = vpack.c.b16 %v1341, %v1340
      %v1390 = vpack.c.b16 %v1342, %v1342
      %v1391 = vpack.c.b16 %v1344, %v1343
      %v1392 = vpack.c.b16 %v1345, %v1345
      %v1393 = vpack.c.b16 %v1347, %v1346
      %v1394 = vpack.c.b16 %v1348, %v1348
      %v1395 = vpack.c.b16 %v1350, %v1349
      %v1396 = vpack.c.b16 %v1351, %v1351
      %v1397 = vpack.c.b16 %v1353, %v1352
      %v1398 = vpack.c.b16 %v1354, %v1354
      %v1399 = vpack.c.b16 %v1356, %v1355
      %v1400 = vpack.c.b16 %v1357, %v1357
      %v1401 = vpack.c.b16 %v1359, %v1358
      %v1402 = vpack.c.b16 %v1360, %v1360
      %v1403 = vpack.c.b16 %v1362, %v1361
      %v1404 = vpack.c.b16 %v1363, %v1363
      %v1405 = vpack.c.b16 %v1365, %v1364
      %v1406 = vpack.c.b16 %v1366, %v1366
      %v1407 = vpack.c.b16 %v1368, %v1367
      %v1408 = vpack.c.b16 %v1369, %v1369
      %v1409 = vpack.c.b16 %v1371, %v1370
      %v1410 = vpack.c.b16 %v1372, %v1372
      %v1411 = vpack.c.b16 %v1374, %v1373
      %v1412 = vpack.c.b16 %v1375, %v1375
      %v1413 = vpack.c.b16 %v1377, %v1376
      %v1414 = vpack.c.b16 %v1378, %v1378
      %vm1415 = vsmask.f32 7424
      %v1417 = vshrl.u32 %v1379, 16
      %v1419 = vshll.u32 %v1379, 16
      %v1421 = vrot.slane %v1419, 1
      %v1422 = vor.u32 %v1417, %v1421
      %v1424 = vshll.u32 %v1380, 16
      %v1426 = vrot.slane %v1424, 1
      %v1427 = vsel %vm1415, %v1422, %v1426
      %v1429 = vshrl.u32 %v1381, 16
      %v1431 = vshll.u32 %v1381, 16
      %v1433 = vrot.slane %v1431, 1
      %v1434 = vor.u32 %v1429, %v1433
      %v1436 = vshll.u32 %v1382, 16
      %v1438 = vrot.slane %v1436, 1
      %v1439 = vsel %vm1415, %v1434, %v1438
      %v1441 = vshrl.u32 %v1383, 16
      %v1443 = vshll.u32 %v1383, 16
      %v1445 = vrot.slane %v1443, 1
      %v1446 = vor.u32 %v1441, %v1445
      %v1448 = vshll.u32 %v1384, 16
      %v1450 = vrot.slane %v1448, 1
      %v1451 = vsel %vm1415, %v1446, %v1450
      %v1453 = vshrl.u32 %v1385, 16
      %v1455 = vshll.u32 %v1385, 16
      %v1457 = vrot.slane %v1455, 1
      %v1458 = vor.u32 %v1453, %v1457
      %v1460 = vshll.u32 %v1386, 16
      %v1462 = vrot.slane %v1460, 1
      %v1463 = vsel %vm1415, %v1458, %v1462
      %v1465 = vshrl.u32 %v1387, 16
      %v1467 = vshll.u32 %v1387, 16
      %v1469 = vrot.slane %v1467, 1
      %v1470 = vor.u32 %v1465, %v1469
      %v1472 = vshll.u32 %v1388, 16
      %v1474 = vrot.slane %v1472, 1
      %v1475 = vsel %vm1415, %v1470, %v1474
      %v1477 = vshrl.u32 %v1389, 16
      %v1479 = vshll.u32 %v1389, 16
      %v1481 = vrot.slane %v1479, 1
      %v1482 = vor.u32 %v1477, %v1481
      %v1484 = vshll.u32 %v1390, 16
      %v1486 = vrot.slane %v1484, 1
      %v1487 = vsel %vm1415, %v1482, %v1486
      %v1489 = vshrl.u32 %v1391, 16
      %v1491 = vshll.u32 %v1391, 16
      %v1493 = vrot.slane %v1491, 1
      %v1494 = vor.u32 %v1489, %v1493
      %v1496 = vshll.u32 %v1392, 16
      %v1498 = vrot.slane %v1496, 1
      %v1499 = vsel %vm1415, %v1494, %v1498
      %v1501 = vshrl.u32 %v1393, 16
      %v1503 = vshll.u32 %v1393, 16
      %v1505 = vrot.slane %v1503, 1
      %v1506 = vor.u32 %v1501, %v1505
      %v1508 = vshll.u32 %v1394, 16
      %v1510 = vrot.slane %v1508, 1
      %v1511 = vsel %vm1415, %v1506, %v1510
      %v1513 = vshrl.u32 %v1395, 16
      %v1515 = vshll.u32 %v1395, 16
      %v1517 = vrot.slane %v1515, 1
      %v1518 = vor.u32 %v1513, %v1517
      %v1520 = vshll.u32 %v1396, 16
      %v1522 = vrot.slane %v1520, 1
      %v1523 = vsel %vm1415, %v1518, %v1522
      %v1525 = vshrl.u32 %v1397, 16
      %v1527 = vshll.u32 %v1397, 16
      %v1529 = vrot.slane %v1527, 1
      %v1530 = vor.u32 %v1525, %v1529
      %v1532 = vshll.u32 %v1398, 16
      %v1534 = vrot.slane %v1532, 1
      %v1535 = vsel %vm1415, %v1530, %v1534
      %v1537 = vshrl.u32 %v1399, 16
      %v1539 = vshll.u32 %v1399, 16
      %v1541 = vrot.slane %v1539, 1
      %v1542 = vor.u32 %v1537, %v1541
      %v1544 = vshll.u32 %v1400, 16
      %v1546 = vrot.slane %v1544, 1
      %v1547 = vsel %vm1415, %v1542, %v1546
      %v1549 = vshrl.u32 %v1401, 16
      %v1551 = vshll.u32 %v1401, 16
      %v1553 = vrot.slane %v1551, 1
      %v1554 = vor.u32 %v1549, %v1553
      %v1556 = vshll.u32 %v1402, 16
      %v1558 = vrot.slane %v1556, 1
      %v1559 = vsel %vm1415, %v1554, %v1558
      %v1561 = vshrl.u32 %v1403, 16
      %v1563 = vshll.u32 %v1403, 16
      %v1565 = vrot.slane %v1563, 1
      %v1566 = vor.u32 %v1561, %v1565
      %v1568 = vshll.u32 %v1404, 16
      %v1570 = vrot.slane %v1568, 1
      %v1571 = vsel %vm1415, %v1566, %v1570
      %v1573 = vshrl.u32 %v1405, 16
      %v1575 = vshll.u32 %v1405, 16
      %v1577 = vrot.slane %v1575, 1
      %v1578 = vor.u32 %v1573, %v1577
      %v1580 = vshll.u32 %v1406, 16
      %v1582 = vrot.slane %v1580, 1
      %v1583 = vsel %vm1415, %v1578, %v1582
      %v1585 = vshrl.u32 %v1407, 16
      %v1587 = vshll.u32 %v1407, 16
      %v1589 = vrot.slane %v1587, 1
      %v1590 = vor.u32 %v1585, %v1589
      %v1592 = vshll.u32 %v1408, 16
      %v1594 = vrot.slane %v1592, 1
      %v1595 = vsel %vm1415, %v1590, %v1594
      %v1597 = vshrl.u32 %v1409, 16
      %v1599 = vshll.u32 %v1409, 16
      %v1601 = vrot.slane %v1599, 1
      %v1602 = vor.u32 %v1597, %v1601
      %v1604 = vshll.u32 %v1410, 16
      %v1606 = vrot.slane %v1604, 1
      %v1607 = vsel %vm1415, %v1602, %v1606
      %v1609 = vshrl.u32 %v1411, 16
      %v1611 = vshll.u32 %v1411, 16
      %v1613 = vrot.slane %v1611, 1
      %v1614 = vor.u32 %v1609, %v1613
      %v1616 = vshll.u32 %v1412, 16
      %v1618 = vrot.slane %v1616, 1
      %v1619 = vsel %vm1415, %v1614, %v1618
      %v1621 = vshrl.u32 %v1413, 16
      %v1623 = vshll.u32 %v1413, 16
      %v1625 = vrot.slane %v1623, 1
      %v1626 = vor.u32 %v1621, %v1625
      %v1628 = vshll.u32 %v1414, 16
      %v1630 = vrot.slane %v1628, 1
      %v1631 = vsel %vm1415, %v1626, %v1630
      %1632 = vrot.lane.b32.xlu0 %v1427, 4
      %v1633 = vpop.permute.xlu0 %1632
      %1634 = vrot.lane.b32.xlu0 %v1439, 4
      %v1635 = vpop.permute.xlu0 %1634
      %1636 = vrot.lane.b32.xlu0 %v1451, 4
      %v1637 = vpop.permute.xlu0 %1636
      %1638 = vrot.lane.b32.xlu0 %v1463, 4
      %v1639 = vpop.permute.xlu0 %1638
      %1640 = vrot.lane.b32.xlu0 %v1475, 4
      %v1641 = vpop.permute.xlu0 %1640
      %1642 = vrot.lane.b32.xlu0 %v1487, 4
      %v1643 = vpop.permute.xlu0 %1642
      %1644 = vrot.lane.b32.xlu0 %v1499, 4
      %v1645 = vpop.permute.xlu0 %1644
      %1646 = vrot.lane.b32.xlu0 %v1511, 4
      %v1647 = vpop.permute.xlu0 %1646
      %1648 = vrot.lane.b32.xlu0 %v1523, 4
      %v1649 = vpop.permute.xlu0 %1648
      %1650 = vrot.lane.b32.xlu0 %v1535, 4
      %v1651 = vpop.permute.xlu0 %1650
      %1652 = vrot.lane.b32.xlu0 %v1547, 4
      %v1653 = vpop.permute.xlu0 %1652
      %1654 = vrot.lane.b32.xlu0 %v1559, 4
      %v1655 = vpop.permute.xlu0 %1654
      %1656 = vrot.lane.b32.xlu0 %v1571, 4
      %v1657 = vpop.permute.xlu0 %1656
      %1658 = vrot.lane.b32.xlu0 %v1583, 4
      %v1659 = vpop.permute.xlu0 %1658
      %1660 = vrot.lane.b32.xlu0 %v1595, 4
      %v1661 = vpop.permute.xlu0 %1660
      %1662 = vrot.lane.b32.xlu0 %v1607, 4
      %v1663 = vpop.permute.xlu0 %1662
      %1664 = vrot.lane.b32.xlu0 %v1619, 4
      %v1665 = vpop.permute.xlu0 %1664
      %1666 = vrot.lane.b32.xlu0 %v1631, 4
      %v1667 = vpop.permute.xlu0 %1666
      %vm1686 = vcmask 64544
      %1687 = vst.msk [vmem:[#allocation3] sm:$0xff] %vm1686, %v1633
      %1688 = vst.msk [vmem:[#allocation3 + $0x8] sm:$0xff] %vm1686, %v1635
      %1689 = vst.msk [vmem:[#allocation3 + $0x10] sm:$0xff] %vm1686, %v1637
      %1690 = vst.msk [vmem:[#allocation3 + $0x18] sm:$0xff] %vm1686, %v1639
      %1691 = vst.msk [vmem:[#allocation3 + $0x20] sm:$0xff] %vm1686, %v1641
      %1692 = vst.msk [vmem:[#allocation3 + $0x28] sm:$0xff] %vm1686, %v1643
      %1693 = vst.msk [vmem:[#allocation3 + $0x30] sm:$0xff] %vm1686, %v1645
      %1694 = vst.msk [vmem:[#allocation3 + $0x38] sm:$0xff] %vm1686, %v1647
      %1695 = vst.msk [vmem:[#allocation3 + $0x40] sm:$0xff] %vm1686, %v1649
      %1696 = vst.msk [vmem:[#allocation3 + $0x48] sm:$0xff] %vm1686, %v1651
      %1697 = vst.msk [vmem:[#allocation3 + $0x50] sm:$0xff] %vm1686, %v1653
      %1698 = vst.msk [vmem:[#allocation3 + $0x58] sm:$0xff] %vm1686, %v1655
      %1699 = vst.msk [vmem:[#allocation3 + $0x60] sm:$0xff] %vm1686, %v1657
      %1700 = vst.msk [vmem:[#allocation3 + $0x68] sm:$0xff] %vm1686, %v1659
      %1701 = vst.msk [vmem:[#allocation3 + $0x70] sm:$0xff] %vm1686, %v1661
      %1702 = vst.msk [vmem:[#allocation3 + $0x78] sm:$0xff] %vm1686, %v1663
      %1703 = vst.msk [vmem:[#allocation3 + $0x80] sm:$0xff] %vm1686, %v1665
      %1704 = vst.msk [vmem:[#allocation3 + $0x88] sm:$0xff] %vm1686, %v1667
      %v1705 = vld [vmem:[#allocation2] sm:$0xe]
      %v1706 = vld [vmem:[#allocation2 + $0x4] sm:$0xf]
      %v1707 = vld [vmem:[#allocation2 + $0x8] sm:$0x1]
      %v1708 = vld [vmem:[#allocation2 + $0xc] sm:$0xe]
      %v1709 = vld [vmem:[#allocation2 + $0x10] sm:$0xf]
      %v1710 = vld [vmem:[#allocation2 + $0x14] sm:$0x1]
      %v1711 = vld [vmem:[#allocation2 + $0x18] sm:$0xe]
      %v1712 = vld [vmem:[#allocation2 + $0x1c] sm:$0xf]
      %v1713 = vld [vmem:[#allocation2 + $0x20] sm:$0x1]
      %v1714 = vld [vmem:[#allocation2 + $0x24] sm:$0xe]
      %v1715 = vld [vmem:[#allocation2 + $0x28] sm:$0xf]
      %v1716 = vld [vmem:[#allocation2 + $0x2c] sm:$0x1]
      %v1717 = vld [vmem:[#allocation2 + $0x30] sm:$0xe]
      %v1718 = vld [vmem:[#allocation2 + $0x34] sm:$0xf]
      %v1719 = vld [vmem:[#allocation2 + $0x38] sm:$0x1]
      %v1720 = vld [vmem:[#allocation2 + $0x3c] sm:$0xe]
      %v1721 = vld [vmem:[#allocation2 + $0x40] sm:$0xf]
      %v1722 = vld [vmem:[#allocation2 + $0x44] sm:$0x1]
      %v1723 = vld [vmem:[#allocation2 + $0x48] sm:$0xe]
      %v1724 = vld [vmem:[#allocation2 + $0x4c] sm:$0xf]
      %v1725 = vld [vmem:[#allocation2 + $0x50] sm:$0x1]
      %v1726 = vld [vmem:[#allocation2 + $0x54] sm:$0xe]
      %v1727 = vld [vmem:[#allocation2 + $0x58] sm:$0xf]
      %v1728 = vld [vmem:[#allocation2 + $0x5c] sm:$0x1]
      %v1729 = vld [vmem:[#allocation2 + $0x60] sm:$0xe]
      %v1730 = vld [vmem:[#allocation2 + $0x64] sm:$0xf]
      %v1731 = vld [vmem:[#allocation2 + $0x68] sm:$0x1]
      %v1732 = vld [vmem:[#allocation2 + $0x6c] sm:$0xe]
      %v1733 = vld [vmem:[#allocation2 + $0x70] sm:$0xf]
      %v1734 = vld [vmem:[#allocation2 + $0x74] sm:$0x1]
      %v1735 = vld [vmem:[#allocation2 + $0x78] sm:$0xe]
      %v1736 = vld [vmem:[#allocation2 + $0x7c] sm:$0xf]
      %v1737 = vld [vmem:[#allocation2 + $0x80] sm:$0x1]
      %v1738 = vld [vmem:[#allocation2 + $0x84] sm:$0xe]
      %v1739 = vld [vmem:[#allocation2 + $0x88] sm:$0xf]
      %v1740 = vld [vmem:[#allocation2 + $0x8c] sm:$0x1]
      %v1741 = vld [vmem:[#allocation2 + $0x90] sm:$0xe]
      %v1742 = vld [vmem:[#allocation2 + $0x94] sm:$0xf]
      %v1743 = vld [vmem:[#allocation2 + $0x98] sm:$0x1]
      %v1744 = vld [vmem:[#allocation2 + $0x9c] sm:$0xe]
      %v1745 = vld [vmem:[#allocation2 + $0xa0] sm:$0xf]
      %v1746 = vld [vmem:[#allocation2 + $0xa4] sm:$0x1]
      %v1747 = vld [vmem:[#allocation2 + $0xa8] sm:$0xe]
      %v1748 = vld [vmem:[#allocation2 + $0xac] sm:$0xf]
      %v1749 = vld [vmem:[#allocation2 + $0xb0] sm:$0x1]
      %v1750 = vld [vmem:[#allocation2 + $0xb4] sm:$0xe]
      %v1751 = vld [vmem:[#allocation2 + $0xb8] sm:$0xf]
      %v1752 = vld [vmem:[#allocation2 + $0xbc] sm:$0x1]
      %v1753 = vld [vmem:[#allocation2 + $0xc0] sm:$0xe]
      %v1754 = vld [vmem:[#allocation2 + $0xc4] sm:$0xf]
      %v1755 = vld [vmem:[#allocation2 + $0xc8] sm:$0x1]
      %v1756 = vld [vmem:[#allocation2 + $0xcc] sm:$0xe]
      %v1757 = vld [vmem:[#allocation2 + $0xd0] sm:$0xf]
      %v1758 = vld [vmem:[#allocation2 + $0xd4] sm:$0x1]
      %v1813 = vunpack.c.l.b16 %v1705
      %v1814 = vunpack.c.l.b16 %v1706
      %v1815 = vunpack.c.l.b16 %v1707
      %v1816 = vunpack.c.l.b16 %v1708
      %v1817 = vunpack.c.l.b16 %v1709
      %v1818 = vunpack.c.l.b16 %v1710
      %v1819 = vunpack.c.l.b16 %v1711
      %v1820 = vunpack.c.l.b16 %v1712
      %v1821 = vunpack.c.l.b16 %v1713
      %v1822 = vunpack.c.l.b16 %v1714
      %v1823 = vunpack.c.l.b16 %v1715
      %v1824 = vunpack.c.l.b16 %v1716
      %v1825 = vunpack.c.l.b16 %v1717
      %v1826 = vunpack.c.l.b16 %v1718
      %v1827 = vunpack.c.l.b16 %v1719
      %v1828 = vunpack.c.l.b16 %v1720
      %v1829 = vunpack.c.l.b16 %v1721
      %v1830 = vunpack.c.l.b16 %v1722
      %v1831 = vunpack.c.l.b16 %v1723
      %v1832 = vunpack.c.l.b16 %v1724
      %v1833 = vunpack.c.l.b16 %v1725
      %v1834 = vunpack.c.l.b16 %v1726
      %v1835 = vunpack.c.l.b16 %v1727
      %v1836 = vunpack.c.l.b16 %v1728
      %v1837 = vunpack.c.l.b16 %v1729
      %v1838 = vunpack.c.l.b16 %v1730
      %v1839 = vunpack.c.l.b16 %v1731
      %v1840 = vunpack.c.l.b16 %v1732
      %v1841 = vunpack.c.l.b16 %v1733
      %v1842 = vunpack.c.l.b16 %v1734
      %v1843 = vunpack.c.l.b16 %v1735
      %v1844 = vunpack.c.l.b16 %v1736
      %v1845 = vunpack.c.l.b16 %v1737
      %v1846 = vunpack.c.l.b16 %v1738
      %v1847 = vunpack.c.l.b16 %v1739
      %v1848 = vunpack.c.l.b16 %v1740
      %v1849 = vunpack.c.l.b16 %v1741
      %v1850 = vunpack.c.l.b16 %v1742
      %v1851 = vunpack.c.l.b16 %v1743
      %v1852 = vunpack.c.l.b16 %v1744
      %v1853 = vunpack.c.l.b16 %v1745
      %v1854 = vunpack.c.l.b16 %v1746
      %v1855 = vunpack.c.l.b16 %v1747
      %v1856 = vunpack.c.l.b16 %v1748
      %v1857 = vunpack.c.l.b16 %v1749
      %v1858 = vunpack.c.l.b16 %v1750
      %v1859 = vunpack.c.l.b16 %v1751
      %v1860 = vunpack.c.l.b16 %v1752
      %v1861 = vunpack.c.l.b16 %v1753
      %v1862 = vunpack.c.l.b16 %v1754
      %v1863 = vunpack.c.l.b16 %v1755
      %v1864 = vunpack.c.l.b16 %v1756
      %v1865 = vunpack.c.l.b16 %v1757
      %v1866 = vunpack.c.l.b16 %v1758
      %v1867 = vpack.c.b16 %v1814, %v1813
      %v1868 = vpack.c.b16 %v1815, %v1815
      %v1869 = vpack.c.b16 %v1817, %v1816
      %v1870 = vpack.c.b16 %v1818, %v1818
      %v1871 = vpack.c.b16 %v1820, %v1819
      %v1872 = vpack.c.b16 %v1821, %v1821
      %v1873 = vpack.c.b16 %v1823, %v1822
      %v1874 = vpack.c.b16 %v1824, %v1824
      %v1875 = vpack.c.b16 %v1826, %v1825
      %v1876 = vpack.c.b16 %v1827, %v1827
      %v1877 = vpack.c.b16 %v1829, %v1828
      %v1878 = vpack.c.b16 %v1830, %v1830
      %v1879 = vpack.c.b16 %v1832, %v1831
      %v1880 = vpack.c.b16 %v1833, %v1833
      %v1881 = vpack.c.b16 %v1835, %v1834
      %v1882 = vpack.c.b16 %v1836, %v1836
      %v1883 = vpack.c.b16 %v1838, %v1837
      %v1884 = vpack.c.b16 %v1839, %v1839
      %v1885 = vpack.c.b16 %v1841, %v1840
      %v1886 = vpack.c.b16 %v1842, %v1842
      %v1887 = vpack.c.b16 %v1844, %v1843
      %v1888 = vpack.c.b16 %v1845, %v1845
      %v1889 = vpack.c.b16 %v1847, %v1846
      %v1890 = vpack.c.b16 %v1848, %v1848
      %v1891 = vpack.c.b16 %v1850, %v1849
      %v1892 = vpack.c.b16 %v1851, %v1851
      %v1893 = vpack.c.b16 %v1853, %v1852
      %v1894 = vpack.c.b16 %v1854, %v1854
      %v1895 = vpack.c.b16 %v1856, %v1855
      %v1896 = vpack.c.b16 %v1857, %v1857
      %v1897 = vpack.c.b16 %v1859, %v1858
      %v1898 = vpack.c.b16 %v1860, %v1860
      %v1899 = vpack.c.b16 %v1862, %v1861
      %v1900 = vpack.c.b16 %v1863, %v1863
      %v1901 = vpack.c.b16 %v1865, %v1864
      %v1902 = vpack.c.b16 %v1866, %v1866
      %vm1903 = vcmask 1046528
      %v1904 = vrot.slane %v1867, 1
      %v1905 = vrot.slane %v1868, 1
      %v1906 = vsel %vm1903, %v1904, %v1905
      %v1907 = vrot.slane %v1869, 1
      %v1908 = vrot.slane %v1870, 1
      %v1909 = vsel %vm1903, %v1907, %v1908
      %v1910 = vrot.slane %v1871, 1
      %v1911 = vrot.slane %v1872, 1
      %v1912 = vsel %vm1903, %v1910, %v1911
      %v1913 = vrot.slane %v1873, 1
      %v1914 = vrot.slane %v1874, 1
      %v1915 = vsel %vm1903, %v1913, %v1914
      %v1916 = vrot.slane %v1875, 1
      %v1917 = vrot.slane %v1876, 1
      %v1918 = vsel %vm1903, %v1916, %v1917
      %v1919 = vrot.slane %v1877, 1
      %v1920 = vrot.slane %v1878, 1
      %v1921 = vsel %vm1903, %v1919, %v1920
      %v1922 = vrot.slane %v1879, 1
      %v1923 = vrot.slane %v1880, 1
      %v1924 = vsel %vm1903, %v1922, %v1923
      %v1925 = vrot.slane %v1881, 1
      %v1926 = vrot.slane %v1882, 1
      %v1927 = vsel %vm1903, %v1925, %v1926
      %v1928 = vrot.slane %v1883, 1
      %v1929 = vrot.slane %v1884, 1
      %v1930 = vsel %vm1903, %v1928, %v1929
      %v1931 = vrot.slane %v1885, 1
      %v1932 = vrot.slane %v1886, 1
      %v1933 = vsel %vm1903, %v1931, %v1932
      %v1934 = vrot.slane %v1887, 1
      %v1935 = vrot.slane %v1888, 1
      %v1936 = vsel %vm1903, %v1934, %v1935
      %v1937 = vrot.slane %v1889, 1
      %v1938 = vrot.slane %v1890, 1
      %v1939 = vsel %vm1903, %v1937, %v1938
      %v1940 = vrot.slane %v1891, 1
      %v1941 = vrot.slane %v1892, 1
      %v1942 = vsel %vm1903, %v1940, %v1941
      %v1943 = vrot.slane %v1893, 1
      %v1944 = vrot.slane %v1894, 1
      %v1945 = vsel %vm1903, %v1943, %v1944
      %v1946 = vrot.slane %v1895, 1
      %v1947 = vrot.slane %v1896, 1
      %v1948 = vsel %vm1903, %v1946, %v1947
      %v1949 = vrot.slane %v1897, 1
      %v1950 = vrot.slane %v1898, 1
      %v1951 = vsel %vm1903, %v1949, %v1950
      %v1952 = vrot.slane %v1899, 1
      %v1953 = vrot.slane %v1900, 1
      %v1954 = vsel %vm1903, %v1952, %v1953
      %v1955 = vrot.slane %v1901, 1
      %v1956 = vrot.slane %v1902, 1
      %v1957 = vsel %vm1903, %v1955, %v1956
      %1958 = vrot.lane.b32.xlu0 %v1906, 8
      %v1959 = vpop.permute.xlu0 %1958
      %1960 = vrot.lane.b32.xlu0 %v1909, 8
      %v1961 = vpop.permute.xlu0 %1960
      %1962 = vrot.lane.b32.xlu0 %v1912, 8
      %v1963 = vpop.permute.xlu0 %1962
      %1964 = vrot.lane.b32.xlu0 %v1915, 8
      %v1965 = vpop.permute.xlu0 %1964
      %1966 = vrot.lane.b32.xlu0 %v1918, 8
      %v1967 = vpop.permute.xlu0 %1966
      %1968 = vrot.lane.b32.xlu0 %v1921, 8
      %v1969 = vpop.permute.xlu0 %1968
      %1970 = vrot.lane.b32.xlu0 %v1924, 8
      %v1971 = vpop.permute.xlu0 %1970
      %1972 = vrot.lane.b32.xlu0 %v1927, 8
      %v1973 = vpop.permute.xlu0 %1972
      %1974 = vrot.lane.b32.xlu0 %v1930, 8
      %v1975 = vpop.permute.xlu0 %1974
      %1976 = vrot.lane.b32.xlu0 %v1933, 8
      %v1977 = vpop.permute.xlu0 %1976
      %1978 = vrot.lane.b32.xlu0 %v1936, 8
      %v1979 = vpop.permute.xlu0 %1978
      %1980 = vrot.lane.b32.xlu0 %v1939, 8
      %v1981 = vpop.permute.xlu0 %1980
      %1982 = vrot.lane.b32.xlu0 %v1942, 8
      %v1983 = vpop.permute.xlu0 %1982
      %1984 = vrot.lane.b32.xlu0 %v1945, 8
      %v1985 = vpop.permute.xlu0 %1984
      %1986 = vrot.lane.b32.xlu0 %v1948, 8
      %v1987 = vpop.permute.xlu0 %1986
      %1988 = vrot.lane.b32.xlu0 %v1951, 8
      %v1989 = vpop.permute.xlu0 %1988
      %1990 = vrot.lane.b32.xlu0 %v1954, 8
      %v1991 = vpop.permute.xlu0 %1990
      %1992 = vrot.lane.b32.xlu0 %v1957, 8
      %v1993 = vpop.permute.xlu0 %1992
      %vm2012 = vcmask 97344
      %2013 = vst.msk [vmem:[#allocation3] sm:$0xff] %vm2012, %v1959
      %2014 = vst.msk [vmem:[#allocation3 + $0x8] sm:$0xff] %vm2012, %v1961
      %2015 = vst.msk [vmem:[#allocation3 + $0x10] sm:$0xff] %vm2012, %v1963
      %2016 = vst.msk [vmem:[#allocation3 + $0x18] sm:$0xff] %vm2012, %v1965
      %2017 = vst.msk [vmem:[#allocation3 + $0x20] sm:$0xff] %vm2012, %v1967
      %2018 = vst.msk [vmem:[#allocation3 + $0x28] sm:$0xff] %vm2012, %v1969
      %2019 = vst.msk [vmem:[#allocation3 + $0x30] sm:$0xff] %vm2012, %v1971
      %2020 = vst.msk [vmem:[#allocation3 + $0x38] sm:$0xff] %vm2012, %v1973
      %2021 = vst.msk [vmem:[#allocation3 + $0x40] sm:$0xff] %vm2012, %v1975
      %2022 = vst.msk [vmem:[#allocation3 + $0x48] sm:$0xff] %vm2012, %v1977
      %2023 = vst.msk [vmem:[#allocation3 + $0x50] sm:$0xff] %vm2012, %v1979
      %2024 = vst.msk [vmem:[#allocation3 + $0x58] sm:$0xff] %vm2012, %v1981
      %2025 = vst.msk [vmem:[#allocation3 + $0x60] sm:$0xff] %vm2012, %v1983
      %2026 = vst.msk [vmem:[#allocation3 + $0x68] sm:$0xff] %vm2012, %v1985
      %2027 = vst.msk [vmem:[#allocation3 + $0x70] sm:$0xff] %vm2012, %v1987
      %2028 = vst.msk [vmem:[#allocation3 + $0x78] sm:$0xff] %vm2012, %v1989
      %2029 = vst.msk [vmem:[#allocation3 + $0x80] sm:$0xff] %vm2012, %v1991
      %2030 = vst.msk [vmem:[#allocation3 + $0x88] sm:$0xff] %vm2012, %v1993
      %v2031 = vld [vmem:[#allocation3] sm:$0xff]
      %v2032 = vld [vmem:[#allocation3 + $0x8] sm:$0xff]
      %v2033 = vld [vmem:[#allocation3 + $0x10] sm:$0xff]
      %v2034 = vld [vmem:[#allocation3 + $0x18] sm:$0xff]
      %v2035 = vld [vmem:[#allocation3 + $0x20] sm:$0xff]
      %v2036 = vld [vmem:[#allocation3 + $0x28] sm:$0xff]
      %v2037 = vld [vmem:[#allocation3 + $0x30] sm:$0xff]
      %v2038 = vld [vmem:[#allocation3 + $0x38] sm:$0xff]
      %v2039 = vld [vmem:[#allocation3 + $0x40] sm:$0xff]
      %v2040 = vld [vmem:[#allocation3 + $0x48] sm:$0xff]
      %v2041 = vld [vmem:[#allocation3 + $0x50] sm:$0xff]
      %v2042 = vld [vmem:[#allocation3 + $0x58] sm:$0xff]
      %v2043 = vld [vmem:[#allocation3 + $0x60] sm:$0xff]
      %v2044 = vld [vmem:[#allocation3 + $0x68] sm:$0xff]
      %v2045 = vld [vmem:[#allocation3 + $0x70] sm:$0xff]
      %v2046 = vld [vmem:[#allocation3 + $0x78] sm:$0xff]
      %v2047 = vld [vmem:[%s1] sm:$0xf]
      %v2048 = vld [vmem:[%s1 + $0x4] sm:$0x3]
      %s2049 = scalar_lea.vmem [#allocation3], 8
      %v2050 = vld [vmem:[%s2049] sm:$0xff]
      %v2051 = vld [vmem:[%s2049 + $0x8] sm:$0xff]
      %v2052 = vld [vmem:[%s2049 + $0x10] sm:$0xff]
      %v2053 = vld [vmem:[%s2049 + $0x18] sm:$0xff]
      %v2054 = vld [vmem:[%s2049 + $0x20] sm:$0xff]
      %v2055 = vld [vmem:[%s2049 + $0x28] sm:$0xff]
      %v2056 = vld [vmem:[%s2049 + $0x30] sm:$0xff]
      %v2057 = vld [vmem:[%s2049 + $0x38] sm:$0xff]
      %v2058 = vld [vmem:[%s2049 + $0x40] sm:$0xff]
      %v2059 = vld [vmem:[%s2049 + $0x48] sm:$0xff]
      %v2060 = vld [vmem:[%s2049 + $0x50] sm:$0xff]
      %v2061 = vld [vmem:[%s2049 + $0x58] sm:$0xff]
      %v2062 = vld [vmem:[%s2049 + $0x60] sm:$0xff]
      %v2063 = vld [vmem:[%s2049 + $0x68] sm:$0xff]
      %v2064 = vld [vmem:[%s2049 + $0x70] sm:$0xff]
      %v2065 = vld [vmem:[%s2049 + $0x78] sm:$0xff]
      %s2066 = scalar_lea.vmem %s1, 8
      %v2067 = vld [vmem:[%s2066] sm:$0xf]
      %v2068 = vld [vmem:[%s2066 + $0x4] sm:$0x3]
      %v2071 = vunpack.c.l.b16 %v2067
      %v2072 = vunpack.c.l.b16 %v2068
      %v2073 = vpack.c.b16 %v2072, %v2071
      %vm2074 = vcmask 97280
      %v2076 = vsel %vm2074, %v2050, 0
      %v2079 = vsel %vm2074, %v2051, 0
      %v2082 = vsel %vm2074, %v2052, 0
      %v2085 = vsel %vm2074, %v2053, 0
      %v2088 = vsel %vm2074, %v2054, 0
      %v2091 = vsel %vm2074, %v2055, 0
      %v2094 = vsel %vm2074, %v2056, 0
      %v2097 = vsel %vm2074, %v2057, 0
      %v2100 = vsel %vm2074, %v2058, 0
      %v2103 = vsel %vm2074, %v2059, 0
      %v2106 = vsel %vm2074, %v2060, 0
      %v2109 = vsel %vm2074, %v2061, 0
      %v2112 = vsel %vm2074, %v2062, 0
      %v2115 = vsel %vm2074, %v2063, 0
      %v2118 = vsel %vm2074, %v2064, 0
      %v2121 = vsel %vm2074, %v2065, 0
      %vm2123 = vcmask 1045504
      %v2125 = vsel %vm2123, %v2073, 0
      %2127 = vmatprep.subr.bf16.mxu0 0
      %2128 = vmatpush1.bf16.msra.mxu0 %v2125
      %2129 = vmatprep.subr.bf16.mxu0 0
      %2130 = vmatpush1.bf16.msra.mxu0 0
      %2131 = vmatprep.subr.bf16.mxu0 0
      %2132 = vmatpush1.bf16.msra.mxu0 0
      %2133 = vmatprep.subr.bf16.mxu0 0
      %2134 = vmatpush1.bf16.msra.mxu0 0
      %2135 = vmatprep.subr.bf16.mxu0 0
      %2136 = vmatpush1.bf16.msra.mxu0 0
      %2137 = vmatprep.subr.bf16.mxu0 0
      %2138 = vmatpush1.bf16.msra.mxu0 0
      %2139 = vmatprep.subr.bf16.mxu0 0
      %2140 = vmatpush1.bf16.msra.mxu0 0
      %2141 = vmatprep.subr.bf16.mxu0 0
      %2142 = vmatpush1.bf16.msra.mxu0 0
      %2143 = vmatprep.subr.bf16.mxu0 0
      %2144 = vmatpush1.bf16.msra.mxu0 0
      %2145 = vmatprep.subr.bf16.mxu0 0
      %2146 = vmatpush1.bf16.msra.mxu0 0
      %2147 = vmatprep.subr.bf16.mxu0 0
      %2148 = vmatpush1.bf16.msra.mxu0 0
      %2149 = vmatprep.subr.bf16.mxu0 0
      %2150 = vmatpush1.bf16.msra.mxu0 0
      %2151 = vmatprep.subr.bf16.mxu0 0
      %2152 = vmatpush1.bf16.msra.mxu0 0
      %2153 = vmatprep.subr.bf16.mxu0 0
      %2154 = vmatpush1.bf16.msra.mxu0 0
      %2155 = vmatprep.subr.bf16.mxu0 0
      %2156 = vmatpush1.bf16.msra.mxu0 0
      %2157 = vmatprep.subr.bf16.mxu0 0
      %2158 = vmatpush1.bf16.msra.mxu0 0
      %2159 = vmatprep.mubr.bf16.mxu0 0
      %2160 = vmatmul.mubr.bf16.gmra.mrb[0].mxu0 %v2076
      %v2161 = vpop.f32.mrb[0].mxu0
      %v2162 = vadd.f32 0.0, %v2161
      %v2163 = vpop.f32.mrb[0].mxu0
      %v2164 = vpop.f32.mrb[0].mxu0
      %v2165 = vadd.f32 0.0, %v2164
      %v2166 = vpop.f32.mrb[0].mxu0
      %2167 = vmatprep.mubr.bf16.mxu0 0
      %2168 = vmatmul.mubr.bf16.gmra.mrb[0].mxu0 %v2079
      %v2169 = vpop.f32.mrb[0].mxu0
      %v2170 = vadd.f32 0.0, %v2169
      %v2171 = vpop.f32.mrb[0].mxu0
      %v2172 = vpop.f32.mrb[0].mxu0
      %v2173 = vadd.f32 0.0, %v2172
      %v2174 = vpop.f32.mrb[0].mxu0
      %2175 = vmatprep.mubr.bf16.mxu0 0
      %2176 = vmatmul.mubr.bf16.gmra.mrb[0].mxu0 %v2082
      %v2177 = vpop.f32.mrb[0].mxu0
      %v2178 = vadd.f32 0.0, %v2177
      %v2179 = vpop.f32.mrb[0].mxu0
      %v2180 = vpop.f32.mrb[0].mxu0
      %v2181 = vadd.f32 0.0, %v2180
      %v2182 = vpop.f32.mrb[0].mxu0
      %2183 = vmatprep.mubr.bf16.mxu0 0
      %2184 = vmatmul.mubr.bf16.gmra.mrb[0].mxu0 %v2085
      %v2185 = vpop.f32.mrb[0].mxu0
      %v2186 = vadd.f32 0.0, %v2185
      %v2187 = vpop.f32.mrb[0].mxu0
      %v2188 = vpop.f32.mrb[0].mxu0
      %v2189 = vadd.f32 0.0, %v2188
      %v2190 = vpop.f32.mrb[0].mxu0
      %2191 = vmatprep.mubr.bf16.mxu0 0
      %2192 = vmatmul.mubr.bf16.gmra.mrb[0].mxu0 %v2088
      %v2193 = vpop.f32.mrb[0].mxu0
      %v2194 = vadd.f32 0.0, %v2193
      %v2195 = vpop.f32.mrb[0].mxu0
      %v2196 = vpop.f32.mrb[0].mxu0
      %v2197 = vadd.f32 0.0, %v2196
      %v2198 = vpop.f32.mrb[0].mxu0
      %2199 = vmatprep.mubr.bf16.mxu0 0
      %2200 = vmatmul.mubr.bf16.gmra.mrb[0].mxu0 %v2091
      %v2201 = vpop.f32.mrb[0].mxu0
      %v2202 = vadd.f32 0.0, %v2201
      %v2203 = vpop.f32.mrb[0].mxu0
      %v2204 = vpop.f32.mrb[0].mxu0
      %v2205 = vadd.f32 0.0, %v2204
      %v2206 = vpop.f32.mrb[0].mxu0
      %2207 = vmatprep.mubr.bf16.mxu0 0
      %2208 = vmatmul.mubr.bf16.gmra.mrb[0].mxu0 %v2094
      %v2209 = vpop.f32.mrb[0].mxu0
      %v2210 = vadd.f32 0.0, %v2209
      %v2211 = vpop.f32.mrb[0].mxu0
      %v2212 = vpop.f32.mrb[0].mxu0
      %v2213 = vadd.f32 0.0, %v2212
      %v2214 = vpop.f32.mrb[0].mxu0
      %2215 = vmatprep.mubr.bf16.mxu0 0
      %2216 = vmatmul.mubr.bf16.gmra.mrb[0].mxu0 %v2097
      %v2217 = vpop.f32.mrb[0].mxu0
      %v2218 = vadd.f32 0.0, %v2217
      %v2219 = vpop.f32.mrb[0].mxu0
      %v2220 = vpop.f32.mrb[0].mxu0
      %v2221 = vadd.f32 0.0, %v2220
      %v2222 = vpop.f32.mrb[0].mxu0
      %2223 = vmatprep.mubr.bf16.mxu0 0
      %2224 = vmatmul.mubr.bf16.gmra.mrb[0].mxu0 %v2100
      %v2225 = vpop.f32.mrb[0].mxu0
      %v2226 = vadd.f32 0.0, %v2225
      %v2227 = vpop.f32.mrb[0].mxu0
      %v2228 = vpop.f32.mrb[0].mxu0
      %v2229 = vadd.f32 0.0, %v2228
      %v2230 = vpop.f32.mrb[0].mxu0
      %2231 = vmatprep.mubr.bf16.mxu0 0
      %2232 = vmatmul.mubr.bf16.gmra.mrb[0].mxu0 %v2103
      %v2233 = vpop.f32.mrb[0].mxu0
      %v2234 = vadd.f32 0.0, %v2233
      %v2235 = vpop.f32.mrb[0].mxu0
      %v2236 = vpop.f32.mrb[0].mxu0
      %v2237 = vadd.f32 0.0, %v2236
      %v2238 = vpop.f32.mrb[0].mxu0
      %2239 = vmatprep.mubr.bf16.mxu0 0
      %2240 = vmatmul.mubr.bf16.gmra.mrb[0].mxu0 %v2106
      %v2241 = vpop.f32.mrb[0].mxu0
      %v2242 = vadd.f32 0.0, %v2241
      %v2243 = vpop.f32.mrb[0].mxu0
      %v2244 = vpop.f32.mrb[0].mxu0
      %v2245 = vadd.f32 0.0, %v2244
      %v2246 = vpop.f32.mrb[0].mxu0
      %2247 = vmatprep.mubr.bf16.mxu0 0
      %2248 = vmatmul.mubr.bf16.gmra.mrb[0].mxu0 %v2109
      %v2249 = vpop.f32.mrb[0].mxu0
      %v2250 = vadd.f32 0.0, %v2249
      %v2251 = vpop.f32.mrb[0].mxu0
      %v2252 = vpop.f32.mrb[0].mxu0
      %v2253 = vadd.f32 0.0, %v2252
      %v2254 = vpop.f32.mrb[0].mxu0
      %2255 = vmatprep.mubr.bf16.mxu0 0
      %2256 = vmatmul.mubr.bf16.gmra.mrb[0].mxu0 %v2112
      %v2257 = vpop.f32.mrb[0].mxu0
      %v2258 = vadd.f32 0.0, %v2257
      %v2259 = vpop.f32.mrb[0].mxu0
      %v2260 = vpop.f32.mrb[0].mxu0
      %v2261 = vadd.f32 0.0, %v2260
      %v2262 = vpop.f32.mrb[0].mxu0
      %2263 = vmatprep.mubr.bf16.mxu0 0
      %2264 = vmatmul.mubr.bf16.gmra.mrb[0].mxu0 %v2115
      %v2265 = vpop.f32.mrb[0].mxu0
      %v2266 = vadd.f32 0.0, %v2265
      %v2267 = vpop.f32.mrb[0].mxu0
      %v2268 = vpop.f32.mrb[0].mxu0
      %v2269 = vadd.f32 0.0, %v2268
      %v2270 = vpop.f32.mrb[0].mxu0
      %2271 = vmatprep.mubr.bf16.mxu0 0
      %2272 = vmatmul.mubr.bf16.gmra.mrb[0].mxu0 %v2118
      %v2273 = vpop.f32.mrb[0].mxu0
      %v2274 = vadd.f32 0.0, %v2273
      %v2275 = vpop.f32.mrb[0].mxu0
      %v2276 = vpop.f32.mrb[0].mxu0
      %v2277 = vadd.f32 0.0, %v2276
      %v2278 = vpop.f32.mrb[0].mxu0
      %2279 = vmatprep.mubr.bf16.mxu0 0
      %2280 = vmatmul.mubr.bf16.gmra.mrb[0].mxu0 %v2121
      %v2281 = vpop.f32.mrb[0].mxu0
      %v2282 = vadd.f32 0.0, %v2281
      %v2283 = vpop.f32.mrb[0].mxu0
      %v2284 = vpop.f32.mrb[0].mxu0
      %v2285 = vadd.f32 0.0, %v2284
      %v2286 = vpop.f32.mrb[0].mxu0
      %2287 = vdwg.mxu0
      %v2290 = vunpack.c.l.b16 %v2047
      %v2291 = vunpack.c.l.b16 %v2048
      %v2292 = vpack.c.b16 %v2291, %v2290
      %v2294 = vsel %vm2074, %v2031, 0
      %v2297 = vsel %vm2074, %v2032, 0
      %v2300 = vsel %vm2074, %v2033, 0
      %v2303 = vsel %vm2074, %v2034, 0
      %v2306 = vsel %vm2074, %v2035, 0
      %v2309 = vsel %vm2074, %v2036, 0
      %v2312 = vsel %vm2074, %v2037, 0
      %v2315 = vsel %vm2074, %v2038, 0
      %v2318 = vsel %vm2074, %v2039, 0
      %v2321 = vsel %vm2074, %v2040, 0
      %v2324 = vsel %vm2074, %v2041, 0
      %v2327 = vsel %vm2074, %v2042, 0
      %v2330 = vsel %vm2074, %v2043, 0
      %v2333 = vsel %vm2074, %v2044, 0
      %v2336 = vsel %vm2074, %v2045, 0
      %v2339 = vsel %vm2074, %v2046, 0
      %v2342 = vsel %vm2123, %v2292, 0
      %2344 = vmatprep.subr.bf16.mxu0 0
      %2345 = vmatpush1.bf16.msra.mxu0 %v2342
      %2346 = vmatprep.subr.bf16.mxu0 0
      %2347 = vmatpush1.bf16.msra.mxu0 0
      %2348 = vmatprep.subr.bf16.mxu0 0
      %2349 = vmatpush1.bf16.msra.mxu0 0
      %2350 = vmatprep.subr.bf16.mxu0 0
      %2351 = vmatpush1.bf16.msra.mxu0 0
      %2352 = vmatprep.subr.bf16.mxu0 0
      %2353 = vmatpush1.bf16.msra.mxu0 0
      %2354 = vmatprep.subr.bf16.mxu0 0
      %2355 = vmatpush1.bf16.msra.mxu0 0
      %2356 = vmatprep.subr.bf16.mxu0 0
      %2357 = vmatpush1.bf16.msra.mxu0 0
      %2358 = vmatprep.subr.bf16.mxu0 0
      %2359 = vmatpush1.bf16.msra.mxu0 0
      %2360 = vmatprep.subr.bf16.mxu0 0
      %2361 = vmatpush1.bf16.msra.mxu0 0
      %2362 = vmatprep.subr.bf16.mxu0 0
      %2363 = vmatpush1.bf16.msra.mxu0 0
      %2364 = vmatprep.subr.bf16.mxu0 0
      %2365 = vmatpush1.bf16.msra.mxu0 0
      %2366 = vmatprep.subr.bf16.mxu0 0
      %2367 = vmatpush1.bf16.msra.mxu0 0
      %2368 = vmatprep.subr.bf16.mxu0 0
      %2369 = vmatpush1.bf16.msra.mxu0 0
      %2370 = vmatprep.subr.bf16.mxu0 0
      %2371 = vmatpush1.bf16.msra.mxu0 0
      %2372 = vmatprep.subr.bf16.mxu0 0
      %2373 = vmatpush1.bf16.msra.mxu0 0
      %2374 = vmatprep.subr.bf16.mxu0 0
      %2375 = vmatpush1.bf16.msra.mxu0 0
      %2376 = vmatprep.mubr.bf16.mxu0 0
      %2377 = vmatmul.mubr.bf16.gmra.mrb[0].mxu0 %v2294
      %v2378 = vpop.f32.mrb[0].mxu0
      %v2379 = vadd.f32 %v2162, %v2378
      %v2380 = vpop.f32.mrb[0].mxu0
      %v2381 = vpop.f32.mrb[0].mxu0
      %v2382 = vadd.f32 %v2165, %v2381
      %v2383 = vpop.f32.mrb[0].mxu0
      %2384 = vmatprep.mubr.bf16.mxu0 0
      %2385 = vmatmul.mubr.bf16.gmra.mrb[0].mxu0 %v2297
      %v2386 = vpop.f32.mrb[0].mxu0
      %v2387 = vadd.f32 %v2170, %v2386
      %v2388 = vpop.f32.mrb[0].mxu0
      %v2389 = vpop.f32.mrb[0].mxu0
      %v2390 = vadd.f32 %v2173, %v2389
      %v2391 = vpop.f32.mrb[0].mxu0
      %2392 = vmatprep.mubr.bf16.mxu0 0
      %2393 = vmatmul.mubr.bf16.gmra.mrb[0].mxu0 %v2300
      %v2394 = vpop.f32.mrb[0].mxu0
      %v2395 = vadd.f32 %v2178, %v2394
      %v2396 = vpop.f32.mrb[0].mxu0
      %v2397 = vpop.f32.mrb[0].mxu0
      %v2398 = vadd.f32 %v2181, %v2397
      %v2399 = vpop.f32.mrb[0].mxu0
      %2400 = vmatprep.mubr.bf16.mxu0 0
      %2401 = vmatmul.mubr.bf16.gmra.mrb[0].mxu0 %v2303
      %v2402 = vpop.f32.mrb[0].mxu0
      %v2403 = vadd.f32 %v2186, %v2402
      %v2404 = vpop.f32.mrb[0].mxu0
      %v2405 = vpop.f32.mrb[0].mxu0
      %v2406 = vadd.f32 %v2189, %v2405
      %v2407 = vpop.f32.mrb[0].mxu0
      %2408 = vmatprep.mubr.bf16.mxu0 0
      %2409 = vmatmul.mubr.bf16.gmra.mrb[0].mxu0 %v2306
      %v2410 = vpop.f32.mrb[0].mxu0
      %v2411 = vadd.f32 %v2194, %v2410
      %v2412 = vpop.f32.mrb[0].mxu0
      %v2413 = vpop.f32.mrb[0].mxu0
      %v2414 = vadd.f32 %v2197, %v2413
      %v2415 = vpop.f32.mrb[0].mxu0
      %2416 = vmatprep.mubr.bf16.mxu0 0
      %2417 = vmatmul.mubr.bf16.gmra.mrb[0].mxu0 %v2309
      %v2418 = vpop.f32.mrb[0].mxu0
      %v2419 = vadd.f32 %v2202, %v2418
      %v2420 = vpop.f32.mrb[0].mxu0
      %v2421 = vpop.f32.mrb[0].mxu0
      %v2422 = vadd.f32 %v2205, %v2421
      %v2423 = vpop.f32.mrb[0].mxu0
      %2424 = vmatprep.mubr.bf16.mxu0 0
      %2425 = vmatmul.mubr.bf16.gmra.mrb[0].mxu0 %v2312
      %v2426 = vpop.f32.mrb[0].mxu0
      %v2427 = vadd.f32 %v2210, %v2426
      %v2428 = vpop.f32.mrb[0].mxu0
      %v2429 = vpop.f32.mrb[0].mxu0
      %v2430 = vadd.f32 %v2213, %v2429
      %v2431 = vpop.f32.mrb[0].mxu0
      %2432 = vmatprep.mubr.bf16.mxu0 0
      %2433 = vmatmul.mubr.bf16.gmra.mrb[0].mxu0 %v2315
      %v2434 = vpop.f32.mrb[0].mxu0
      %v2435 = vadd.f32 %v2218, %v2434
      %v2436 = vpop.f32.mrb[0].mxu0
      %v2437 = vpop.f32.mrb[0].mxu0
      %v2438 = vadd.f32 %v2221, %v2437
      %v2439 = vpop.f32.mrb[0].mxu0
      %2440 = vmatprep.mubr.bf16.mxu0 0
      %2441 = vmatmul.mubr.bf16.gmra.mrb[0].mxu0 %v2318
      %v2442 = vpop.f32.mrb[0].mxu0
      %v2443 = vadd.f32 %v2226, %v2442
      %v2444 = vpop.f32.mrb[0].mxu0
      %v2445 = vpop.f32.mrb[0].mxu0
      %v2446 = vadd.f32 %v2229, %v2445
      %v2447 = vpop.f32.mrb[0].mxu0
      %2448 = vmatprep.mubr.bf16.mxu0 0
      %2449 = vmatmul.mubr.bf16.gmra.mrb[0].mxu0 %v2321
      %v2450 = vpop.f32.mrb[0].mxu0
      %v2451 = vadd.f32 %v2234, %v2450
      %v2452 = vpop.f32.mrb[0].mxu0
      %v2453 = vpop.f32.mrb[0].mxu0
      %v2454 = vadd.f32 %v2237, %v2453
      %v2455 = vpop.f32.mrb[0].mxu0
      %2456 = vmatprep.mubr.bf16.mxu0 0
      %2457 = vmatmul.mubr.bf16.gmra.mrb[0].mxu0 %v2324
      %v2458 = vpop.f32.mrb[0].mxu0
      %v2459 = vadd.f32 %v2242, %v2458
      %v2460 = vpop.f32.mrb[0].mxu0
      %v2461 = vpop.f32.mrb[0].mxu0
      %v2462 = vadd.f32 %v2245, %v2461
      %v2463 = vpop.f32.mrb[0].mxu0
      %2464 = vmatprep.mubr.bf16.mxu0 0
      %2465 = vmatmul.mubr.bf16.gmra.mrb[0].mxu0 %v2327
      %v2466 = vpop.f32.mrb[0].mxu0
      %v2467 = vadd.f32 %v2250, %v2466
      %v2468 = vpop.f32.mrb[0].mxu0
      %v2469 = vpop.f32.mrb[0].mxu0
      %v2470 = vadd.f32 %v2253, %v2469
      %v2471 = vpop.f32.mrb[0].mxu0
      %2472 = vmatprep.mubr.bf16.mxu0 0
      %2473 = vmatmul.mubr.bf16.gmra.mrb[0].mxu0 %v2330
      %v2474 = vpop.f32.mrb[0].mxu0
      %v2475 = vadd.f32 %v2258, %v2474
      %v2476 = vpop.f32.mrb[0].mxu0
      %v2477 = vpop.f32.mrb[0].mxu0
      %v2478 = vadd.f32 %v2261, %v2477
      %v2479 = vpop.f32.mrb[0].mxu0
      %2480 = vmatprep.mubr.bf16.mxu0 0
      %2481 = vmatmul.mubr.bf16.gmra.mrb[0].mxu0 %v2333
      %v2482 = vpop.f32.mrb[0].mxu0
      %v2483 = vadd.f32 %v2266, %v2482
      %v2484 = vpop.f32.mrb[0].mxu0
      %v2485 = vpop.f32.mrb[0].mxu0
      %v2486 = vadd.f32 %v2269, %v2485
      %v2487 = vpop.f32.mrb[0].mxu0
      %2488 = vmatprep.mubr.bf16.mxu0 0
      %2489 = vmatmul.mubr.bf16.gmra.mrb[0].mxu0 %v2336
      %v2490 = vpop.f32.mrb[0].mxu0
      %v2491 = vadd.f32 %v2274, %v2490
      %v2492 = vpop.f32.mrb[0].mxu0
      %v2493 = vpop.f32.mrb[0].mxu0
      %v2494 = vadd.f32 %v2277, %v2493
      %v2495 = vpop.f32.mrb[0].mxu0
      %2496 = vmatprep.mubr.bf16.mxu0 0
      %2497 = vmatmul.mubr.bf16.gmra.mrb[0].mxu0 %v2339
      %v2498 = vpop.f32.mrb[0].mxu0
      %v2499 = vadd.f32 %v2282, %v2498
      %v2500 = vpop.f32.mrb[0].mxu0
      %v2501 = vpop.f32.mrb[0].mxu0
      %v2502 = vadd.f32 %v2285, %v2501
      %v2503 = vpop.f32.mrb[0].mxu0
      %2504 = vdwg.mxu0
      %s2505 = scalar_lea.vmem [#allocation3], 16
      %v2506 = vld [vmem:[%s2505] sm:$0xff]
      %v2507 = vld [vmem:[%s2505 + $0x8] sm:$0xff]
      %v2508 = vld [vmem:[%s2505 + $0x10] sm:$0xff]
      %v2509 = vld [vmem:[%s2505 + $0x18] sm:$0xff]
      %v2510 = vld [vmem:[%s2505 + $0x20] sm:$0xff]
      %v2511 = vld [vmem:[%s2505 + $0x28] sm:$0xff]
      %v2512 = vld [vmem:[%s2505 + $0x30] sm:$0xff]
      %v2513 = vld [vmem:[%s2505 + $0x38] sm:$0xff]
      %v2514 = vld [vmem:[%s2505 + $0x40] sm:$0xff]
      %v2515 = vld [vmem:[%s2505 + $0x48] sm:$0xff]
      %v2516 = vld [vmem:[%s2505 + $0x50] sm:$0xff]
      %v2517 = vld [vmem:[%s2505 + $0x58] sm:$0xff]
      %v2518 = vld [vmem:[%s2505 + $0x60] sm:$0xff]
      %v2519 = vld [vmem:[%s2505 + $0x68] sm:$0xff]
      %v2520 = vld [vmem:[%s2505 + $0x70] sm:$0xff]
      %v2521 = vld [vmem:[%s2505 + $0x78] sm:$0xff]
      %s2522 = scalar_lea.vmem %s1, 16
      %v2523 = vld [vmem:[%s2522] sm:$0xf]
      %v2524 = vld [vmem:[%s2522 + $0x4] sm:$0x3]
      %v2527 = vunpack.c.l.b16 %v2523
      %v2528 = vunpack.c.l.b16 %v2524
      %v2529 = vpack.c.b16 %v2528, %v2527
      %v2531 = vsel %vm2074, %v2506, 0
      %v2534 = vsel %vm2074, %v2507, 0
      %v2537 = vsel %vm2074, %v2508, 0
      %v2540 = vsel %vm2074, %v2509, 0
      %v2543 = vsel %vm2074, %v2510, 0
      %v2546 = vsel %vm2074, %v2511, 0
      %v2549 = vsel %vm2074, %v2512, 0
      %v2552 = vsel %vm2074, %v2513, 0
      %v2555 = vsel %vm2074, %v2514, 0
      %v2558 = vsel %vm2074, %v2515, 0
      %v2561 = vsel %vm2074, %v2516, 0
      %v2564 = vsel %vm2074, %v2517, 0
      %v2567 = vsel %vm2074, %v2518, 0
      %v2570 = vsel %vm2074, %v2519, 0
      %v2573 = vsel %vm2074, %v2520, 0
      %v2576 = vsel %vm2074, %v2521, 0
      %v2579 = vsel %vm2123, %v2529, 0
      %2581 = vmatprep.subr.bf16.mxu0 0
      %2582 = vmatpush1.bf16.msra.mxu0 %v2579
      %2583 = vmatprep.subr.bf16.mxu0 0
      %2584 = vmatpush1.bf16.msra.mxu0 0
      %2585 = vmatprep.subr.bf16.mxu0 0
      %2586 = vmatpush1.bf16.msra.mxu0 0
      %2587 = vmatprep.subr.bf16.mxu0 0
      %2588 = vmatpush1.bf16.msra.mxu0 0
      %2589 = vmatprep.subr.bf16.mxu0 0
      %2590 = vmatpush1.bf16.msra.mxu0 0
      %2591 = vmatprep.subr.bf16.mxu0 0
      %2592 = vmatpush1.bf16.msra.mxu0 0
      %2593 = vmatprep.subr.bf16.mxu0 0
      %2594 = vmatpush1.bf16.msra.mxu0 0
      %2595 = vmatprep.subr.bf16.mxu0 0
      %2596 = vmatpush1.bf16.msra.mxu0 0
      %2597 = vmatprep.subr.bf16.mxu0 0
      %2598 = vmatpush1.bf16.msra.mxu0 0
      %2599 = vmatprep.subr.bf16.mxu0 0
      %2600 = vmatpush1.bf16.msra.mxu0 0
      %2601 = vmatprep.subr.bf16.mxu0 0
      %2602 = vmatpush1.bf16.msra.mxu0 0
      %2603 = vmatprep.subr.bf16.mxu0 0
      %2604 = vmatpush1.bf16.msra.mxu0 0
      %2605 = vmatprep.subr.bf16.mxu0 0
      %2606 = vmatpush1.bf16.msra.mxu0 0
      %2607 = vmatprep.subr.bf16.mxu0 0
      %2608 = vmatpush1.bf16.msra.mxu0 0
      %2609 = vmatprep.subr.bf16.mxu0 0
      %2610 = vmatpush1.bf16.msra.mxu0 0
      %2611 = vmatprep.subr.bf16.mxu0 0
      %2612 = vmatpush1.bf16.msra.mxu0 0
      %2613 = vmatprep.mubr.bf16.mxu0 0
      %2614 = vmatmul.mubr.bf16.gmra.mrb[0].mxu0 %v2531
      %v2615 = vpop.f32.mrb[0].mxu0
      %v2616 = vadd.f32 0.0, %v2615
      %v2617 = vpop.f32.mrb[0].mxu0
      %v2618 = vpop.f32.mrb[0].mxu0
      %v2619 = vadd.f32 0.0, %v2618
      %v2620 = vpop.f32.mrb[0].mxu0
      %2621 = vmatprep.mubr.bf16.mxu0 0
      %2622 = vmatmul.mubr.bf16.gmra.mrb[0].mxu0 %v2534
      %v2623 = vpop.f32.mrb[0].mxu0
      %v2624 = vadd.f32 0.0, %v2623
      %v2625 = vpop.f32.mrb[0].mxu0
      %v2626 = vpop.f32.mrb[0].mxu0
      %v2627 = vadd.f32 0.0, %v2626
      %v2628 = vpop.f32.mrb[0].mxu0
      %2629 = vmatprep.mubr.bf16.mxu0 0
      %2630 = vmatmul.mubr.bf16.gmra.mrb[0].mxu0 %v2537
      %v2631 = vpop.f32.mrb[0].mxu0
      %v2632 = vadd.f32 0.0, %v2631
      %v2633 = vpop.f32.mrb[0].mxu0
      %v2634 = vpop.f32.mrb[0].mxu0
      %v2635 = vadd.f32 0.0, %v2634
      %v2636 = vpop.f32.mrb[0].mxu0
      %2637 = vmatprep.mubr.bf16.mxu0 0
      %2638 = vmatmul.mubr.bf16.gmra.mrb[0].mxu0 %v2540
      %v2639 = vpop.f32.mrb[0].mxu0
      %v2640 = vadd.f32 0.0, %v2639
      %v2641 = vpop.f32.mrb[0].mxu0
      %v2642 = vpop.f32.mrb[0].mxu0
      %v2643 = vadd.f32 0.0, %v2642
      %v2644 = vpop.f32.mrb[0].mxu0
      %2645 = vmatprep.mubr.bf16.mxu0 0
      %2646 = vmatmul.mubr.bf16.gmra.mrb[0].mxu0 %v2543
      %v2647 = vpop.f32.mrb[0].mxu0
      %v2648 = vadd.f32 0.0, %v2647
      %v2649 = vpop.f32.mrb[0].mxu0
      %v2650 = vpop.f32.mrb[0].mxu0
      %v2651 = vadd.f32 0.0, %v2650
      %v2652 = vpop.f32.mrb[0].mxu0
      %2653 = vmatprep.mubr.bf16.mxu0 0
      %2654 = vmatmul.mubr.bf16.gmra.mrb[0].mxu0 %v2546
      %v2655 = vpop.f32.mrb[0].mxu0
      %v2656 = vadd.f32 0.0, %v2655
      %v2657 = vpop.f32.mrb[0].mxu0
      %v2658 = vpop.f32.mrb[0].mxu0
      %v2659 = vadd.f32 0.0, %v2658
      %v2660 = vpop.f32.mrb[0].mxu0
      %2661 = vmatprep.mubr.bf16.mxu0 0
      %2662 = vmatmul.mubr.bf16.gmra.mrb[0].mxu0 %v2549
      %v2663 = vpop.f32.mrb[0].mxu0
      %v2664 = vadd.f32 0.0, %v2663
      %v2665 = vpop.f32.mrb[0].mxu0
      %v2666 = vpop.f32.mrb[0].mxu0
      %v2667 = vadd.f32 0.0, %v2666
      %v2668 = vpop.f32.mrb[0].mxu0
      %2669 = vmatprep.mubr.bf16.mxu0 0
      %2670 = vmatmul.mubr.bf16.gmra.mrb[0].mxu0 %v2552
      %v2671 = vpop.f32.mrb[0].mxu0
      %v2672 = vadd.f32 0.0, %v2671
      %v2673 = vpop.f32.mrb[0].mxu0
      %v2674 = vpop.f32.mrb[0].mxu0
      %v2675 = vadd.f32 0.0, %v2674
      %v2676 = vpop.f32.mrb[0].mxu0
      %2677 = vmatprep.mubr.bf16.mxu0 0
      %2678 = vmatmul.mubr.bf16.gmra.mrb[0].mxu0 %v2555
      %v2679 = vpop.f32.mrb[0].mxu0
      %v2680 = vadd.f32 0.0, %v2679
      %v2681 = vpop.f32.mrb[0].mxu0
      %v2682 = vpop.f32.mrb[0].mxu0
      %v2683 = vadd.f32 0.0, %v2682
      %v2684 = vpop.f32.mrb[0].mxu0
      %2685 = vmatprep.mubr.bf16.mxu0 0
      %2686 = vmatmul.mubr.bf16.gmra.mrb[0].mxu0 %v2558
      %v2687 = vpop.f32.mrb[0].mxu0
      %v2688 = vadd.f32 0.0, %v2687
      %v2689 = vpop.f32.mrb[0].mxu0
      %v2690 = vpop.f32.mrb[0].mxu0
      %v2691 = vadd.f32 0.0, %v2690
      %v2692 = vpop.f32.mrb[0].mxu0
      %2693 = vmatprep.mubr.bf16.mxu0 0
      %2694 = vmatmul.mubr.bf16.gmra.mrb[0].mxu0 %v2561
      %v2695 = vpop.f32.mrb[0].mxu0
      %v2696 = vadd.f32 0.0, %v2695
      %v2697 = vpop.f32.mrb[0].mxu0
      %v2698 = vpop.f32.mrb[0].mxu0
      %v2699 = vadd.f32 0.0, %v2698
      %v2700 = vpop.f32.mrb[0].mxu0
      %2701 = vmatprep.mubr.bf16.mxu0 0
      %2702 = vmatmul.mubr.bf16.gmra.mrb[0].mxu0 %v2564
      %v2703 = vpop.f32.mrb[0].mxu0
      %v2704 = vadd.f32 0.0, %v2703
      %v2705 = vpop.f32.mrb[0].mxu0
      %v2706 = vpop.f32.mrb[0].mxu0
      %v2707 = vadd.f32 0.0, %v2706
      %v2708 = vpop.f32.mrb[0].mxu0
      %2709 = vmatprep.mubr.bf16.mxu0 0
      %2710 = vmatmul.mubr.bf16.gmra.mrb[0].mxu0 %v2567
      %v2711 = vpop.f32.mrb[0].mxu0
      %v2712 = vadd.f32 0.0, %v2711
      %v2713 = vpop.f32.mrb[0].mxu0
      %v2714 = vpop.f32.mrb[0].mxu0
      %v2715 = vadd.f32 0.0, %v2714
      %v2716 = vpop.f32.mrb[0].mxu0
      %2717 = vmatprep.mubr.bf16.mxu0 0
      %2718 = vmatmul.mubr.bf16.gmra.mrb[0].mxu0 %v2570
      %v2719 = vpop.f32.mrb[0].mxu0
      %v2720 = vadd.f32 0.0, %v2719
      %v2721 = vpop.f32.mrb[0].mxu0
      %v2722 = vpop.f32.mrb[0].mxu0
      %v2723 = vadd.f32 0.0, %v2722
      %v2724 = vpop.f32.mrb[0].mxu0
      %2725 = vmatprep.mubr.bf16.mxu0 0
      %2726 = vmatmul.mubr.bf16.gmra.mrb[0].mxu0 %v2573
      %v2727 = vpop.f32.mrb[0].mxu0
      %v2728 = vadd.f32 0.0, %v2727
      %v2729 = vpop.f32.mrb[0].mxu0
      %v2730 = vpop.f32.mrb[0].mxu0
      %v2731 = vadd.f32 0.0, %v2730
      %v2732 = vpop.f32.mrb[0].mxu0
      %2733 = vmatprep.mubr.bf16.mxu0 0
      %2734 = vmatmul.mubr.bf16.gmra.mrb[0].mxu0 %v2576
      %v2735 = vpop.f32.mrb[0].mxu0
      %v2736 = vadd.f32 0.0, %v2735
      %v2737 = vpop.f32.mrb[0].mxu0
      %v2738 = vpop.f32.mrb[0].mxu0
      %v2739 = vadd.f32 0.0, %v2738
      %v2740 = vpop.f32.mrb[0].mxu0
      %2741 = vdwg.mxu0
      %v2742 = vadd.f32 %v2379, %v2616
      %v2743 = vadd.f32 %v2382, %v2619
      %v2744 = vadd.f32 %v2387, %v2624
      %v2745 = vadd.f32 %v2390, %v2627
      %v2746 = vadd.f32 %v2395, %v2632
      %v2747 = vadd.f32 %v2398, %v2635
      %v2748 = vadd.f32 %v2403, %v2640
      %v2749 = vadd.f32 %v2406, %v2643
      %v2750 = vadd.f32 %v2411, %v2648
      %v2751 = vadd.f32 %v2414, %v2651
      %v2752 = vadd.f32 %v2419, %v2656
      %v2753 = vadd.f32 %v2422, %v2659
      %v2754 = vadd.f32 %v2427, %v2664
      %v2755 = vadd.f32 %v2430, %v2667
      %v2756 = vadd.f32 %v2435, %v2672
      %v2757 = vadd.f32 %v2438, %v2675
      %v2758 = vadd.f32 %v2443, %v2680
      %v2759 = vadd.f32 %v2446, %v2683
      %v2760 = vadd.f32 %v2451, %v2688
      %v2761 = vadd.f32 %v2454, %v2691
      %v2762 = vadd.f32 %v2459, %v2696
      %v2763 = vadd.f32 %v2462, %v2699
      %v2764 = vadd.f32 %v2467, %v2704
      %v2765 = vadd.f32 %v2470, %v2707
      %v2766 = vadd.f32 %v2475, %v2712
      %v2767 = vadd.f32 %v2478, %v2715
      %v2768 = vadd.f32 %v2483, %v2720
      %v2769 = vadd.f32 %v2486, %v2723
      %v2770 = vadd.f32 %v2491, %v2728
      %v2771 = vadd.f32 %v2494, %v2731
      %v2772 = vadd.f32 %v2499, %v2736
      %v2773 = vadd.f32 %v2502, %v2739
      %v2774 = vsel %vm1198, %v2742, 0.0
      %v2775 = vsel %vm1198, %v2743, 0.0
      %v2776 = vadd.f32 %v2774, %v2775
      %v2777 = vsel %vm1198, %v2744, 0.0
      %v2778 = vadd.f32 %v2776, %v2777
      %v2779 = vsel %vm1198, %v2745, 0.0
      %v2780 = vadd.f32 %v2778, %v2779
      %v2781 = vsel %vm1198, %v2746, 0.0
      %v2782 = vadd.f32 %v2780, %v2781
      %v2783 = vsel %vm1198, %v2747, 0.0
      %v2784 = vadd.f32 %v2782, %v2783
      %v2785 = vsel %vm1198, %v2748, 0.0
      %v2786 = vadd.f32 %v2784, %v2785
      %v2787 = vsel %vm1198, %v2749, 0.0
      %v2788 = vadd.f32 %v2786, %v2787
      %v2789 = vsel %vm1198, %v2750, 0.0
      %v2790 = vadd.f32 %v2788, %v2789
      %v2791 = vsel %vm1198, %v2751, 0.0
      %v2792 = vadd.f32 %v2790, %v2791
      %v2793 = vsel %vm1198, %v2752, 0.0
      %v2794 = vadd.f32 %v2792, %v2793
      %v2795 = vsel %vm1198, %v2753, 0.0
      %v2796 = vadd.f32 %v2794, %v2795
      %v2797 = vsel %vm1198, %v2754, 0.0
      %v2798 = vadd.f32 %v2796, %v2797
      %v2799 = vsel %vm1198, %v2755, 0.0
      %v2800 = vadd.f32 %v2798, %v2799
      %v2801 = vsel %vm1198, %v2756, 0.0
      %v2802 = vadd.f32 %v2800, %v2801
      %v2803 = vsel %vm1198, %v2757, 0.0
      %v2804 = vadd.f32 %v2802, %v2803
      %v2805 = vsel %vm1198, %v2758, 0.0
      %v2806 = vadd.f32 %v2804, %v2805
      %v2807 = vsel %vm1198, %v2759, 0.0
      %v2808 = vadd.f32 %v2806, %v2807
      %v2809 = vsel %vm1198, %v2760, 0.0
      %v2810 = vadd.f32 %v2808, %v2809
      %v2811 = vsel %vm1198, %v2761, 0.0
      %v2812 = vadd.f32 %v2810, %v2811
      %v2813 = vsel %vm1198, %v2762, 0.0
      %v2814 = vadd.f32 %v2812, %v2813
      %v2815 = vsel %vm1198, %v2763, 0.0
      %v2816 = vadd.f32 %v2814, %v2815
      %v2817 = vsel %vm1198, %v2764, 0.0
      %v2818 = vadd.f32 %v2816, %v2817
      %v2819 = vsel %vm1198, %v2765, 0.0
      %v2820 = vadd.f32 %v2818, %v2819
      %v2821 = vsel %vm1198, %v2766, 0.0
      %v2822 = vadd.f32 %v2820, %v2821
      %v2823 = vsel %vm1198, %v2767, 0.0
      %v2824 = vadd.f32 %v2822, %v2823
      %v2825 = vsel %vm1198, %v2768, 0.0
      %v2826 = vadd.f32 %v2824, %v2825
      %v2827 = vsel %vm1198, %v2769, 0.0
      %v2828 = vadd.f32 %v2826, %v2827
      %v2829 = vsel %vm1198, %v2770, 0.0
      %v2830 = vadd.f32 %v2828, %v2829
      %v2831 = vsel %vm1198, %v2771, 0.0
      %v2832 = vadd.f32 %v2830, %v2831
      %v2833 = vsel %vm1198, %v2772, 0.0
      %v2834 = vadd.f32 %v2832, %v2833
      %v2835 = vsel %vm1198, %v2773, 0.0
      %v2836 = vadd.f32 %v2834, %v2835
      %v2837 = vrot.slane %v2836, 4
      %v2838 = vadd.f32 %v2836, %v2837
      %v2839 = vrot.slane %v2838, 2
      %v2840 = vadd.f32 %v2838, %v2839
      %v2841 = vrot.slane %v2840, 1
      %v2842 = vadd.f32 %v2840, %v2841
      %v2843 = vmul.f32 %v2842, 0.00390625
      %v2844 = vmul.f32 %v2742, %v2742
      %v2845 = vmul.f32 %v2743, %v2743
      %v2846 = vmul.f32 %v2744, %v2744
      %v2847 = vmul.f32 %v2745, %v2745
      %v2848 = vmul.f32 %v2746, %v2746
      %v2849 = vmul.f32 %v2747, %v2747
      %v2850 = vmul.f32 %v2748, %v2748
      %v2851 = vmul.f32 %v2749, %v2749
      %v2852 = vmul.f32 %v2750, %v2750
      %v2853 = vmul.f32 %v2751, %v2751
      %v2854 = vmul.f32 %v2752, %v2752
      %v2855 = vmul.f32 %v2753, %v2753
      %v2856 = vmul.f32 %v2754, %v2754
      %v2857 = vmul.f32 %v2755, %v2755
      %v2858 = vmul.f32 %v2756, %v2756
      %v2859 = vmul.f32 %v2757, %v2757
      %v2860 = vmul.f32 %v2758, %v2758
      %v2861 = vmul.f32 %v2759, %v2759
      %v2862 = vmul.f32 %v2760, %v2760
      %v2863 = vmul.f32 %v2761, %v2761
      %v2864 = vmul.f32 %v2762, %v2762
      %v2865 = vmul.f32 %v2763, %v2763
      %v2866 = vmul.f32 %v2764, %v2764
      %v2867 = vmul.f32 %v2765, %v2765
      %v2868 = vmul.f32 %v2766, %v2766
      %v2869 = vmul.f32 %v2767, %v2767
      %v2870 = vmul.f32 %v2768, %v2768
      %v2871 = vmul.f32 %v2769, %v2769
      %v2872 = vmul.f32 %v2770, %v2770
      %v2873 = vmul.f32 %v2771, %v2771
      %v2874 = vmul.f32 %v2772, %v2772
      %v2875 = vmul.f32 %v2773, %v2773
      %v2876 = vsel %vm1198, %v2844, 0.0
      %v2877 = vsel %vm1198, %v2845, 0.0
      %v2878 = vadd.f32 %v2876, %v2877
      %v2879 = vsel %vm1198, %v2846, 0.0
      %v2880 = vadd.f32 %v2878, %v2879
      %v2881 = vsel %vm1198, %v2847, 0.0
      %v2882 = vadd.f32 %v2880, %v2881
      %v2883 = vsel %vm1198, %v2848, 0.0
      %v2884 = vadd.f32 %v2882, %v2883
      %v2885 = vsel %vm1198, %v2849, 0.0
      %v2886 = vadd.f32 %v2884, %v2885
      %v2887 = vsel %vm1198, %v2850, 0.0
      %v2888 = vadd.f32 %v2886, %v2887
      %v2889 = vsel %vm1198, %v2851, 0.0
      %v2890 = vadd.f32 %v2888, %v2889
      %v2891 = vsel %vm1198, %v2852, 0.0
      %v2892 = vadd.f32 %v2890, %v2891
      %v2893 = vsel %vm1198, %v2853, 0.0
      %v2894 = vadd.f32 %v2892, %v2893
      %v2895 = vsel %vm1198, %v2854, 0.0
      %v2896 = vadd.f32 %v2894, %v2895
      %v2897 = vsel %vm1198, %v2855, 0.0
      %v2898 = vadd.f32 %v2896, %v2897
      %v2899 = vsel %vm1198, %v2856, 0.0
      %v2900 = vadd.f32 %v2898, %v2899
      %v2901 = vsel %vm1198, %v2857, 0.0
      %v2902 = vadd.f32 %v2900, %v2901
      %v2903 = vsel %vm1198, %v2858, 0.0
      %v2904 = vadd.f32 %v2902, %v2903
      %v2905 = vsel %vm1198, %v2859, 0.0
      %v2906 = vadd.f32 %v2904, %v2905
      %v2907 = vsel %vm1198, %v2860, 0.0
      %v2908 = vadd.f32 %v2906, %v2907
      %v2909 = vsel %vm1198, %v2861, 0.0
      %v2910 = vadd.f32 %v2908, %v2909
      %v2911 = vsel %vm1198, %v2862, 0.0
      %v2912 = vadd.f32 %v2910, %v2911
      %v2913 = vsel %vm1198, %v2863, 0.0
      %v2914 = vadd.f32 %v2912, %v2913
      %v2915 = vsel %vm1198, %v2864, 0.0
      %v2916 = vadd.f32 %v2914, %v2915
      %v2917 = vsel %vm1198, %v2865, 0.0
      %v2918 = vadd.f32 %v2916, %v2917
      %v2919 = vsel %vm1198, %v2866, 0.0
      %v2920 = vadd.f32 %v2918, %v2919
      %v2921 = vsel %vm1198, %v2867, 0.0
      %v2922 = vadd.f32 %v2920, %v2921
      %v2923 = vsel %vm1198, %v2868, 0.0
      %v2924 = vadd.f32 %v2922, %v2923
      %v2925 = vsel %vm1198, %v2869, 0.0
      %v2926 = vadd.f32 %v2924, %v2925
      %v2927 = vsel %vm1198, %v2870, 0.0
      %v2928 = vadd.f32 %v2926, %v2927
      %v2929 = vsel %vm1198, %v2871, 0.0
      %v2930 = vadd.f32 %v2928, %v2929
      %v2931 = vsel %vm1198, %v2872, 0.0
      %v2932 = vadd.f32 %v2930, %v2931
      %v2933 = vsel %vm1198, %v2873, 0.0
      %v2934 = vadd.f32 %v2932, %v2933
      %v2935 = vsel %vm1198, %v2874, 0.0
      %v2936 = vadd.f32 %v2934, %v2935
      %v2937 = vsel %vm1198, %v2875, 0.0
      %v2938 = vadd.f32 %v2936, %v2937
      %v2939 = vrot.slane %v2938, 4
      %v2940 = vadd.f32 %v2938, %v2939
      %v2941 = vrot.slane %v2940, 2
      %v2942 = vadd.f32 %v2940, %v2941
      %v2943 = vrot.slane %v2942, 1
      %v2944 = vadd.f32 %v2942, %v2943
      %v2945 = vmul.f32 %v2944, 0.00390625
      %v2946 = vmul.f32 %v2843, %v2843
      %v2947 = vsub.f32 %v2945, %v2946
      %v2948 = vadd.f32 %v2947, 1e-05
      %v2949 = vrsqrt.pop %v2948
      %v2950 = vsub.f32 %v2742, %v2843
      %v2951 = vsub.f32 %v2743, %v2843
      %v2952 = vsub.f32 %v2744, %v2843
      %v2953 = vsub.f32 %v2745, %v2843
      %v2954 = vsub.f32 %v2746, %v2843
      %v2955 = vsub.f32 %v2747, %v2843
      %v2956 = vsub.f32 %v2748, %v2843
      %v2957 = vsub.f32 %v2749, %v2843
      %v2958 = vsub.f32 %v2750, %v2843
      %v2959 = vsub.f32 %v2751, %v2843
      %v2960 = vsub.f32 %v2752, %v2843
      %v2961 = vsub.f32 %v2753, %v2843
      %v2962 = vsub.f32 %v2754, %v2843
      %v2963 = vsub.f32 %v2755, %v2843
      %v2964 = vsub.f32 %v2756, %v2843
      %v2965 = vsub.f32 %v2757, %v2843
      %v2966 = vsub.f32 %v2758, %v2843
      %v2967 = vsub.f32 %v2759, %v2843
      %v2968 = vsub.f32 %v2760, %v2843
      %v2969 = vsub.f32 %v2761, %v2843
      %v2970 = vsub.f32 %v2762, %v2843
      %v2971 = vsub.f32 %v2763, %v2843
      %v2972 = vsub.f32 %v2764, %v2843
      %v2973 = vsub.f32 %v2765, %v2843
      %v2974 = vsub.f32 %v2766, %v2843
      %v2975 = vsub.f32 %v2767, %v2843
      %v2976 = vsub.f32 %v2768, %v2843
      %v2977 = vsub.f32 %v2769, %v2843
      %v2978 = vsub.f32 %v2770, %v2843
      %v2979 = vsub.f32 %v2771, %v2843
      %v2980 = vsub.f32 %v2772, %v2843
      %v2981 = vsub.f32 %v2773, %v2843
      %v2982 = vmul.f32 %v2950, %v2949
      %v2983 = vmul.f32 %v2951, %v2949
      %v2984 = vmul.f32 %v2952, %v2949
      %v2985 = vmul.f32 %v2953, %v2949
      %v2986 = vmul.f32 %v2954, %v2949
      %v2987 = vmul.f32 %v2955, %v2949
      %v2988 = vmul.f32 %v2956, %v2949
      %v2989 = vmul.f32 %v2957, %v2949
      %v2990 = vmul.f32 %v2958, %v2949
      %v2991 = vmul.f32 %v2959, %v2949
      %v2992 = vmul.f32 %v2960, %v2949
      %v2993 = vmul.f32 %v2961, %v2949
      %v2994 = vmul.f32 %v2962, %v2949
      %v2995 = vmul.f32 %v2963, %v2949
      %v2996 = vmul.f32 %v2964, %v2949
      %v2997 = vmul.f32 %v2965, %v2949
      %v2998 = vmul.f32 %v2966, %v2949
      %v2999 = vmul.f32 %v2967, %v2949
      %v3000 = vmul.f32 %v2968, %v2949
      %v3001 = vmul.f32 %v2969, %v2949
      %v3002 = vmul.f32 %v2970, %v2949
      %v3003 = vmul.f32 %v2971, %v2949
      %v3004 = vmul.f32 %v2972, %v2949
      %v3005 = vmul.f32 %v2973, %v2949
      %v3006 = vmul.f32 %v2974, %v2949
      %v3007 = vmul.f32 %v2975, %v2949
      %v3008 = vmul.f32 %v2976, %v2949
      %v3009 = vmul.f32 %v2977, %v2949
      %v3010 = vmul.f32 %v2978, %v2949
      %v3011 = vmul.f32 %v2979, %v2949
      %v3012 = vmul.f32 %v2980, %v2949
      %v3013 = vmul.f32 %v2981, %v2949
      %v3014 = vmax.f32 %v2982, 0.0
      %v3015 = vmax.f32 %v2983, 0.0
      %v3016 = vmax.f32 %v2984, 0.0
      %v3017 = vmax.f32 %v2985, 0.0
      %v3018 = vmax.f32 %v2986, 0.0
      %v3019 = vmax.f32 %v2987, 0.0
      %v3020 = vmax.f32 %v2988, 0.0
      %v3021 = vmax.f32 %v2989, 0.0
      %v3022 = vmax.f32 %v2990, 0.0
      %v3023 = vmax.f32 %v2991, 0.0
      %v3024 = vmax.f32 %v2992, 0.0
      %v3025 = vmax.f32 %v2993, 0.0
      %v3026 = vmax.f32 %v2994, 0.0
      %v3027 = vmax.f32 %v2995, 0.0
      %v3028 = vmax.f32 %v2996, 0.0
      %v3029 = vmax.f32 %v2997, 0.0
      %v3030 = vmax.f32 %v2998, 0.0
      %v3031 = vmax.f32 %v2999, 0.0
      %v3032 = vmax.f32 %v3000, 0.0
      %v3033 = vmax.f32 %v3001, 0.0
      %v3034 = vmax.f32 %v3002, 0.0
      %v3035 = vmax.f32 %v3003, 0.0
      %v3036 = vmax.f32 %v3004, 0.0
      %v3037 = vmax.f32 %v3005, 0.0
      %v3038 = vmax.f32 %v3006, 0.0
      %v3039 = vmax.f32 %v3007, 0.0
      %v3040 = vmax.f32 %v3008, 0.0
      %v3041 = vmax.f32 %v3009, 0.0
      %v3042 = vmax.f32 %v3010, 0.0
      %v3043 = vmax.f32 %v3011, 0.0
      %v3044 = vmax.f32 %v3012, 0.0
      %v3045 = vmax.f32 %v3013, 0.0
      %v3046 = vpack.c.bf16 %v3015, %v3014
      %v3047 = vpack.c.bf16 %v3017, %v3016
      %v3048 = vpack.c.bf16 %v3019, %v3018
      %v3049 = vpack.c.bf16 %v3021, %v3020
      %v3050 = vpack.c.bf16 %v3023, %v3022
      %v3051 = vpack.c.bf16 %v3025, %v3024
      %v3052 = vpack.c.bf16 %v3027, %v3026
      %v3053 = vpack.c.bf16 %v3029, %v3028
      %v3054 = vpack.c.bf16 %v3031, %v3030
      %v3055 = vpack.c.bf16 %v3033, %v3032
      %v3056 = vpack.c.bf16 %v3035, %v3034
      %v3057 = vpack.c.bf16 %v3037, %v3036
      %v3058 = vpack.c.bf16 %v3039, %v3038
      %v3059 = vpack.c.bf16 %v3041, %v3040
      %v3060 = vpack.c.bf16 %v3043, %v3042
      %v3061 = vpack.c.bf16 %v3045, %v3044
      %v3078 = vunpack.c.l.b16 %v3046
      %v3079 = vunpack.c.h.b16 %v3046
      %v3080 = vunpack.c.l.b16 %v3047
      %v3081 = vunpack.c.h.b16 %v3047
      %v3082 = vunpack.c.l.b16 %v3048
      %v3083 = vunpack.c.h.b16 %v3048
      %v3084 = vunpack.c.l.b16 %v3049
      %v3085 = vunpack.c.h.b16 %v3049
      %v3086 = vunpack.c.l.b16 %v3050
      %v3087 = vunpack.c.h.b16 %v3050
      %v3088 = vunpack.c.l.b16 %v3051
      %v3089 = vunpack.c.h.b16 %v3051
      %v3090 = vunpack.c.l.b16 %v3052
      %v3091 = vunpack.c.h.b16 %v3052
      %v3092 = vunpack.c.l.b16 %v3053
      %v3093 = vunpack.c.h.b16 %v3053
      %v3094 = vunpack.c.l.b16 %v3054
      %v3095 = vunpack.c.h.b16 %v3054
      %v3096 = vunpack.c.l.b16 %v3055
      %v3097 = vunpack.c.h.b16 %v3055
      %v3098 = vunpack.c.l.b16 %v3056
      %v3099 = vunpack.c.h.b16 %v3056
      %v3100 = vunpack.c.l.b16 %v3057
      %v3101 = vunpack.c.h.b16 %v3057
      %v3102 = vunpack.c.l.b16 %v3058
      %v3103 = vunpack.c.h.b16 %v3058
      %v3104 = vunpack.c.l.b16 %v3059
      %v3105 = vunpack.c.h.b16 %v3059
      %v3106 = vunpack.c.l.b16 %v3060
      %v3107 = vunpack.c.h.b16 %v3060
      %v3108 = vunpack.c.l.b16 %v3061
      %v3109 = vunpack.c.h.b16 %v3061
      %v3110 = vpack.c.b16 %v3078, %v3078
      %v3111 = vpack.c.b16 %v3079, %v3079
      %v3112 = vpack.c.b16 %v3080, %v3080
      %v3113 = vpack.c.b16 %v3081, %v3081
      %v3114 = vpack.c.b16 %v3082, %v3082
      %v3115 = vpack.c.b16 %v3083, %v3083
      %v3116 = vpack.c.b16 %v3084, %v3084
      %v3117 = vpack.c.b16 %v3085, %v3085
      %v3118 = vpack.c.b16 %v3086, %v3086
      %v3119 = vpack.c.b16 %v3087, %v3087
      %v3120 = vpack.c.b16 %v3088, %v3088
      %v3121 = vpack.c.b16 %v3089, %v3089
      %v3122 = vpack.c.b16 %v3090, %v3090
      %v3123 = vpack.c.b16 %v3091, %v3091
      %v3124 = vpack.c.b16 %v3092, %v3092
      %v3125 = vpack.c.b16 %v3093, %v3093
      %v3126 = vpack.c.b16 %v3094, %v3094
      %v3127 = vpack.c.b16 %v3095, %v3095
      %v3128 = vpack.c.b16 %v3096, %v3096
      %v3129 = vpack.c.b16 %v3097, %v3097
      %v3130 = vpack.c.b16 %v3098, %v3098
      %v3131 = vpack.c.b16 %v3099, %v3099
      %v3132 = vpack.c.b16 %v3100, %v3100
      %v3133 = vpack.c.b16 %v3101, %v3101
      %v3134 = vpack.c.b16 %v3102, %v3102
      %v3135 = vpack.c.b16 %v3103, %v3103
      %v3136 = vpack.c.b16 %v3104, %v3104
      %v3137 = vpack.c.b16 %v3105, %v3105
      %v3138 = vpack.c.b16 %v3106, %v3106
      %v3139 = vpack.c.b16 %v3107, %v3107
      %v3140 = vpack.c.b16 %v3108, %v3108
      %v3141 = vpack.c.b16 %v3109, %v3109
      %v3143 = vshrl.u32 %v3110, 16
      %v3145 = vrot.slane %v3143, 7
      %v3146 = vshll.u32 %v3110, 16
      %v3148 = vor.u32 %v3145, %v3146
      %v3149 = vrot.slane %v3145, 4
      %v3151 = vshrl.u32 %v3111, 16
      %v3153 = vrot.slane %v3151, 7
      %v3154 = vshll.u32 %v3111, 16
      %v3156 = vor.u32 %v3153, %v3154
      %v3157 = vsel %vm302, %v3149, %v3156
      %v3158 = vrot.slane %v3153, 4
      %v3160 = vshrl.u32 %v3112, 16
      %v3162 = vrot.slane %v3160, 7
      %v3163 = vshll.u32 %v3112, 16
      %v3165 = vor.u32 %v3162, %v3163
      %v3166 = vrot.slane %v3162, 4
      %v3168 = vshrl.u32 %v3113, 16
      %v3170 = vrot.slane %v3168, 7
      %v3171 = vshll.u32 %v3113, 16
      %v3173 = vor.u32 %v3170, %v3171
      %v3174 = vsel %vm302, %v3166, %v3173
      %v3175 = vrot.slane %v3170, 4
      %v3177 = vshrl.u32 %v3114, 16
      %v3179 = vrot.slane %v3177, 7
      %v3180 = vshll.u32 %v3114, 16
      %v3182 = vor.u32 %v3179, %v3180
      %v3183 = vrot.slane %v3179, 4
      %v3185 = vshrl.u32 %v3115, 16
      %v3187 = vrot.slane %v3185, 7
      %v3188 = vshll.u32 %v3115, 16
      %v3190 = vor.u32 %v3187, %v3188
      %v3191 = vsel %vm302, %v3183, %v3190
      %v3192 = vrot.slane %v3187, 4
      %v3194 = vshrl.u32 %v3116, 16
      %v3196 = vrot.slane %v3194, 7
      %v3197 = vshll.u32 %v3116, 16
      %v3199 = vor.u32 %v3196, %v3197
      %v3200 = vrot.slane %v3196, 4
      %v3202 = vshrl.u32 %v3117, 16
      %v3204 = vrot.slane %v3202, 7
      %v3205 = vshll.u32 %v3117, 16
      %v3207 = vor.u32 %v3204, %v3205
      %v3208 = vsel %vm302, %v3200, %v3207
      %v3209 = vrot.slane %v3204, 4
      %v3211 = vshrl.u32 %v3118, 16
      %v3213 = vrot.slane %v3211, 7
      %v3214 = vshll.u32 %v3118, 16
      %v3216 = vor.u32 %v3213, %v3214
      %v3217 = vrot.slane %v3213, 4
      %v3219 = vshrl.u32 %v3119, 16
      %v3221 = vrot.slane %v3219, 7
      %v3222 = vshll.u32 %v3119, 16
      %v3224 = vor.u32 %v3221, %v3222
      %v3225 = vsel %vm302, %v3217, %v3224
      %v3226 = vrot.slane %v3221, 4
      %v3228 = vshrl.u32 %v3120, 16
      %v3230 = vrot.slane %v3228, 7
      %v3231 = vshll.u32 %v3120, 16
      %v3233 = vor.u32 %v3230, %v3231
      %v3234 = vrot.slane %v3230, 4
      %v3236 = vshrl.u32 %v3121, 16
      %v3238 = vrot.slane %v3236, 7
      %v3239 = vshll.u32 %v3121, 16
      %v3241 = vor.u32 %v3238, %v3239
      %v3242 = vsel %vm302, %v3234, %v3241
      %v3243 = vrot.slane %v3238, 4
      %v3245 = vshrl.u32 %v3122, 16
      %v3247 = vrot.slane %v3245, 7
      %v3248 = vshll.u32 %v3122, 16
      %v3250 = vor.u32 %v3247, %v3248
      %v3251 = vrot.slane %v3247, 4
      %v3253 = vshrl.u32 %v3123, 16
      %v3255 = vrot.slane %v3253, 7
      %v3256 = vshll.u32 %v3123, 16
      %v3258 = vor.u32 %v3255, %v3256
      %v3259 = vsel %vm302, %v3251, %v3258
      %v3260 = vrot.slane %v3255, 4
      %v3262 = vshrl.u32 %v3124, 16
      %v3264 = vrot.slane %v3262, 7
      %v3265 = vshll.u32 %v3124, 16
      %v3267 = vor.u32 %v3264, %v3265
      %v3268 = vrot.slane %v3264, 4
      %v3270 = vshrl.u32 %v3125, 16
      %v3272 = vrot.slane %v3270, 7
      %v3273 = vshll.u32 %v3125, 16
      %v3275 = vor.u32 %v3272, %v3273
      %v3276 = vsel %vm302, %v3268, %v3275
      %v3277 = vrot.slane %v3272, 4
      %v3279 = vshrl.u32 %v3126, 16
      %v3281 = vrot.slane %v3279, 7
      %v3282 = vshll.u32 %v3126, 16
      %v3284 = vor.u32 %v3281, %v3282
      %v3285 = vrot.slane %v3281, 4
      %v3287 = vshrl.u32 %v3127, 16
      %v3289 = vrot.slane %v3287, 7
      %v3290 = vshll.u32 %v3127, 16
      %v3292 = vor.u32 %v3289, %v3290
      %v3293 = vsel %vm302, %v3285, %v3292
      %v3294 = vrot.slane %v3289, 4
      %v3296 = vshrl.u32 %v3128, 16
      %v3298 = vrot.slane %v3296, 7
      %v3299 = vshll.u32 %v3128, 16
      %v3301 = vor.u32 %v3298, %v3299
      %v3302 = vrot.slane %v3298, 4
      %v3304 = vshrl.u32 %v3129, 16
      %v3306 = vrot.slane %v3304, 7
      %v3307 = vshll.u32 %v3129, 16
      %v3309 = vor.u32 %v3306, %v3307
      %v3310 = vsel %vm302, %v3302, %v3309
      %v3311 = vrot.slane %v3306, 4
      %v3313 = vshrl.u32 %v3130, 16
      %v3315 = vrot.slane %v3313, 7
      %v3316 = vshll.u32 %v3130, 16
      %v3318 = vor.u32 %v3315, %v3316
      %v3319 = vrot.slane %v3315, 4
      %v3321 = vshrl.u32 %v3131, 16
      %v3323 = vrot.slane %v3321, 7
      %v3324 = vshll.u32 %v3131, 16
      %v3326 = vor.u32 %v3323, %v3324
      %v3327 = vsel %vm302, %v3319, %v3326
      %v3328 = vrot.slane %v3323, 4
      %v3330 = vshrl.u32 %v3132, 16
      %v3332 = vrot.slane %v3330, 7
      %v3333 = vshll.u32 %v3132, 16
      %v3335 = vor.u32 %v3332, %v3333
      %v3336 = vrot.slane %v3332, 4
      %v3338 = vshrl.u32 %v3133, 16
      %v3340 = vrot.slane %v3338, 7
      %v3341 = vshll.u32 %v3133, 16
      %v3343 = vor.u32 %v3340, %v3341
      %v3344 = vsel %vm302, %v3336, %v3343
      %v3345 = vrot.slane %v3340, 4
      %v3347 = vshrl.u32 %v3134, 16
      %v3349 = vrot.slane %v3347, 7
      %v3350 = vshll.u32 %v3134, 16
      %v3352 = vor.u32 %v3349, %v3350
      %v3353 = vrot.slane %v3349, 4
      %v3355 = vshrl.u32 %v3135, 16
      %v3357 = vrot.slane %v3355, 7
      %v3358 = vshll.u32 %v3135, 16
      %v3360 = vor.u32 %v3357, %v3358
      %v3361 = vsel %vm302, %v3353, %v3360
      %v3362 = vrot.slane %v3357, 4
      %v3364 = vshrl.u32 %v3136, 16
      %v3366 = vrot.slane %v3364, 7
      %v3367 = vshll.u32 %v3136, 16
      %v3369 = vor.u32 %v3366, %v3367
      %v3370 = vrot.slane %v3366, 4
      %v3372 = vshrl.u32 %v3137, 16
      %v3374 = vrot.slane %v3372, 7
      %v3375 = vshll.u32 %v3137, 16
      %v3377 = vor.u32 %v3374, %v3375
      %v3378 = vsel %vm302, %v3370, %v3377
      %v3379 = vrot.slane %v3374, 4
      %v3381 = vshrl.u32 %v3138, 16
      %v3383 = vrot.slane %v3381, 7
      %v3384 = vshll.u32 %v3138, 16
      %v3386 = vor.u32 %v3383, %v3384
      %v3387 = vrot.slane %v3383, 4
      %v3389 = vshrl.u32 %v3139, 16
      %v3391 = vrot.slane %v3389, 7
      %v3392 = vshll.u32 %v3139, 16
      %v3394 = vor.u32 %v3391, %v3392
      %v3395 = vsel %vm302, %v3387, %v3394
      %v3396 = vrot.slane %v3391, 4
      %v3398 = vshrl.u32 %v3140, 16
      %v3400 = vrot.slane %v3398, 7
      %v3401 = vshll.u32 %v3140, 16
      %v3403 = vor.u32 %v3400, %v3401
      %v3404 = vrot.slane %v3400, 4
      %v3406 = vshrl.u32 %v3141, 16
      %v3408 = vrot.slane %v3406, 7
      %v3409 = vshll.u32 %v3141, 16
      %v3411 = vor.u32 %v3408, %v3409
      %v3412 = vsel %vm302, %v3404, %v3411
      %v3413 = vrot.slane %v3408, 4
      %v3462 = vld [vmem:[%s623] sm:$0xf]
      %v3463 = vsel %vm626, %v3148, %v3462
      %3464 = vst [vmem:[%s623] sm:$0xf] %v3463
      %3465 = vst.msk [vmem:[%s623 + $0x4] sm:$0xf] %vm630, %v3157
      %v3466 = vld [vmem:[%s623 + $0x8] sm:$0x1]
      %v3467 = vsel %vm633, %v3158, %v3466
      %3468 = vst [vmem:[%s623 + $0x8] sm:$0x1] %v3467
      %v3469 = vld [vmem:[%s623 + $0xc] sm:$0xf]
      %v3470 = vsel %vm626, %v3165, %v3469
      %3471 = vst [vmem:[%s623 + $0xc] sm:$0xf] %v3470
      %3472 = vst.msk [vmem:[%s623 + $0x10] sm:$0xf] %vm630, %v3174
      %v3473 = vld [vmem:[%s623 + $0x14] sm:$0x1]
      %v3474 = vsel %vm633, %v3175, %v3473
      %3475 = vst [vmem:[%s623 + $0x14] sm:$0x1] %v3474
      %v3476 = vld [vmem:[%s623 + $0x18] sm:$0xf]
      %v3477 = vsel %vm626, %v3182, %v3476
      %3478 = vst [vmem:[%s623 + $0x18] sm:$0xf] %v3477
      %3479 = vst.msk [vmem:[%s623 + $0x1c] sm:$0xf] %vm630, %v3191
      %v3480 = vld [vmem:[%s623 + $0x20] sm:$0x1]
      %v3481 = vsel %vm633, %v3192, %v3480
      %3482 = vst [vmem:[%s623 + $0x20] sm:$0x1] %v3481
      %v3483 = vld [vmem:[%s623 + $0x24] sm:$0xf]
      %v3484 = vsel %vm626, %v3199, %v3483
      %3485 = vst [vmem:[%s623 + $0x24] sm:$0xf] %v3484
      %3486 = vst.msk [vmem:[%s623 + $0x28] sm:$0xf] %vm630, %v3208
      %v3487 = vld [vmem:[%s623 + $0x2c] sm:$0x1]
      %v3488 = vsel %vm633, %v3209, %v3487
      %3489 = vst [vmem:[%s623 + $0x2c] sm:$0x1] %v3488
      %v3490 = vld [vmem:[%s623 + $0x30] sm:$0xf]
      %v3491 = vsel %vm626, %v3216, %v3490
      %3492 = vst [vmem:[%s623 + $0x30] sm:$0xf] %v3491
      %3493 = vst.msk [vmem:[%s623 + $0x34] sm:$0xf] %vm630, %v3225
      %v3494 = vld [vmem:[%s623 + $0x38] sm:$0x1]
      %v3495 = vsel %vm633, %v3226, %v3494
      %3496 = vst [vmem:[%s623 + $0x38] sm:$0x1] %v3495
      %v3497 = vld [vmem:[%s623 + $0x3c] sm:$0xf]
      %v3498 = vsel %vm626, %v3233, %v3497
      %3499 = vst [vmem:[%s623 + $0x3c] sm:$0xf] %v3498
      %3500 = vst.msk [vmem:[%s623 + $0x40] sm:$0xf] %vm630, %v3242
      %v3501 = vld [vmem:[%s623 + $0x44] sm:$0x1]
      %v3502 = vsel %vm633, %v3243, %v3501
      %3503 = vst [vmem:[%s623 + $0x44] sm:$0x1] %v3502
      %v3504 = vld [vmem:[%s623 + $0x48] sm:$0xf]
      %v3505 = vsel %vm626, %v3250, %v3504
      %3506 = vst [vmem:[%s623 + $0x48] sm:$0xf] %v3505
      %3507 = vst.msk [vmem:[%s623 + $0x4c] sm:$0xf] %vm630, %v3259
      %v3508 = vld [vmem:[%s623 + $0x50] sm:$0x1]
      %v3509 = vsel %vm633, %v3260, %v3508
      %3510 = vst [vmem:[%s623 + $0x50] sm:$0x1] %v3509
      %v3511 = vld [vmem:[%s623 + $0x54] sm:$0xf]
      %v3512 = vsel %vm626, %v3267, %v3511
      %3513 = vst [vmem:[%s623 + $0x54] sm:$0xf] %v3512
      %3514 = vst.msk [vmem:[%s623 + $0x58] sm:$0xf] %vm630, %v3276
      %v3515 = vld [vmem:[%s623 + $0x5c] sm:$0x1]
      %v3516 = vsel %vm633, %v3277, %v3515
      %3517 = vst [vmem:[%s623 + $0x5c] sm:$0x1] %v3516
      %v3518 = vld [vmem:[%s623 + $0x60] sm:$0xf]
      %v3519 = vsel %vm626, %v3284, %v3518
      %3520 = vst [vmem:[%s623 + $0x60] sm:$0xf] %v3519
      %3521 = vst.msk [vmem:[%s623 + $0x64] sm:$0xf] %vm630, %v3293
      %v3522 = vld [vmem:[%s623 + $0x68] sm:$0x1]
      %v3523 = vsel %vm633, %v3294, %v3522
      %3524 = vst [vmem:[%s623 + $0x68] sm:$0x1] %v3523
      %v3525 = vld [vmem:[%s623 + $0x6c] sm:$0xf]
      %v3526 = vsel %vm626, %v3301, %v3525
      %3527 = vst [vmem:[%s623 + $0x6c] sm:$0xf] %v3526
      %3528 = vst.msk [vmem:[%s623 + $0x70] sm:$0xf] %vm630, %v3310
      %v3529 = vld [vmem:[%s623 + $0x74] sm:$0x1]
      %v3530 = vsel %vm633, %v3311, %v3529
      %3531 = vst [vmem:[%s623 + $0x74] sm:$0x1] %v3530
      %v3532 = vld [vmem:[%s623 + $0x78] sm:$0xf]
      %v3533 = vsel %vm626, %v3318, %v3532
      %3534 = vst [vmem:[%s623 + $0x78] sm:$0xf] %v3533
      %3535 = vst.msk [vmem:[%s623 + $0x7c] sm:$0xf] %vm630, %v3327
      %v3536 = vld [vmem:[%s623 + $0x80] sm:$0x1]
      %v3537 = vsel %vm633, %v3328, %v3536
      %3538 = vst [vmem:[%s623 + $0x80] sm:$0x1] %v3537
      %v3539 = vld [vmem:[%s623 + $0x84] sm:$0xf]
      %v3540 = vsel %vm626, %v3335, %v3539
      %3541 = vst [vmem:[%s623 + $0x84] sm:$0xf] %v3540
      %3542 = vst.msk [vmem:[%s623 + $0x88] sm:$0xf] %vm630, %v3344
      %v3543 = vld [vmem:[%s623 + $0x8c] sm:$0x1]
      %v3544 = vsel %vm633, %v3345, %v3543
      %3545 = vst [vmem:[%s623 + $0x8c] sm:$0x1] %v3544
      %v3546 = vld [vmem:[%s623 + $0x90] sm:$0xf]
      %v3547 = vsel %vm626, %v3352, %v3546
      %3548 = vst [vmem:[%s623 + $0x90] sm:$0xf] %v3547
      %3549 = vst.msk [vmem:[%s623 + $0x94] sm:$0xf] %vm630, %v3361
      %v3550 = vld [vmem:[%s623 + $0x98] sm:$0x1]
      %v3551 = vsel %vm633, %v3362, %v3550
      %3552 = vst [vmem:[%s623 + $0x98] sm:$0x1] %v3551
      %v3553 = vld [vmem:[%s623 + $0x9c] sm:$0xf]
      %v3554 = vsel %vm626, %v3369, %v3553
      %3555 = vst [vmem:[%s623 + $0x9c] sm:$0xf] %v3554
      %3556 = vst.msk [vmem:[%s623 + $0xa0] sm:$0xf] %vm630, %v3378
      %v3557 = vld [vmem:[%s623 + $0xa4] sm:$0x1]
      %v3558 = vsel %vm633, %v3379, %v3557
      %3559 = vst [vmem:[%s623 + $0xa4] sm:$0x1] %v3558
      %v3560 = vld [vmem:[%s623 + $0xa8] sm:$0xf]
      %v3561 = vsel %vm626, %v3386, %v3560
      %3562 = vst [vmem:[%s623 + $0xa8] sm:$0xf] %v3561
      %3563 = vst.msk [vmem:[%s623 + $0xac] sm:$0xf] %vm630, %v3395
      %v3564 = vld [vmem:[%s623 + $0xb0] sm:$0x1]
      %v3565 = vsel %vm633, %v3396, %v3564
      %3566 = vst [vmem:[%s623 + $0xb0] sm:$0x1] %v3565
      %v3567 = vld [vmem:[%s623 + $0xb4] sm:$0xf]
      %v3568 = vsel %vm626, %v3403, %v3567
      %3569 = vst [vmem:[%s623 + $0xb4] sm:$0xf] %v3568
      %3570 = vst.msk [vmem:[%s623 + $0xb8] sm:$0xf] %vm630, %v3412
      %v3571 = vld [vmem:[%s623 + $0xbc] sm:$0x1]
      %v3572 = vsel %vm633, %v3413, %v3571
      %3573 = vst [vmem:[%s623 + $0xbc] sm:$0x1] %v3572
      %v3574 = vld [vmem:[%s742] sm:$0xf]
      %v3575 = vld [vmem:[%s742 + $0x4] sm:$0xf]
      %v3576 = vld [vmem:[%s742 + $0x8] sm:$0x1]
      %v3577 = vld [vmem:[#allocation2] sm:$0xf]
      %v3578 = vsel %vm626, %v3574, %v3577
      %3579 = vst [vmem:[#allocation2] sm:$0xf] %v3578
      %3580 = vst.msk [vmem:[#allocation2 + $0x4] sm:$0xf] %vm630, %v3575
      %v3581 = vld [vmem:[#allocation2 + $0x8] sm:$0x1]
      %v3582 = vsel %vm633, %v3576, %v3581
      %3583 = vst [vmem:[#allocation2 + $0x8] sm:$0x1] %v3582
      %v3584 = vld [vmem:[%s753] sm:$0xf]
      %v3585 = vld [vmem:[%s753 + $0x4] sm:$0xf]
      %v3586 = vld [vmem:[%s753 + $0x8] sm:$0x1]
      %v3587 = vld [vmem:[%s757] sm:$0xf]
      %v3588 = vsel %vm626, %v3584, %v3587
      %3589 = vst [vmem:[%s757] sm:$0xf] %v3588
      %3590 = vst.msk [vmem:[%s757 + $0x4] sm:$0xf] %vm630, %v3585
      %v3591 = vld [vmem:[%s757 + $0x8] sm:$0x1]
      %v3592 = vsel %vm633, %v3586, %v3591
      %3593 = vst [vmem:[%s757 + $0x8] sm:$0x1] %v3592
      %v3594 = vld [vmem:[#allocation2] sm:$0x2]
      %v3595 = vld [vmem:[#allocation2 + $0xc] sm:$0x2]
      %v3596 = vld [vmem:[#allocation2 + $0x18] sm:$0x2]
      %v3597 = vld [vmem:[#allocation2 + $0x24] sm:$0x2]
      %v3598 = vld [vmem:[#allocation2 + $0x30] sm:$0x2]
      %v3599 = vld [vmem:[#allocation2 + $0x3c] sm:$0x2]
      %v3600 = vld [vmem:[#allocation2 + $0x48] sm:$0x2]
      %v3601 = vld [vmem:[#allocation2 + $0x54] sm:$0x2]
      %v3602 = vld [vmem:[#allocation2 + $0x60] sm:$0x2]
      %v3603 = vld [vmem:[#allocation2 + $0x6c] sm:$0x2]
      %v3604 = vld [vmem:[#allocation2 + $0x78] sm:$0x2]
      %v3605 = vld [vmem:[#allocation2 + $0x84] sm:$0x2]
      %v3606 = vld [vmem:[#allocation2 + $0x90] sm:$0x2]
      %v3607 = vld [vmem:[#allocation2 + $0x9c] sm:$0x2]
      %v3608 = vld [vmem:[#allocation2 + $0xa8] sm:$0x2]
      %v3609 = vld [vmem:[#allocation2 + $0xb4] sm:$0x2]
      %v3610 = vld [vmem:[#allocation2 + $0xc0] sm:$0x2]
      %v3611 = vld [vmem:[#allocation2 + $0xcc] sm:$0x2]
      %v3630 = vrot.slane %v3594, 5
      %v3631 = vrot.slane %v3630, 4
      %v3632 = vrot.slane %v3595, 5
      %v3633 = vrot.slane %v3632, 4
      %v3634 = vrot.slane %v3596, 5
      %v3635 = vrot.slane %v3634, 4
      %v3636 = vrot.slane %v3597, 5
      %v3637 = vrot.slane %v3636, 4
      %v3638 = vrot.slane %v3598, 5
      %v3639 = vrot.slane %v3638, 4
      %v3640 = vrot.slane %v3599, 5
      %v3641 = vrot.slane %v3640, 4
      %v3642 = vrot.slane %v3600, 5
      %v3643 = vrot.slane %v3642, 4
      %v3644 = vrot.slane %v3601, 5
      %v3645 = vrot.slane %v3644, 4
      %v3646 = vrot.slane %v3602, 5
      %v3647 = vrot.slane %v3646, 4
      %v3648 = vrot.slane %v3603, 5
      %v3649 = vrot.slane %v3648, 4
      %v3650 = vrot.slane %v3604, 5
      %v3651 = vrot.slane %v3650, 4
      %v3652 = vrot.slane %v3605, 5
      %v3653 = vrot.slane %v3652, 4
      %v3654 = vrot.slane %v3606, 5
      %v3655 = vrot.slane %v3654, 4
      %v3656 = vrot.slane %v3607, 5
      %v3657 = vrot.slane %v3656, 4
      %v3658 = vrot.slane %v3608, 5
      %v3659 = vrot.slane %v3658, 4
      %v3660 = vrot.slane %v3609, 5
      %v3661 = vrot.slane %v3660, 4
      %v3662 = vrot.slane %v3610, 5
      %v3663 = vrot.slane %v3662, 4
      %v3664 = vrot.slane %v3611, 5
      %v3665 = vrot.slane %v3664, 4
      %v3684 = vld [vmem:[#allocation2] sm:$0x1]
      %v3685 = vsel %vm633, %v3631, %v3684
      %3686 = vst [vmem:[#allocation2] sm:$0x1] %v3685
      %v3687 = vld [vmem:[#allocation2 + $0xc] sm:$0x1]
      %v3688 = vsel %vm633, %v3633, %v3687
      %3689 = vst [vmem:[#allocation2 + $0xc] sm:$0x1] %v3688
      %v3690 = vld [vmem:[#allocation2 + $0x18] sm:$0x1]
      %v3691 = vsel %vm633, %v3635, %v3690
      %3692 = vst [vmem:[#allocation2 + $0x18] sm:$0x1] %v3691
      %v3693 = vld [vmem:[#allocation2 + $0x24] sm:$0x1]
      %v3694 = vsel %vm633, %v3637, %v3693
      %3695 = vst [vmem:[#allocation2 + $0x24] sm:$0x1] %v3694
      %v3696 = vld [vmem:[#allocation2 + $0x30] sm:$0x1]
      %v3697 = vsel %vm633, %v3639, %v3696
      %3698 = vst [vmem:[#allocation2 + $0x30] sm:$0x1] %v3697
      %v3699 = vld [vmem:[#allocation2 + $0x3c] sm:$0x1]
      %v3700 = vsel %vm633, %v3641, %v3699
      %3701 = vst [vmem:[#allocation2 + $0x3c] sm:$0x1] %v3700
      %v3702 = vld [vmem:[#allocation2 + $0x48] sm:$0x1]
      %v3703 = vsel %vm633, %v3643, %v3702
      %3704 = vst [vmem:[#allocation2 + $0x48] sm:$0x1] %v3703
      %v3705 = vld [vmem:[#allocation2 + $0x54] sm:$0x1]
      %v3706 = vsel %vm633, %v3645, %v3705
      %3707 = vst [vmem:[#allocation2 + $0x54] sm:$0x1] %v3706
      %v3708 = vld [vmem:[#allocation2 + $0x60] sm:$0x1]
      %v3709 = vsel %vm633, %v3647, %v3708
      %3710 = vst [vmem:[#allocation2 + $0x60] sm:$0x1] %v3709
      %v3711 = vld [vmem:[#allocation2 + $0x6c] sm:$0x1]
      %v3712 = vsel %vm633, %v3649, %v3711
      %3713 = vst [vmem:[#allocation2 + $0x6c] sm:$0x1] %v3712
      %v3714 = vld [vmem:[#allocation2 + $0x78] sm:$0x1]
      %v3715 = vsel %vm633, %v3651, %v3714
      %3716 = vst [vmem:[#allocation2 + $0x78] sm:$0x1] %v3715
      %v3717 = vld [vmem:[#allocation2 + $0x84] sm:$0x1]
      %v3718 = vsel %vm633, %v3653, %v3717
      %3719 = vst [vmem:[#allocation2 + $0x84] sm:$0x1] %v3718
      %v3720 = vld [vmem:[#allocation2 + $0x90] sm:$0x1]
      %v3721 = vsel %vm633, %v3655, %v3720
      %3722 = vst [vmem:[#allocation2 + $0x90] sm:$0x1] %v3721
      %v3723 = vld [vmem:[#allocation2 + $0x9c] sm:$0x1]
      %v3724 = vsel %vm633, %v3657, %v3723
      %3725 = vst [vmem:[#allocation2 + $0x9c] sm:$0x1] %v3724
      %v3726 = vld [vmem:[#allocation2 + $0xa8] sm:$0x1]
      %v3727 = vsel %vm633, %v3659, %v3726
      %3728 = vst [vmem:[#allocation2 + $0xa8] sm:$0x1] %v3727
      %v3729 = vld [vmem:[#allocation2 + $0xb4] sm:$0x1]
      %v3730 = vsel %vm633, %v3661, %v3729
      %3731 = vst [vmem:[#allocation2 + $0xb4] sm:$0x1] %v3730
      %v3732 = vld [vmem:[#allocation2 + $0xc0] sm:$0x1]
      %v3733 = vsel %vm633, %v3663, %v3732
      %3734 = vst [vmem:[#allocation2 + $0xc0] sm:$0x1] %v3733
      %v3735 = vld [vmem:[#allocation2 + $0xcc] sm:$0x1]
      %v3736 = vsel %vm633, %v3665, %v3735
      %3737 = vst [vmem:[#allocation2 + $0xcc] sm:$0x1] %v3736
      %v3738 = vld [vmem:[#allocation2 + $0x4] sm:$0x8]
      %v3739 = vld [vmem:[#allocation2 + $0x10] sm:$0x8]
      %v3740 = vld [vmem:[#allocation2 + $0x1c] sm:$0x8]
      %v3741 = vld [vmem:[#allocation2 + $0x28] sm:$0x8]
      %v3742 = vld [vmem:[#allocation2 + $0x34] sm:$0x8]
      %v3743 = vld [vmem:[#allocation2 + $0x40] sm:$0x8]
      %v3744 = vld [vmem:[#allocation2 + $0x4c] sm:$0x8]
      %v3745 = vld [vmem:[#allocation2 + $0x58] sm:$0x8]
      %v3746 = vld [vmem:[#allocation2 + $0x64] sm:$0x8]
      %v3747 = vld [vmem:[#allocation2 + $0x70] sm:$0x8]
      %v3748 = vld [vmem:[#allocation2 + $0x7c] sm:$0x8]
      %v3749 = vld [vmem:[#allocation2 + $0x88] sm:$0x8]
      %v3750 = vld [vmem:[#allocation2 + $0x94] sm:$0x8]
      %v3751 = vld [vmem:[#allocation2 + $0xa0] sm:$0x8]
      %v3752 = vld [vmem:[#allocation2 + $0xac] sm:$0x8]
      %v3753 = vld [vmem:[#allocation2 + $0xb8] sm:$0x8]
      %v3754 = vld [vmem:[#allocation2 + $0xc4] sm:$0x8]
      %v3755 = vld [vmem:[#allocation2 + $0xd0] sm:$0x8]
      %v3774 = vrot.slane %v3738, 7
      %v3775 = vrot.slane %v3774, 4
      %v3776 = vrot.slane %v3739, 7
      %v3777 = vrot.slane %v3776, 4
      %v3778 = vrot.slane %v3740, 7
      %v3779 = vrot.slane %v3778, 4
      %v3780 = vrot.slane %v3741, 7
      %v3781 = vrot.slane %v3780, 4
      %v3782 = vrot.slane %v3742, 7
      %v3783 = vrot.slane %v3782, 4
      %v3784 = vrot.slane %v3743, 7
      %v3785 = vrot.slane %v3784, 4
      %v3786 = vrot.slane %v3744, 7
      %v3787 = vrot.slane %v3786, 4
      %v3788 = vrot.slane %v3745, 7
      %v3789 = vrot.slane %v3788, 4
      %v3790 = vrot.slane %v3746, 7
      %v3791 = vrot.slane %v3790, 4
      %v3792 = vrot.slane %v3747, 7
      %v3793 = vrot.slane %v3792, 4
      %v3794 = vrot.slane %v3748, 7
      %v3795 = vrot.slane %v3794, 4
      %v3796 = vrot.slane %v3749, 7
      %v3797 = vrot.slane %v3796, 4
      %v3798 = vrot.slane %v3750, 7
      %v3799 = vrot.slane %v3798, 4
      %v3800 = vrot.slane %v3751, 7
      %v3801 = vrot.slane %v3800, 4
      %v3802 = vrot.slane %v3752, 7
      %v3803 = vrot.slane %v3802, 4
      %v3804 = vrot.slane %v3753, 7
      %v3805 = vrot.slane %v3804, 4
      %v3806 = vrot.slane %v3754, 7
      %v3807 = vrot.slane %v3806, 4
      %v3808 = vrot.slane %v3755, 7
      %v3809 = vrot.slane %v3808, 4
      %v3828 = vld [vmem:[#allocation2 + $0x8] sm:$0x1]
      %v3829 = vsel %vm999, %v3775, %v3828
      %3830 = vst [vmem:[#allocation2 + $0x8] sm:$0x1] %v3829
      %v3831 = vld [vmem:[#allocation2 + $0x14] sm:$0x1]
      %v3832 = vsel %vm999, %v3777, %v3831
      %3833 = vst [vmem:[#allocation2 + $0x14] sm:$0x1] %v3832
      %v3834 = vld [vmem:[#allocation2 + $0x20] sm:$0x1]
      %v3835 = vsel %vm999, %v3779, %v3834
      %3836 = vst [vmem:[#allocation2 + $0x20] sm:$0x1] %v3835
      %v3837 = vld [vmem:[#allocation2 + $0x2c] sm:$0x1]
      %v3838 = vsel %vm999, %v3781, %v3837
      %3839 = vst [vmem:[#allocation2 + $0x2c] sm:$0x1] %v3838
      %v3840 = vld [vmem:[#allocation2 + $0x38] sm:$0x1]
      %v3841 = vsel %vm999, %v3783, %v3840
      %3842 = vst [vmem:[#allocation2 + $0x38] sm:$0x1] %v3841
      %v3843 = vld [vmem:[#allocation2 + $0x44] sm:$0x1]
      %v3844 = vsel %vm999, %v3785, %v3843
      %3845 = vst [vmem:[#allocation2 + $0x44] sm:$0x1] %v3844
      %v3846 = vld [vmem:[#allocation2 + $0x50] sm:$0x1]
      %v3847 = vsel %vm999, %v3787, %v3846
      %3848 = vst [vmem:[#allocation2 + $0x50] sm:$0x1] %v3847
      %v3849 = vld [vmem:[#allocation2 + $0x5c] sm:$0x1]
      %v3850 = vsel %vm999, %v3789, %v3849
      %3851 = vst [vmem:[#allocation2 + $0x5c] sm:$0x1] %v3850
      %v3852 = vld [vmem:[#allocation2 + $0x68] sm:$0x1]
      %v3853 = vsel %vm999, %v3791, %v3852
      %3854 = vst [vmem:[#allocation2 + $0x68] sm:$0x1] %v3853
      %v3855 = vld [vmem:[#allocation2 + $0x74] sm:$0x1]
      %v3856 = vsel %vm999, %v3793, %v3855
      %3857 = vst [vmem:[#allocation2 + $0x74] sm:$0x1] %v3856
      %v3858 = vld [vmem:[#allocation2 + $0x80] sm:$0x1]
      %v3859 = vsel %vm999, %v3795, %v3858
      %3860 = vst [vmem:[#allocation2 + $0x80] sm:$0x1] %v3859
      %v3861 = vld [vmem:[#allocation2 + $0x8c] sm:$0x1]
      %v3862 = vsel %vm999, %v3797, %v3861
      %3863 = vst [vmem:[#allocation2 + $0x8c] sm:$0x1] %v3862
      %v3864 = vld [vmem:[#allocation2 + $0x98] sm:$0x1]
      %v3865 = vsel %vm999, %v3799, %v3864
      %3866 = vst [vmem:[#allocation2 + $0x98] sm:$0x1] %v3865
      %v3867 = vld [vmem:[#allocation2 + $0xa4] sm:$0x1]
      %v3868 = vsel %vm999, %v3801, %v3867
      %3869 = vst [vmem:[#allocation2 + $0xa4] sm:$0x1] %v3868
      %v3870 = vld [vmem:[#allocation2 + $0xb0] sm:$0x1]
      %v3871 = vsel %vm999, %v3803, %v3870
      %3872 = vst [vmem:[#allocation2 + $0xb0] sm:$0x1] %v3871
      %v3873 = vld [vmem:[#allocation2 + $0xbc] sm:$0x1]
      %v3874 = vsel %vm999, %v3805, %v3873
      %3875 = vst [vmem:[#allocation2 + $0xbc] sm:$0x1] %v3874
      %v3876 = vld [vmem:[#allocation2 + $0xc8] sm:$0x1]
      %v3877 = vsel %vm999, %v3807, %v3876
      %3878 = vst [vmem:[#allocation2 + $0xc8] sm:$0x1] %v3877
      %v3879 = vld [vmem:[#allocation2 + $0xd4] sm:$0x1]
      %v3880 = vsel %vm999, %v3809, %v3879
      %3881 = vst [vmem:[#allocation2 + $0xd4] sm:$0x1] %v3880
      %v3882 = vld [vmem:[#allocation2] sm:$0xf]
      %v3883 = vld [vmem:[#allocation2 + $0x4] sm:$0xf]
      %v3884 = vld [vmem:[#allocation2 + $0xc] sm:$0xf]
      %v3885 = vld [vmem:[#allocation2 + $0x10] sm:$0xf]
      %v3886 = vld [vmem:[#allocation2 + $0x18] sm:$0xf]
      %v3887 = vld [vmem:[#allocation2 + $0x1c] sm:$0xf]
      %v3888 = vld [vmem:[#allocation2 + $0x24] sm:$0xf]
      %v3889 = vld [vmem:[#allocation2 + $0x28] sm:$0xf]
      %v3890 = vld [vmem:[#allocation2 + $0x30] sm:$0xf]
      %v3891 = vld [vmem:[#allocation2 + $0x34] sm:$0xf]
      %v3892 = vld [vmem:[#allocation2 + $0x3c] sm:$0xf]
      %v3893 = vld [vmem:[#allocation2 + $0x40] sm:$0xf]
      %v3894 = vld [vmem:[#allocation2 + $0x48] sm:$0xf]
      %v3895 = vld [vmem:[#allocation2 + $0x4c] sm:$0xf]
      %v3896 = vld [vmem:[#allocation2 + $0x54] sm:$0xf]
      %v3897 = vld [vmem:[#allocation2 + $0x58] sm:$0xf]
      %v3898 = vld [vmem:[#allocation2 + $0x60] sm:$0xf]
      %v3899 = vld [vmem:[#allocation2 + $0x64] sm:$0xf]
      %v3900 = vld [vmem:[#allocation2 + $0x6c] sm:$0xf]
      %v3901 = vld [vmem:[#allocation2 + $0x70] sm:$0xf]
      %v3902 = vld [vmem:[#allocation2 + $0x78] sm:$0xf]
      %v3903 = vld [vmem:[#allocation2 + $0x7c] sm:$0xf]
      %v3904 = vld [vmem:[#allocation2 + $0x84] sm:$0xf]
      %v3905 = vld [vmem:[#allocation2 + $0x88] sm:$0xf]
      %v3906 = vld [vmem:[#allocation2 + $0x90] sm:$0xf]
      %v3907 = vld [vmem:[#allocation2 + $0x94] sm:$0xf]
      %v3908 = vld [vmem:[#allocation2 + $0x9c] sm:$0xf]
      %v3909 = vld [vmem:[#allocation2 + $0xa0] sm:$0xf]
      %v3910 = vld [vmem:[#allocation2 + $0xa8] sm:$0xf]
      %v3911 = vld [vmem:[#allocation2 + $0xac] sm:$0xf]
      %v3912 = vld [vmem:[#allocation2 + $0xb4] sm:$0xf]
      %v3913 = vld [vmem:[#allocation2 + $0xb8] sm:$0xf]
      %v3914 = vld [vmem:[#allocation2 + $0xc0] sm:$0xf]
      %v3915 = vld [vmem:[#allocation2 + $0xc4] sm:$0xf]
      %v3916 = vld [vmem:[#allocation2 + $0xcc] sm:$0xf]
      %v3917 = vld [vmem:[#allocation2 + $0xd0] sm:$0xf]
      %v3954 = vunpack.c.l.b16 %v3882
      %v3955 = vunpack.c.l.b16 %v3883
      %v3956 = vunpack.c.l.b16 %v3884
      %v3957 = vunpack.c.l.b16 %v3885
      %v3958 = vunpack.c.l.b16 %v3886
      %v3959 = vunpack.c.l.b16 %v3887
      %v3960 = vunpack.c.l.b16 %v3888
      %v3961 = vunpack.c.l.b16 %v3889
      %v3962 = vunpack.c.l.b16 %v3890
      %v3963 = vunpack.c.l.b16 %v3891
      %v3964 = vunpack.c.l.b16 %v3892
      %v3965 = vunpack.c.l.b16 %v3893
      %v3966 = vunpack.c.l.b16 %v3894
      %v3967 = vunpack.c.l.b16 %v3895
      %v3968 = vunpack.c.l.b16 %v3896
      %v3969 = vunpack.c.l.b16 %v3897
      %v3970 = vunpack.c.l.b16 %v3898
      %v3971 = vunpack.c.l.b16 %v3899
      %v3972 = vunpack.c.l.b16 %v3900
      %v3973 = vunpack.c.l.b16 %v3901
      %v3974 = vunpack.c.l.b16 %v3902
      %v3975 = vunpack.c.l.b16 %v3903
      %v3976 = vunpack.c.l.b16 %v3904
      %v3977 = vunpack.c.l.b16 %v3905
      %v3978 = vunpack.c.l.b16 %v3906
      %v3979 = vunpack.c.l.b16 %v3907
      %v3980 = vunpack.c.l.b16 %v3908
      %v3981 = vunpack.c.l.b16 %v3909
      %v3982 = vunpack.c.l.b16 %v3910
      %v3983 = vunpack.c.l.b16 %v3911
      %v3984 = vunpack.c.l.b16 %v3912
      %v3985 = vunpack.c.l.b16 %v3913
      %v3986 = vunpack.c.l.b16 %v3914
      %v3987 = vunpack.c.l.b16 %v3915
      %v3988 = vunpack.c.l.b16 %v3916
      %v3989 = vunpack.c.l.b16 %v3917
      %v3990 = vpack.c.b16 %v3955, %v3954
      %v3991 = vpack.c.b16 %v3957, %v3956
      %v3992 = vpack.c.b16 %v3959, %v3958
      %v3993 = vpack.c.b16 %v3961, %v3960
      %v3994 = vpack.c.b16 %v3963, %v3962
      %v3995 = vpack.c.b16 %v3965, %v3964
      %v3996 = vpack.c.b16 %v3967, %v3966
      %v3997 = vpack.c.b16 %v3969, %v3968
      %v3998 = vpack.c.b16 %v3971, %v3970
      %v3999 = vpack.c.b16 %v3973, %v3972
      %v4000 = vpack.c.b16 %v3975, %v3974
      %v4001 = vpack.c.b16 %v3977, %v3976
      %v4002 = vpack.c.b16 %v3979, %v3978
      %v4003 = vpack.c.b16 %v3981, %v3980
      %v4004 = vpack.c.b16 %v3983, %v3982
      %v4005 = vpack.c.b16 %v3985, %v3984
      %v4006 = vpack.c.b16 %v3987, %v3986
      %v4007 = vpack.c.b16 %v3989, %v3988
      %4026 = vst.msk [vmem:[#allocation3] sm:$0xff] %vm1198, %v3990
      %4027 = vst.msk [vmem:[#allocation3 + $0x8] sm:$0xff] %vm1198, %v3991
      %4028 = vst.msk [vmem:[#allocation3 + $0x10] sm:$0xff] %vm1198, %v3992
      %4029 = vst.msk [vmem:[#allocation3 + $0x18] sm:$0xff] %vm1198, %v3993
      %4030 = vst.msk [vmem:[#allocation3 + $0x20] sm:$0xff] %vm1198, %v3994
      %4031 = vst.msk [vmem:[#allocation3 + $0x28] sm:$0xff] %vm1198, %v3995
      %4032 = vst.msk [vmem:[#allocation3 + $0x30] sm:$0xff] %vm1198, %v3996
      %4033 = vst.msk [vmem:[#allocation3 + $0x38] sm:$0xff] %vm1198, %v3997
      %4034 = vst.msk [vmem:[#allocation3 + $0x40] sm:$0xff] %vm1198, %v3998
      %4035 = vst.msk [vmem:[#allocation3 + $0x48] sm:$0xff] %vm1198, %v3999
      %4036 = vst.msk [vmem:[#allocation3 + $0x50] sm:$0xff] %vm1198, %v4000
      %4037 = vst.msk [vmem:[#allocation3 + $0x58] sm:$0xff] %vm1198, %v4001
      %4038 = vst.msk [vmem:[#allocation3 + $0x60] sm:$0xff] %vm1198, %v4002
      %4039 = vst.msk [vmem:[#allocation3 + $0x68] sm:$0xff] %vm1198, %v4003
      %4040 = vst.msk [vmem:[#allocation3 + $0x70] sm:$0xff] %vm1198, %v4004
      %4041 = vst.msk [vmem:[#allocation3 + $0x78] sm:$0xff] %vm1198, %v4005
      %4042 = vst.msk [vmem:[#allocation3 + $0x80] sm:$0xff] %vm1198, %v4006
      %4043 = vst.msk [vmem:[#allocation3 + $0x88] sm:$0xff] %vm1198, %v4007
      %v4044 = vld [vmem:[#allocation2] sm:$0xf]
      %v4045 = vld [vmem:[#allocation2 + $0x4] sm:$0xf]
      %v4046 = vld [vmem:[#allocation2 + $0x8] sm:$0x1]
      %v4047 = vld [vmem:[#allocation2 + $0xc] sm:$0xf]
      %v4048 = vld [vmem:[#allocation2 + $0x10] sm:$0xf]
      %v4049 = vld [vmem:[#allocation2 + $0x14] sm:$0x1]
      %v4050 = vld [vmem:[#allocation2 + $0x18] sm:$0xf]
      %v4051 = vld [vmem:[#allocation2 + $0x1c] sm:$0xf]
      %v4052 = vld [vmem:[#allocation2 + $0x20] sm:$0x1]
      %v4053 = vld [vmem:[#allocation2 + $0x24] sm:$0xf]
      %v4054 = vld [vmem:[#allocation2 + $0x28] sm:$0xf]
      %v4055 = vld [vmem:[#allocation2 + $0x2c] sm:$0x1]
      %v4056 = vld [vmem:[#allocation2 + $0x30] sm:$0xf]
      %v4057 = vld [vmem:[#allocation2 + $0x34] sm:$0xf]
      %v4058 = vld [vmem:[#allocation2 + $0x38] sm:$0x1]
      %v4059 = vld [vmem:[#allocation2 + $0x3c] sm:$0xf]
      %v4060 = vld [vmem:[#allocation2 + $0x40] sm:$0xf]
      %v4061 = vld [vmem:[#allocation2 + $0x44] sm:$0x1]
      %v4062 = vld [vmem:[#allocation2 + $0x48] sm:$0xf]
      %v4063 = vld [vmem:[#allocation2 + $0x4c] sm:$0xf]
      %v4064 = vld [vmem:[#allocation2 + $0x50] sm:$0x1]
      %v4065 = vld [vmem:[#allocation2 + $0x54] sm:$0xf]
      %v4066 = vld [vmem:[#allocation2 + $0x58] sm:$0xf]
      %v4067 = vld [vmem:[#allocation2 + $0x5c] sm:$0x1]
      %v4068 = vld [vmem:[#allocation2 + $0x60] sm:$0xf]
      %v4069 = vld [vmem:[#allocation2 + $0x64] sm:$0xf]
      %v4070 = vld [vmem:[#allocation2 + $0x68] sm:$0x1]
      %v4071 = vld [vmem:[#allocation2 + $0x6c] sm:$0xf]
      %v4072 = vld [vmem:[#allocation2 + $0x70] sm:$0xf]
      %v4073 = vld [vmem:[#allocation2 + $0x74] sm:$0x1]
      %v4074 = vld [vmem:[#allocation2 + $0x78] sm:$0xf]
      %v4075 = vld [vmem:[#allocation2 + $0x7c] sm:$0xf]
      %v4076 = vld [vmem:[#allocation2 + $0x80] sm:$0x1]
      %v4077 = vld [vmem:[#allocation2 + $0x84] sm:$0xf]
      %v4078 = vld [vmem:[#allocation2 + $0x88] sm:$0xf]
      %v4079 = vld [vmem:[#allocation2 + $0x8c] sm:$0x1]
      %v4080 = vld [vmem:[#allocation2 + $0x90] sm:$0xf]
      %v4081 = vld [vmem:[#allocation2 + $0x94] sm:$0xf]
      %v4082 = vld [vmem:[#allocation2 + $0x98] sm:$0x1]
      %v4083 = vld [vmem:[#allocation2 + $0x9c] sm:$0xf]
      %v4084 = vld [vmem:[#allocation2 + $0xa0] sm:$0xf]
      %v4085 = vld [vmem:[#allocation2 + $0xa4] sm:$0x1]
      %v4086 = vld [vmem:[#allocation2 + $0xa8] sm:$0xf]
      %v4087 = vld [vmem:[#allocation2 + $0xac] sm:$0xf]
      %v4088 = vld [vmem:[#allocation2 + $0xb0] sm:$0x1]
      %v4089 = vld [vmem:[#allocation2 + $0xb4] sm:$0xf]
      %v4090 = vld [vmem:[#allocation2 + $0xb8] sm:$0xf]
      %v4091 = vld [vmem:[#allocation2 + $0xbc] sm:$0x1]
      %v4092 = vld [vmem:[#allocation2 + $0xc0] sm:$0xf]
      %v4093 = vld [vmem:[#allocation2 + $0xc4] sm:$0xf]
      %v4094 = vld [vmem:[#allocation2 + $0xc8] sm:$0x1]
      %v4095 = vld [vmem:[#allocation2 + $0xcc] sm:$0xf]
      %v4096 = vld [vmem:[#allocation2 + $0xd0] sm:$0xf]
      %v4097 = vld [vmem:[#allocation2 + $0xd4] sm:$0x1]
      %v4152 = vunpack.c.l.b16 %v4044
      %v4153 = vunpack.c.l.b16 %v4045
      %v4154 = vunpack.c.l.b16 %v4046
      %v4155 = vunpack.c.l.b16 %v4047
      %v4156 = vunpack.c.l.b16 %v4048
      %v4157 = vunpack.c.l.b16 %v4049
      %v4158 = vunpack.c.l.b16 %v4050
      %v4159 = vunpack.c.l.b16 %v4051
      %v4160 = vunpack.c.l.b16 %v4052
      %v4161 = vunpack.c.l.b16 %v4053
      %v4162 = vunpack.c.l.b16 %v4054
      %v4163 = vunpack.c.l.b16 %v4055
      %v4164 = vunpack.c.l.b16 %v4056
      %v4165 = vunpack.c.l.b16 %v4057
      %v4166 = vunpack.c.l.b16 %v4058
      %v4167 = vunpack.c.l.b16 %v4059
      %v4168 = vunpack.c.l.b16 %v4060
      %v4169 = vunpack.c.l.b16 %v4061
      %v4170 = vunpack.c.l.b16 %v4062
      %v4171 = vunpack.c.l.b16 %v4063
      %v4172 = vunpack.c.l.b16 %v4064
      %v4173 = vunpack.c.l.b16 %v4065
      %v4174 = vunpack.c.l.b16 %v4066
      %v4175 = vunpack.c.l.b16 %v4067
      %v4176 = vunpack.c.l.b16 %v4068
      %v4177 = vunpack.c.l.b16 %v4069
      %v4178 = vunpack.c.l.b16 %v4070
      %v4179 = vunpack.c.l.b16 %v4071
      %v4180 = vunpack.c.l.b16 %v4072
      %v4181 = vunpack.c.l.b16 %v4073
      %v4182 = vunpack.c.l.b16 %v4074
      %v4183 = vunpack.c.l.b16 %v4075
      %v4184 = vunpack.c.l.b16 %v4076
      %v4185 = vunpack.c.l.b16 %v4077
      %v4186 = vunpack.c.l.b16 %v4078
      %v4187 = vunpack.c.l.b16 %v4079
      %v4188 = vunpack.c.l.b16 %v4080
      %v4189 = vunpack.c.l.b16 %v4081
      %v4190 = vunpack.c.l.b16 %v4082
      %v4191 = vunpack.c.l.b16 %v4083
      %v4192 = vunpack.c.l.b16 %v4084
      %v4193 = vunpack.c.l.b16 %v4085
      %v4194 = vunpack.c.l.b16 %v4086
      %v4195 = vunpack.c.l.b16 %v4087
      %v4196 = vunpack.c.l.b16 %v4088
      %v4197 = vunpack.c.l.b16 %v4089
      %v4198 = vunpack.c.l.b16 %v4090
      %v4199 = vunpack.c.l.b16 %v4091
      %v4200 = vunpack.c.l.b16 %v4092
      %v4201 = vunpack.c.l.b16 %v4093
      %v4202 = vunpack.c.l.b16 %v4094
      %v4203 = vunpack.c.l.b16 %v4095
      %v4204 = vunpack.c.l.b16 %v4096
      %v4205 = vunpack.c.l.b16 %v4097
      %v4206 = vpack.c.b16 %v4153, %v4152
      %v4207 = vpack.c.b16 %v4154, %v4154
      %v4208 = vpack.c.b16 %v4156, %v4155
      %v4209 = vpack.c.b16 %v4157, %v4157
      %v4210 = vpack.c.b16 %v4159, %v4158
      %v4211 = vpack.c.b16 %v4160, %v4160
      %v4212 = vpack.c.b16 %v4162, %v4161
      %v4213 = vpack.c.b16 %v4163, %v4163
      %v4214 = vpack.c.b16 %v4165, %v4164
      %v4215 = vpack.c.b16 %v4166, %v4166
      %v4216 = vpack.c.b16 %v4168, %v4167
      %v4217 = vpack.c.b16 %v4169, %v4169
      %v4218 = vpack.c.b16 %v4171, %v4170
      %v4219 = vpack.c.b16 %v4172, %v4172
      %v4220 = vpack.c.b16 %v4174, %v4173
      %v4221 = vpack.c.b16 %v4175, %v4175
      %v4222 = vpack.c.b16 %v4177, %v4176
      %v4223 = vpack.c.b16 %v4178, %v4178
      %v4224 = vpack.c.b16 %v4180, %v4179
      %v4225 = vpack.c.b16 %v4181, %v4181
      %v4226 = vpack.c.b16 %v4183, %v4182
      %v4227 = vpack.c.b16 %v4184, %v4184
      %v4228 = vpack.c.b16 %v4186, %v4185
      %v4229 = vpack.c.b16 %v4187, %v4187
      %v4230 = vpack.c.b16 %v4189, %v4188
      %v4231 = vpack.c.b16 %v4190, %v4190
      %v4232 = vpack.c.b16 %v4192, %v4191
      %v4233 = vpack.c.b16 %v4193, %v4193
      %v4234 = vpack.c.b16 %v4195, %v4194
      %v4235 = vpack.c.b16 %v4196, %v4196
      %v4236 = vpack.c.b16 %v4198, %v4197
      %v4237 = vpack.c.b16 %v4199, %v4199
      %v4238 = vpack.c.b16 %v4201, %v4200
      %v4239 = vpack.c.b16 %v4202, %v4202
      %v4240 = vpack.c.b16 %v4204, %v4203
      %v4241 = vpack.c.b16 %v4205, %v4205
      %v4243 = vshrl.u32 %v4206, 16
      %v4245 = vshll.u32 %v4206, 16
      %v4247 = vrot.slane %v4245, 1
      %v4248 = vor.u32 %v4243, %v4247
      %v4250 = vshll.u32 %v4207, 16
      %v4252 = vrot.slane %v4250, 1
      %v4253 = vsel %vm1415, %v4248, %v4252
      %v4255 = vshrl.u32 %v4208, 16
      %v4257 = vshll.u32 %v4208, 16
      %v4259 = vrot.slane %v4257, 1
      %v4260 = vor.u32 %v4255, %v4259
      %v4262 = vshll.u32 %v4209, 16
      %v4264 = vrot.slane %v4262, 1
      %v4265 = vsel %vm1415, %v4260, %v4264
      %v4267 = vshrl.u32 %v4210, 16
      %v4269 = vshll.u32 %v4210, 16
      %v4271 = vrot.slane %v4269, 1
      %v4272 = vor.u32 %v4267, %v4271
      %v4274 = vshll.u32 %v4211, 16
      %v4276 = vrot.slane %v4274, 1
      %v4277 = vsel %vm1415, %v4272, %v4276
      %v4279 = vshrl.u32 %v4212, 16
      %v4281 = vshll.u32 %v4212, 16
      %v4283 = vrot.slane %v4281, 1
      %v4284 = vor.u32 %v4279, %v4283
      %v4286 = vshll.u32 %v4213, 16
      %v4288 = vrot.slane %v4286, 1
      %v4289 = vsel %vm1415, %v4284, %v4288
      %v4291 = vshrl.u32 %v4214, 16
      %v4293 = vshll.u32 %v4214, 16
      %v4295 = vrot.slane %v4293, 1
      %v4296 = vor.u32 %v4291, %v4295
      %v4298 = vshll.u32 %v4215, 16
      %v4300 = vrot.slane %v4298, 1
      %v4301 = vsel %vm1415, %v4296, %v4300
      %v4303 = vshrl.u32 %v4216, 16
      %v4305 = vshll.u32 %v4216, 16
      %v4307 = vrot.slane %v4305, 1
      %v4308 = vor.u32 %v4303, %v4307
      %v4310 = vshll.u32 %v4217, 16
      %v4312 = vrot.slane %v4310, 1
      %v4313 = vsel %vm1415, %v4308, %v4312
      %v4315 = vshrl.u32 %v4218, 16
      %v4317 = vshll.u32 %v4218, 16
      %v4319 = vrot.slane %v4317, 1
      %v4320 = vor.u32 %v4315, %v4319
      %v4322 = vshll.u32 %v4219, 16
      %v4324 = vrot.slane %v4322, 1
      %v4325 = vsel %vm1415, %v4320, %v4324
      %v4327 = vshrl.u32 %v4220, 16
      %v4329 = vshll.u32 %v4220, 16
      %v4331 = vrot.slane %v4329, 1
      %v4332 = vor.u32 %v4327, %v4331
      %v4334 = vshll.u32 %v4221, 16
      %v4336 = vrot.slane %v4334, 1
      %v4337 = vsel %vm1415, %v4332, %v4336
      %v4339 = vshrl.u32 %v4222, 16
      %v4341 = vshll.u32 %v4222, 16
      %v4343 = vrot.slane %v4341, 1
      %v4344 = vor.u32 %v4339, %v4343
      %v4346 = vshll.u32 %v4223, 16
      %v4348 = vrot.slane %v4346, 1
      %v4349 = vsel %vm1415, %v4344, %v4348
      %v4351 = vshrl.u32 %v4224, 16
      %v4353 = vshll.u32 %v4224, 16
      %v4355 = vrot.slane %v4353, 1
      %v4356 = vor.u32 %v4351, %v4355
      %v4358 = vshll.u32 %v4225, 16
      %v4360 = vrot.slane %v4358, 1
      %v4361 = vsel %vm1415, %v4356, %v4360
      %v4363 = vshrl.u32 %v4226, 16
      %v4365 = vshll.u32 %v4226, 16
      %v4367 = vrot.slane %v4365, 1
      %v4368 = vor.u32 %v4363, %v4367
      %v4370 = vshll.u32 %v4227, 16
      %v4372 = vrot.slane %v4370, 1
      %v4373 = vsel %vm1415, %v4368, %v4372
      %v4375 = vshrl.u32 %v4228, 16
      %v4377 = vshll.u32 %v4228, 16
      %v4379 = vrot.slane %v4377, 1
      %v4380 = vor.u32 %v4375, %v4379
      %v4382 = vshll.u32 %v4229, 16
      %v4384 = vrot.slane %v4382, 1
      %v4385 = vsel %vm1415, %v4380, %v4384
      %v4387 = vshrl.u32 %v4230, 16
      %v4389 = vshll.u32 %v4230, 16
      %v4391 = vrot.slane %v4389, 1
      %v4392 = vor.u32 %v4387, %v4391
      %v4394 = vshll.u32 %v4231, 16
      %v4396 = vrot.slane %v4394, 1
      %v4397 = vsel %vm1415, %v4392, %v4396
      %v4399 = vshrl.u32 %v4232, 16
      %v4401 = vshll.u32 %v4232, 16
      %v4403 = vrot.slane %v4401, 1
      %v4404 = vor.u32 %v4399, %v4403
      %v4406 = vshll.u32 %v4233, 16
      %v4408 = vrot.slane %v4406, 1
      %v4409 = vsel %vm1415, %v4404, %v4408
      %v4411 = vshrl.u32 %v4234, 16
      %v4413 = vshll.u32 %v4234, 16
      %v4415 = vrot.slane %v4413, 1
      %v4416 = vor.u32 %v4411, %v4415
      %v4418 = vshll.u32 %v4235, 16
      %v4420 = vrot.slane %v4418, 1
      %v4421 = vsel %vm1415, %v4416, %v4420
      %v4423 = vshrl.u32 %v4236, 16
      %v4425 = vshll.u32 %v4236, 16
      %v4427 = vrot.slane %v4425, 1
      %v4428 = vor.u32 %v4423, %v4427
      %v4430 = vshll.u32 %v4237, 16
      %v4432 = vrot.slane %v4430, 1
      %v4433 = vsel %vm1415, %v4428, %v4432
      %v4435 = vshrl.u32 %v4238, 16
      %v4437 = vshll.u32 %v4238, 16
      %v4439 = vrot.slane %v4437, 1
      %v4440 = vor.u32 %v4435, %v4439
      %v4442 = vshll.u32 %v4239, 16
      %v4444 = vrot.slane %v4442, 1
      %v4445 = vsel %vm1415, %v4440, %v4444
      %v4447 = vshrl.u32 %v4240, 16
      %v4449 = vshll.u32 %v4240, 16
      %v4451 = vrot.slane %v4449, 1
      %v4452 = vor.u32 %v4447, %v4451
      %v4454 = vshll.u32 %v4241, 16
      %v4456 = vrot.slane %v4454, 1
      %v4457 = vsel %vm1415, %v4452, %v4456
      %4458 = vrot.lane.b32.xlu0 %v4253, 4
      %v4459 = vpop.permute.xlu0 %4458
      %4460 = vrot.lane.b32.xlu0 %v4265, 4
      %v4461 = vpop.permute.xlu0 %4460
      %4462 = vrot.lane.b32.xlu0 %v4277, 4
      %v4463 = vpop.permute.xlu0 %4462
      %4464 = vrot.lane.b32.xlu0 %v4289, 4
      %v4465 = vpop.permute.xlu0 %4464
      %4466 = vrot.lane.b32.xlu0 %v4301, 4
      %v4467 = vpop.permute.xlu0 %4466
      %4468 = vrot.lane.b32.xlu0 %v4313, 4
      %v4469 = vpop.permute.xlu0 %4468
      %4470 = vrot.lane.b32.xlu0 %v4325, 4
      %v4471 = vpop.permute.xlu0 %4470
      %4472 = vrot.lane.b32.xlu0 %v4337, 4
      %v4473 = vpop.permute.xlu0 %4472
      %4474 = vrot.lane.b32.xlu0 %v4349, 4
      %v4475 = vpop.permute.xlu0 %4474
      %4476 = vrot.lane.b32.xlu0 %v4361, 4
      %v4477 = vpop.permute.xlu0 %4476
      %4478 = vrot.lane.b32.xlu0 %v4373, 4
      %v4479 = vpop.permute.xlu0 %4478
      %4480 = vrot.lane.b32.xlu0 %v4385, 4
      %v4481 = vpop.permute.xlu0 %4480
      %4482 = vrot.lane.b32.xlu0 %v4397, 4
      %v4483 = vpop.permute.xlu0 %4482
      %4484 = vrot.lane.b32.xlu0 %v4409, 4
      %v4485 = vpop.permute.xlu0 %4484
      %4486 = vrot.lane.b32.xlu0 %v4421, 4
      %v4487 = vpop.permute.xlu0 %4486
      %4488 = vrot.lane.b32.xlu0 %v4433, 4
      %v4489 = vpop.permute.xlu0 %4488
      %4490 = vrot.lane.b32.xlu0 %v4445, 4
      %v4491 = vpop.permute.xlu0 %4490
      %4492 = vrot.lane.b32.xlu0 %v4457, 4
      %v4493 = vpop.permute.xlu0 %4492
      %4512 = vst.msk [vmem:[#allocation3] sm:$0xff] %vm1686, %v4459
      %4513 = vst.msk [vmem:[#allocation3 + $0x8] sm:$0xff] %vm1686, %v4461
      %4514 = vst.msk [vmem:[#allocation3 + $0x10] sm:$0xff] %vm1686, %v4463
      %4515 = vst.msk [vmem:[#allocation3 + $0x18] sm:$0xff] %vm1686, %v4465
      %4516 = vst.msk [vmem:[#allocation3 + $0x20] sm:$0xff] %vm1686, %v4467
      %4517 = vst.msk [vmem:[#allocation3 + $0x28] sm:$0xff] %vm1686, %v4469
      %4518 = vst.msk [vmem:[#allocation3 + $0x30] sm:$0xff] %vm1686, %v4471
      %4519 = vst.msk [vmem:[#allocation3 + $0x38] sm:$0xff] %vm1686, %v4473
      %4520 = vst.msk [vmem:[#allocation3 + $0x40] sm:$0xff] %vm1686, %v4475
      %4521 = vst.msk [vmem:[#allocation3 + $0x48] sm:$0xff] %vm1686, %v4477
      %4522 = vst.msk [vmem:[#allocation3 + $0x50] sm:$0xff] %vm1686, %v4479
      %4523 = vst.msk [vmem:[#allocation3 + $0x58] sm:$0xff] %vm1686, %v4481
      %4524 = vst.msk [vmem:[#allocation3 + $0x60] sm:$0xff] %vm1686, %v4483
      %4525 = vst.msk [vmem:[#allocation3 + $0x68] sm:$0xff] %vm1686, %v4485
      %4526 = vst.msk [vmem:[#allocation3 + $0x70] sm:$0xff] %vm1686, %v4487
      %4527 = vst.msk [vmem:[#allocation3 + $0x78] sm:$0xff] %vm1686, %v4489
      %4528 = vst.msk [vmem:[#allocation3 + $0x80] sm:$0xff] %vm1686, %v4491
      %4529 = vst.msk [vmem:[#allocation3 + $0x88] sm:$0xff] %vm1686, %v4493
      %v4530 = vld [vmem:[#allocation2] sm:$0xe]
      %v4531 = vld [vmem:[#allocation2 + $0x4] sm:$0xf]
      %v4532 = vld [vmem:[#allocation2 + $0x8] sm:$0x1]
      %v4533 = vld [vmem:[#allocation2 + $0xc] sm:$0xe]
      %v4534 = vld [vmem:[#allocation2 + $0x10] sm:$0xf]
      %v4535 = vld [vmem:[#allocation2 + $0x14] sm:$0x1]
      %v4536 = vld [vmem:[#allocation2 + $0x18] sm:$0xe]
      %v4537 = vld [vmem:[#allocation2 + $0x1c] sm:$0xf]
      %v4538 = vld [vmem:[#allocation2 + $0x20] sm:$0x1]
      %v4539 = vld [vmem:[#allocation2 + $0x24] sm:$0xe]
      %v4540 = vld [vmem:[#allocation2 + $0x28] sm:$0xf]
      %v4541 = vld [vmem:[#allocation2 + $0x2c] sm:$0x1]
      %v4542 = vld [vmem:[#allocation2 + $0x30] sm:$0xe]
      %v4543 = vld [vmem:[#allocation2 + $0x34] sm:$0xf]
      %v4544 = vld [vmem:[#allocation2 + $0x38] sm:$0x1]
      %v4545 = vld [vmem:[#allocation2 + $0x3c] sm:$0xe]
      %v4546 = vld [vmem:[#allocation2 + $0x40] sm:$0xf]
      %v4547 = vld [vmem:[#allocation2 + $0x44] sm:$0x1]
      %v4548 = vld [vmem:[#allocation2 + $0x48] sm:$0xe]
      %v4549 = vld [vmem:[#allocation2 + $0x4c] sm:$0xf]
      %v4550 = vld [vmem:[#allocation2 + $0x50] sm:$0x1]
      %v4551 = vld [vmem:[#allocation2 + $0x54] sm:$0xe]
      %v4552 = vld [vmem:[#allocation2 + $0x58] sm:$0xf]
      %v4553 = vld [vmem:[#allocation2 + $0x5c] sm:$0x1]
      %v4554 = vld [vmem:[#allocation2 + $0x60] sm:$0xe]
      %v4555 = vld [vmem:[#allocation2 + $0x64] sm:$0xf]
      %v4556 = vld [vmem:[#allocation2 + $0x68] sm:$0x1]
      %v4557 = vld [vmem:[#allocation2 + $0x6c] sm:$0xe]
      %v4558 = vld [vmem:[#allocation2 + $0x70] sm:$0xf]
      %v4559 = vld [vmem:[#allocation2 + $0x74] sm:$0x1]
      %v4560 = vld [vmem:[#allocation2 + $0x78] sm:$0xe]
      %v4561 = vld [vmem:[#allocation2 + $0x7c] sm:$0xf]
      %v4562 = vld [vmem:[#allocation2 + $0x80] sm:$0x1]
      %v4563 = vld [vmem:[#allocation2 + $0x84] sm:$0xe]
      %v4564 = vld [vmem:[#allocation2 + $0x88] sm:$0xf]
      %v4565 = vld [vmem:[#allocation2 + $0x8c] sm:$0x1]
      %v4566 = vld [vmem:[#allocation2 + $0x90] sm:$0xe]
      %v4567 = vld [vmem:[#allocation2 + $0x94] sm:$0xf]
      %v4568 = vld [vmem:[#allocation2 + $0x98] sm:$0x1]
      %v4569 = vld [vmem:[#allocation2 + $0x9c] sm:$0xe]
      %v4570 = vld [vmem:[#allocation2 + $0xa0] sm:$0xf]
      %v4571 = vld [vmem:[#allocation2 + $0xa4] sm:$0x1]
      %v4572 = vld [vmem:[#allocation2 + $0xa8] sm:$0xe]
      %v4573 = vld [vmem:[#allocation2 + $0xac] sm:$0xf]
      %v4574 = vld [vmem:[#allocation2 + $0xb0] sm:$0x1]
      %v4575 = vld [vmem:[#allocation2 + $0xb4] sm:$0xe]
      %v4576 = vld [vmem:[#allocation2 + $0xb8] sm:$0xf]
      %v4577 = vld [vmem:[#allocation2 + $0xbc] sm:$0x1]
      %v4578 = vld [vmem:[#allocation2 + $0xc0] sm:$0xe]
      %v4579 = vld [vmem:[#allocation2 + $0xc4] sm:$0xf]
      %v4580 = vld [vmem:[#allocation2 + $0xc8] sm:$0x1]
      %v4581 = vld [vmem:[#allocation2 + $0xcc] sm:$0xe]
      %v4582 = vld [vmem:[#allocation2 + $0xd0] sm:$0xf]
      %v4583 = vld [vmem:[#allocation2 + $0xd4] sm:$0x1]
      %v4638 = vunpack.c.l.b16 %v4530
      %v4639 = vunpack.c.l.b16 %v4531
      %v4640 = vunpack.c.l.b16 %v4532
      %v4641 = vunpack.c.l.b16 %v4533
      %v4642 = vunpack.c.l.b16 %v4534
      %v4643 = vunpack.c.l.b16 %v4535
      %v4644 = vunpack.c.l.b16 %v4536
      %v4645 = vunpack.c.l.b16 %v4537
      %v4646 = vunpack.c.l.b16 %v4538
      %v4647 = vunpack.c.l.b16 %v4539
      %v4648 = vunpack.c.l.b16 %v4540
      %v4649 = vunpack.c.l.b16 %v4541
      %v4650 = vunpack.c.l.b16 %v4542
      %v4651 = vunpack.c.l.b16 %v4543
      %v4652 = vunpack.c.l.b16 %v4544
      %v4653 = vunpack.c.l.b16 %v4545
      %v4654 = vunpack.c.l.b16 %v4546
      %v4655 = vunpack.c.l.b16 %v4547
      %v4656 = vunpack.c.l.b16 %v4548
      %v4657 = vunpack.c.l.b16 %v4549
      %v4658 = vunpack.c.l.b16 %v4550
      %v4659 = vunpack.c.l.b16 %v4551
      %v4660 = vunpack.c.l.b16 %v4552
      %v4661 = vunpack.c.l.b16 %v4553
      %v4662 = vunpack.c.l.b16 %v4554
      %v4663 = vunpack.c.l.b16 %v4555
      %v4664 = vunpack.c.l.b16 %v4556
      %v4665 = vunpack.c.l.b16 %v4557
      %v4666 = vunpack.c.l.b16 %v4558
      %v4667 = vunpack.c.l.b16 %v4559
      %v4668 = vunpack.c.l.b16 %v4560
      %v4669 = vunpack.c.l.b16 %v4561
      %v4670 = vunpack.c.l.b16 %v4562
      %v4671 = vunpack.c.l.b16 %v4563
      %v4672 = vunpack.c.l.b16 %v4564
      %v4673 = vunpack.c.l.b16 %v4565
      %v4674 = vunpack.c.l.b16 %v4566
      %v4675 = vunpack.c.l.b16 %v4567
      %v4676 = vunpack.c.l.b16 %v4568
      %v4677 = vunpack.c.l.b16 %v4569
      %v4678 = vunpack.c.l.b16 %v4570
      %v4679 = vunpack.c.l.b16 %v4571
      %v4680 = vunpack.c.l.b16 %v4572
      %v4681 = vunpack.c.l.b16 %v4573
      %v4682 = vunpack.c.l.b16 %v4574
      %v4683 = vunpack.c.l.b16 %v4575
      %v4684 = vunpack.c.l.b16 %v4576
      %v4685 = vunpack.c.l.b16 %v4577
      %v4686 = vunpack.c.l.b16 %v4578
      %v4687 = vunpack.c.l.b16 %v4579
      %v4688 = vunpack.c.l.b16 %v4580
      %v4689 = vunpack.c.l.b16 %v4581
      %v4690 = vunpack.c.l.b16 %v4582
      %v4691 = vunpack.c.l.b16 %v4583
      %v4692 = vpack.c.b16 %v4639, %v4638
      %v4693 = vpack.c.b16 %v4640, %v4640
      %v4694 = vpack.c.b16 %v4642, %v4641
      %v4695 = vpack.c.b16 %v4643, %v4643
      %v4696 = vpack.c.b16 %v4645, %v4644
      %v4697 = vpack.c.b16 %v4646, %v4646
      %v4698 = vpack.c.b16 %v4648, %v4647
      %v4699 = vpack.c.b16 %v4649, %v4649
      %v4700 = vpack.c.b16 %v4651, %v4650
      %v4701 = vpack.c.b16 %v4652, %v4652
      %v4702 = vpack.c.b16 %v4654, %v4653
      %v4703 = vpack.c.b16 %v4655, %v4655
      %v4704 = vpack.c.b16 %v4657, %v4656
      %v4705 = vpack.c.b16 %v4658, %v4658
      %v4706 = vpack.c.b16 %v4660, %v4659
      %v4707 = vpack.c.b16 %v4661, %v4661
      %v4708 = vpack.c.b16 %v4663, %v4662
      %v4709 = vpack.c.b16 %v4664, %v4664
      %v4710 = vpack.c.b16 %v4666, %v4665
      %v4711 = vpack.c.b16 %v4667, %v4667
      %v4712 = vpack.c.b16 %v4669, %v4668
      %v4713 = vpack.c.b16 %v4670, %v4670
      %v4714 = vpack.c.b16 %v4672, %v4671
      %v4715 = vpack.c.b16 %v4673, %v4673
      %v4716 = vpack.c.b16 %v4675, %v4674
      %v4717 = vpack.c.b16 %v4676, %v4676
      %v4718 = vpack.c.b16 %v4678, %v4677
      %v4719 = vpack.c.b16 %v4679, %v4679
      %v4720 = vpack.c.b16 %v4681, %v4680
      %v4721 = vpack.c.b16 %v4682, %v4682
      %v4722 = vpack.c.b16 %v4684, %v4683
      %v4723 = vpack.c.b16 %v4685, %v4685
      %v4724 = vpack.c.b16 %v4687, %v4686
      %v4725 = vpack.c.b16 %v4688, %v4688
      %v4726 = vpack.c.b16 %v4690, %v4689
      %v4727 = vpack.c.b16 %v4691, %v4691
      %v4728 = vrot.slane %v4692, 1
      %v4729 = vrot.slane %v4693, 1
      %v4730 = vsel %vm1903, %v4728, %v4729
      %v4731 = vrot.slane %v4694, 1
      %v4732 = vrot.slane %v4695, 1
      %v4733 = vsel %vm1903, %v4731, %v4732
      %v4734 = vrot.slane %v4696, 1
      %v4735 = vrot.slane %v4697, 1
      %v4736 = vsel %vm1903, %v4734, %v4735
      %v4737 = vrot.slane %v4698, 1
      %v4738 = vrot.slane %v4699, 1
      %v4739 = vsel %vm1903, %v4737, %v4738
      %v4740 = vrot.slane %v4700, 1
      %v4741 = vrot.slane %v4701, 1
      %v4742 = vsel %vm1903, %v4740, %v4741
      %v4743 = vrot.slane %v4702, 1
      %v4744 = vrot.slane %v4703, 1
      %v4745 = vsel %vm1903, %v4743, %v4744
      %v4746 = vrot.slane %v4704, 1
      %v4747 = vrot.slane %v4705, 1
      %v4748 = vsel %vm1903, %v4746, %v4747
      %v4749 = vrot.slane %v4706, 1
      %v4750 = vrot.slane %v4707, 1
      %v4751 = vsel %vm1903, %v4749, %v4750
      %v4752 = vrot.slane %v4708, 1
      %v4753 = vrot.slane %v4709, 1
      %v4754 = vsel %vm1903, %v4752, %v4753
      %v4755 = vrot.slane %v4710, 1
      %v4756 = vrot.slane %v4711, 1
      %v4757 = vsel %vm1903, %v4755, %v4756
      %v4758 = vrot.slane %v4712, 1
      %v4759 = vrot.slane %v4713, 1
      %v4760 = vsel %vm1903, %v4758, %v4759
      %v4761 = vrot.slane %v4714, 1
      %v4762 = vrot.slane %v4715, 1
      %v4763 = vsel %vm1903, %v4761, %v4762
      %v4764 = vrot.slane %v4716, 1
      %v4765 = vrot.slane %v4717, 1
      %v4766 = vsel %vm1903, %v4764, %v4765
      %v4767 = vrot.slane %v4718, 1
      %v4768 = vrot.slane %v4719, 1
      %v4769 = vsel %vm1903, %v4767, %v4768
      %v4770 = vrot.slane %v4720, 1
      %v4771 = vrot.slane %v4721, 1
      %v4772 = vsel %vm1903, %v4770, %v4771
      %v4773 = vrot.slane %v4722, 1
      %v4774 = vrot.slane %v4723, 1
      %v4775 = vsel %vm1903, %v4773, %v4774
      %v4776 = vrot.slane %v4724, 1
      %v4777 = vrot.slane %v4725, 1
      %v4778 = vsel %vm1903, %v4776, %v4777
      %v4779 = vrot.slane %v4726, 1
      %v4780 = vrot.slane %v4727, 1
      %v4781 = vsel %vm1903, %v4779, %v4780
      %4782 = vrot.lane.b32.xlu0 %v4730, 8
      %v4783 = vpop.permute.xlu0 %4782
      %4784 = vrot.lane.b32.xlu0 %v4733, 8
      %v4785 = vpop.permute.xlu0 %4784
      %4786 = vrot.lane.b32.xlu0 %v4736, 8
      %v4787 = vpop.permute.xlu0 %4786
      %4788 = vrot.lane.b32.xlu0 %v4739, 8
      %v4789 = vpop.permute.xlu0 %4788
      %4790 = vrot.lane.b32.xlu0 %v4742, 8
      %v4791 = vpop.permute.xlu0 %4790
      %4792 = vrot.lane.b32.xlu0 %v4745, 8
      %v4793 = vpop.permute.xlu0 %4792
      %4794 = vrot.lane.b32.xlu0 %v4748, 8
      %v4795 = vpop.permute.xlu0 %4794
      %4796 = vrot.lane.b32.xlu0 %v4751, 8
      %v4797 = vpop.permute.xlu0 %4796
      %4798 = vrot.lane.b32.xlu0 %v4754, 8
      %v4799 = vpop.permute.xlu0 %4798
      %4800 = vrot.lane.b32.xlu0 %v4757, 8
      %v4801 = vpop.permute.xlu0 %4800
      %4802 = vrot.lane.b32.xlu0 %v4760, 8
      %v4803 = vpop.permute.xlu0 %4802
      %4804 = vrot.lane.b32.xlu0 %v4763, 8
      %v4805 = vpop.permute.xlu0 %4804
      %4806 = vrot.lane.b32.xlu0 %v4766, 8
      %v4807 = vpop.permute.xlu0 %4806
      %4808 = vrot.lane.b32.xlu0 %v4769, 8
      %v4809 = vpop.permute.xlu0 %4808
      %4810 = vrot.lane.b32.xlu0 %v4772, 8
      %v4811 = vpop.permute.xlu0 %4810
      %4812 = vrot.lane.b32.xlu0 %v4775, 8
      %v4813 = vpop.permute.xlu0 %4812
      %4814 = vrot.lane.b32.xlu0 %v4778, 8
      %v4815 = vpop.permute.xlu0 %4814
      %4816 = vrot.lane.b32.xlu0 %v4781, 8
      %v4817 = vpop.permute.xlu0 %4816
      %4836 = vst.msk [vmem:[#allocation3] sm:$0xff] %vm2012, %v4783
      %4837 = vst.msk [vmem:[#allocation3 + $0x8] sm:$0xff] %vm2012, %v4785
      %4838 = vst.msk [vmem:[#allocation3 + $0x10] sm:$0xff] %vm2012, %v4787
      %4839 = vst.msk [vmem:[#allocation3 + $0x18] sm:$0xff] %vm2012, %v4789
      %4840 = vst.msk [vmem:[#allocation3 + $0x20] sm:$0xff] %vm2012, %v4791
      %4841 = vst.msk [vmem:[#allocation3 + $0x28] sm:$0xff] %vm2012, %v4793
      %4842 = vst.msk [vmem:[#allocation3 + $0x30] sm:$0xff] %vm2012, %v4795
      %4843 = vst.msk [vmem:[#allocation3 + $0x38] sm:$0xff] %vm2012, %v4797
      %4844 = vst.msk [vmem:[#allocation3 + $0x40] sm:$0xff] %vm2012, %v4799
      %4845 = vst.msk [vmem:[#allocation3 + $0x48] sm:$0xff] %vm2012, %v4801
      %4846 = vst.msk [vmem:[#allocation3 + $0x50] sm:$0xff] %vm2012, %v4803
      %4847 = vst.msk [vmem:[#allocation3 + $0x58] sm:$0xff] %vm2012, %v4805
      %4848 = vst.msk [vmem:[#allocation3 + $0x60] sm:$0xff] %vm2012, %v4807
      %4849 = vst.msk [vmem:[#allocation3 + $0x68] sm:$0xff] %vm2012, %v4809
      %4850 = vst.msk [vmem:[#allocation3 + $0x70] sm:$0xff] %vm2012, %v4811
      %4851 = vst.msk [vmem:[#allocation3 + $0x78] sm:$0xff] %vm2012, %v4813
      %4852 = vst.msk [vmem:[#allocation3 + $0x80] sm:$0xff] %vm2012, %v4815
      %4853 = vst.msk [vmem:[#allocation3 + $0x88] sm:$0xff] %vm2012, %v4817
      %v4854 = vld [vmem:[#allocation3] sm:$0xff]
      %v4855 = vld [vmem:[#allocation3 + $0x8] sm:$0xff]
      %v4856 = vld [vmem:[#allocation3 + $0x10] sm:$0xff]
      %v4857 = vld [vmem:[#allocation3 + $0x18] sm:$0xff]
      %v4858 = vld [vmem:[#allocation3 + $0x20] sm:$0xff]
      %v4859 = vld [vmem:[#allocation3 + $0x28] sm:$0xff]
      %v4860 = vld [vmem:[#allocation3 + $0x30] sm:$0xff]
      %v4861 = vld [vmem:[#allocation3 + $0x38] sm:$0xff]
      %v4862 = vld [vmem:[#allocation3 + $0x40] sm:$0xff]
      %v4863 = vld [vmem:[#allocation3 + $0x48] sm:$0xff]
      %v4864 = vld [vmem:[#allocation3 + $0x50] sm:$0xff]
      %v4865 = vld [vmem:[#allocation3 + $0x58] sm:$0xff]
      %v4866 = vld [vmem:[#allocation3 + $0x60] sm:$0xff]
      %v4867 = vld [vmem:[#allocation3 + $0x68] sm:$0xff]
      %v4868 = vld [vmem:[#allocation3 + $0x70] sm:$0xff]
      %v4869 = vld [vmem:[#allocation3 + $0x78] sm:$0xff]
      %v4870 = vld [vmem:[%s2] sm:$0xf]
      %v4871 = vld [vmem:[%s2 + $0x4] sm:$0x3]
      %v4872 = vld [vmem:[%s2049] sm:$0xff]
      %v4873 = vld [vmem:[%s2049 + $0x8] sm:$0xff]
      %v4874 = vld [vmem:[%s2049 + $0x10] sm:$0xff]
      %v4875 = vld [vmem:[%s2049 + $0x18] sm:$0xff]
      %v4876 = vld [vmem:[%s2049 + $0x20] sm:$0xff]
      %v4877 = vld [vmem:[%s2049 + $0x28] sm:$0xff]
      %v4878 = vld [vmem:[%s2049 + $0x30] sm:$0xff]
      %v4879 = vld [vmem:[%s2049 + $0x38] sm:$0xff]
      %v4880 = vld [vmem:[%s2049 + $0x40] sm:$0xff]
      %v4881 = vld [vmem:[%s2049 + $0x48] sm:$0xff]
      %v4882 = vld [vmem:[%s2049 + $0x50] sm:$0xff]
      %v4883 = vld [vmem:[%s2049 + $0x58] sm:$0xff]
      %v4884 = vld [vmem:[%s2049 + $0x60] sm:$0xff]
      %v4885 = vld [vmem:[%s2049 + $0x68] sm:$0xff]
      %v4886 = vld [vmem:[%s2049 + $0x70] sm:$0xff]
      %v4887 = vld [vmem:[%s2049 + $0x78] sm:$0xff]
      %s4888 = scalar_lea.vmem %s2, 8
      %v4889 = vld [vmem:[%s4888] sm:$0xf]
      %v4890 = vld [vmem:[%s4888 + $0x4] sm:$0x3]
      %v4893 = vunpack.c.l.b16 %v4889
      %v4894 = vunpack.c.l.b16 %v4890
      %v4895 = vpack.c.b16 %v4894, %v4893
      %v4897 = vsel %vm2074, %v4872, 0
      %v4900 = vsel %vm2074, %v4873, 0
      %v4903 = vsel %vm2074, %v4874, 0
      %v4906 = vsel %vm2074, %v4875, 0
      %v4909 = vsel %vm2074, %v4876, 0
      %v4912 = vsel %vm2074, %v4877, 0
      %v4915 = vsel %vm2074, %v4878, 0
      %v4918 = vsel %vm2074, %v4879, 0
      %v4921 = vsel %vm2074, %v4880, 0
      %v4924 = vsel %vm2074, %v4881, 0
      %v4927 = vsel %vm2074, %v4882, 0
      %v4930 = vsel %vm2074, %v4883, 0
      %v4933 = vsel %vm2074, %v4884, 0
      %v4936 = vsel %vm2074, %v4885, 0
      %v4939 = vsel %vm2074, %v4886, 0
      %v4942 = vsel %vm2074, %v4887, 0
      %v4945 = vsel %vm2123, %v4895, 0
      %4947 = vmatprep.subr.bf16.mxu0 0
      %4948 = vmatpush1.bf16.msra.mxu0 %v4945
      %4949 = vmatprep.subr.bf16.mxu0 0
      %4950 = vmatpush1.bf16.msra.mxu0 0
      %4951 = vmatprep.subr.bf16.mxu0 0
      %4952 = vmatpush1.bf16.msra.mxu0 0
      %4953 = vmatprep.subr.bf16.mxu0 0
      %4954 = vmatpush1.bf16.msra.mxu0 0
      %4955 = vmatprep.subr.bf16.mxu0 0
      %4956 = vmatpush1.bf16.msra.mxu0 0
      %4957 = vmatprep.subr.bf16.mxu0 0
      %4958 = vmatpush1.bf16.msra.mxu0 0
      %4959 = vmatprep.subr.bf16.mxu0 0
      %4960 = vmatpush1.bf16.msra.mxu0 0
      %4961 = vmatprep.subr.bf16.mxu0 0
      %4962 = vmatpush1.bf16.msra.mxu0 0
      %4963 = vmatprep.subr.bf16.mxu0 0
      %4964 = vmatpush1.bf16.msra.mxu0 0
      %4965 = vmatprep.subr.bf16.mxu0 0
      %4966 = vmatpush1.bf16.msra.mxu0 0
      %4967 = vmatprep.subr.bf16.mxu0 0
      %4968 = vmatpush1.bf16.msra.mxu0 0
      %4969 = vmatprep.subr.bf16.mxu0 0
      %4970 = vmatpush1.bf16.msra.mxu0 0
      %4971 = vmatprep.subr.bf16.mxu0 0
      %4972 = vmatpush1.bf16.msra.mxu0 0
      %4973 = vmatprep.subr.bf16.mxu0 0
      %4974 = vmatpush1.bf16.msra.mxu0 0
      %4975 = vmatprep.subr.bf16.mxu0 0
      %4976 = vmatpush1.bf16.msra.mxu0 0
      %4977 = vmatprep.subr.bf16.mxu0 0
      %4978 = vmatpush1.bf16.msra.mxu0 0
      %4979 = vmatprep.mubr.bf16.mxu0 0
      %4980 = vmatmul.mubr.bf16.gmra.mrb[0].mxu0 %v4897
      %v4981 = vpop.f32.mrb[0].mxu0
      %v4982 = vadd.f32 0.0, %v4981
      %v4983 = vpop.f32.mrb[0].mxu0
      %v4984 = vpop.f32.mrb[0].mxu0
      %v4985 = vadd.f32 0.0, %v4984
      %v4986 = vpop.f32.mrb[0].mxu0
      %4987 = vmatprep.mubr.bf16.mxu0 0
      %4988 = vmatmul.mubr.bf16.gmra.mrb[0].mxu0 %v4900
      %v4989 = vpop.f32.mrb[0].mxu0
      %v4990 = vadd.f32 0.0, %v4989
      %v4991 = vpop.f32.mrb[0].mxu0
      %v4992 = vpop.f32.mrb[0].mxu0
      %v4993 = vadd.f32 0.0, %v4992
      %v4994 = vpop.f32.mrb[0].mxu0
      %4995 = vmatprep.mubr.bf16.mxu0 0
      %4996 = vmatmul.mubr.bf16.gmra.mrb[0].mxu0 %v4903
      %v4997 = vpop.f32.mrb[0].mxu0
      %v4998 = vadd.f32 0.0, %v4997
      %v4999 = vpop.f32.mrb[0].mxu0
      %v5000 = vpop.f32.mrb[0].mxu0
      %v5001 = vadd.f32 0.0, %v5000
      %v5002 = vpop.f32.mrb[0].mxu0
      %5003 = vmatprep.mubr.bf16.mxu0 0
      %5004 = vmatmul.mubr.bf16.gmra.mrb[0].mxu0 %v4906
      %v5005 = vpop.f32.mrb[0].mxu0
      %v5006 = vadd.f32 0.0, %v5005
      %v5007 = vpop.f32.mrb[0].mxu0
      %v5008 = vpop.f32.mrb[0].mxu0
      %v5009 = vadd.f32 0.0, %v5008
      %v5010 = vpop.f32.mrb[0].mxu0
      %5011 = vmatprep.mubr.bf16.mxu0 0
      %5012 = vmatmul.mubr.bf16.gmra.mrb[0].mxu0 %v4909
      %v5013 = vpop.f32.mrb[0].mxu0
      %v5014 = vadd.f32 0.0, %v5013
      %v5015 = vpop.f32.mrb[0].mxu0
      %v5016 = vpop.f32.mrb[0].mxu0
      %v5017 = vadd.f32 0.0, %v5016
      %v5018 = vpop.f32.mrb[0].mxu0
      %5019 = vmatprep.mubr.bf16.mxu0 0
      %5020 = vmatmul.mubr.bf16.gmra.mrb[0].mxu0 %v4912
      %v5021 = vpop.f32.mrb[0].mxu0
      %v5022 = vadd.f32 0.0, %v5021
      %v5023 = vpop.f32.mrb[0].mxu0
      %v5024 = vpop.f32.mrb[0].mxu0
      %v5025 = vadd.f32 0.0, %v5024
      %v5026 = vpop.f32.mrb[0].mxu0
      %5027 = vmatprep.mubr.bf16.mxu0 0
      %5028 = vmatmul.mubr.bf16.gmra.mrb[0].mxu0 %v4915
      %v5029 = vpop.f32.mrb[0].mxu0
      %v5030 = vadd.f32 0.0, %v5029
      %v5031 = vpop.f32.mrb[0].mxu0
      %v5032 = vpop.f32.mrb[0].mxu0
      %v5033 = vadd.f32 0.0, %v5032
      %v5034 = vpop.f32.mrb[0].mxu0
      %5035 = vmatprep.mubr.bf16.mxu0 0
      %5036 = vmatmul.mubr.bf16.gmra.mrb[0].mxu0 %v4918
      %v5037 = vpop.f32.mrb[0].mxu0
      %v5038 = vadd.f32 0.0, %v5037
      %v5039 = vpop.f32.mrb[0].mxu0
      %v5040 = vpop.f32.mrb[0].mxu0
      %v5041 = vadd.f32 0.0, %v5040
      %v5042 = vpop.f32.mrb[0].mxu0
      %5043 = vmatprep.mubr.bf16.mxu0 0
      %5044 = vmatmul.mubr.bf16.gmra.mrb[0].mxu0 %v4921
      %v5045 = vpop.f32.mrb[0].mxu0
      %v5046 = vadd.f32 0.0, %v5045
      %v5047 = vpop.f32.mrb[0].mxu0
      %v5048 = vpop.f32.mrb[0].mxu0
      %v5049 = vadd.f32 0.0, %v5048
      %v5050 = vpop.f32.mrb[0].mxu0
      %5051 = vmatprep.mubr.bf16.mxu0 0
      %5052 = vmatmul.mubr.bf16.gmra.mrb[0].mxu0 %v4924
      %v5053 = vpop.f32.mrb[0].mxu0
      %v5054 = vadd.f32 0.0, %v5053
      %v5055 = vpop.f32.mrb[0].mxu0
      %v5056 = vpop.f32.mrb[0].mxu0
      %v5057 = vadd.f32 0.0, %v5056
      %v5058 = vpop.f32.mrb[0].mxu0
      %5059 = vmatprep.mubr.bf16.mxu0 0
      %5060 = vmatmul.mubr.bf16.gmra.mrb[0].mxu0 %v4927
      %v5061 = vpop.f32.mrb[0].mxu0
      %v5062 = vadd.f32 0.0, %v5061
      %v5063 = vpop.f32.mrb[0].mxu0
      %v5064 = vpop.f32.mrb[0].mxu0
      %v5065 = vadd.f32 0.0, %v5064
      %v5066 = vpop.f32.mrb[0].mxu0
      %5067 = vmatprep.mubr.bf16.mxu0 0
      %5068 = vmatmul.mubr.bf16.gmra.mrb[0].mxu0 %v4930
      %v5069 = vpop.f32.mrb[0].mxu0
      %v5070 = vadd.f32 0.0, %v5069
      %v5071 = vpop.f32.mrb[0].mxu0
      %v5072 = vpop.f32.mrb[0].mxu0
      %v5073 = vadd.f32 0.0, %v5072
      %v5074 = vpop.f32.mrb[0].mxu0
      %5075 = vmatprep.mubr.bf16.mxu0 0
      %5076 = vmatmul.mubr.bf16.gmra.mrb[0].mxu0 %v4933
      %v5077 = vpop.f32.mrb[0].mxu0
      %v5078 = vadd.f32 0.0, %v5077
      %v5079 = vpop.f32.mrb[0].mxu0
      %v5080 = vpop.f32.mrb[0].mxu0
      %v5081 = vadd.f32 0.0, %v5080
      %v5082 = vpop.f32.mrb[0].mxu0
      %5083 = vmatprep.mubr.bf16.mxu0 0
      %5084 = vmatmul.mubr.bf16.gmra.mrb[0].mxu0 %v4936
      %v5085 = vpop.f32.mrb[0].mxu0
      %v5086 = vadd.f32 0.0, %v5085
      %v5087 = vpop.f32.mrb[0].mxu0
      %v5088 = vpop.f32.mrb[0].mxu0
      %v5089 = vadd.f32 0.0, %v5088
      %v5090 = vpop.f32.mrb[0].mxu0
      %5091 = vmatprep.mubr.bf16.mxu0 0
      %5092 = vmatmul.mubr.bf16.gmra.mrb[0].mxu0 %v4939
      %v5093 = vpop.f32.mrb[0].mxu0
      %v5094 = vadd.f32 0.0, %v5093
      %v5095 = vpop.f32.mrb[0].mxu0
      %v5096 = vpop.f32.mrb[0].mxu0
      %v5097 = vadd.f32 0.0, %v5096
      %v5098 = vpop.f32.mrb[0].mxu0
      %5099 = vmatprep.mubr.bf16.mxu0 0
      %5100 = vmatmul.mubr.bf16.gmra.mrb[0].mxu0 %v4942
      %v5101 = vpop.f32.mrb[0].mxu0
      %v5102 = vadd.f32 0.0, %v5101
      %v5103 = vpop.f32.mrb[0].mxu0
      %v5104 = vpop.f32.mrb[0].mxu0
      %v5105 = vadd.f32 0.0, %v5104
      %v5106 = vpop.f32.mrb[0].mxu0
      %5107 = vdwg.mxu0
      %v5110 = vunpack.c.l.b16 %v4870
      %v5111 = vunpack.c.l.b16 %v4871
      %v5112 = vpack.c.b16 %v5111, %v5110
      %v5114 = vsel %vm2074, %v4854, 0
      %v5117 = vsel %vm2074, %v4855, 0
      %v5120 = vsel %vm2074, %v4856, 0
      %v5123 = vsel %vm2074, %v4857, 0
      %v5126 = vsel %vm2074, %v4858, 0
      %v5129 = vsel %vm2074, %v4859, 0
      %v5132 = vsel %vm2074, %v4860, 0
      %v5135 = vsel %vm2074, %v4861, 0
      %v5138 = vsel %vm2074, %v4862, 0
      %v5141 = vsel %vm2074, %v4863, 0
      %v5144 = vsel %vm2074, %v4864, 0
      %v5147 = vsel %vm2074, %v4865, 0
      %v5150 = vsel %vm2074, %v4866, 0
      %v5153 = vsel %vm2074, %v4867, 0
      %v5156 = vsel %vm2074, %v4868, 0
      %v5159 = vsel %vm2074, %v4869, 0
      %v5162 = vsel %vm2123, %v5112, 0
      %5164 = vmatprep.subr.bf16.mxu0 0
      %5165 = vmatpush1.bf16.msra.mxu0 %v5162
      %5166 = vmatprep.subr.bf16.mxu0 0
      %5167 = vmatpush1.bf16.msra.mxu0 0
      %5168 = vmatprep.subr.bf16.mxu0 0
      %5169 = vmatpush1.bf16.msra.mxu0 0
      %5170 = vmatprep.subr.bf16.mxu0 0
      %5171 = vmatpush1.bf16.msra.mxu0 0
      %5172 = vmatprep.subr.bf16.mxu0 0
      %5173 = vmatpush1.bf16.msra.mxu0 0
      %5174 = vmatprep.subr.bf16.mxu0 0
      %5175 = vmatpush1.bf16.msra.mxu0 0
      %5176 = vmatprep.subr.bf16.mxu0 0
      %5177 = vmatpush1.bf16.msra.mxu0 0
      %5178 = vmatprep.subr.bf16.mxu0 0
      %5179 = vmatpush1.bf16.msra.mxu0 0
      %5180 = vmatprep.subr.bf16.mxu0 0
      %5181 = vmatpush1.bf16.msra.mxu0 0
      %5182 = vmatprep.subr.bf16.mxu0 0
      %5183 = vmatpush1.bf16.msra.mxu0 0
      %5184 = vmatprep.subr.bf16.mxu0 0
      %5185 = vmatpush1.bf16.msra.mxu0 0
      %5186 = vmatprep.subr.bf16.mxu0 0
      %5187 = vmatpush1.bf16.msra.mxu0 0
      %5188 = vmatprep.subr.bf16.mxu0 0
      %5189 = vmatpush1.bf16.msra.mxu0 0
      %5190 = vmatprep.subr.bf16.mxu0 0
      %5191 = vmatpush1.bf16.msra.mxu0 0
      %5192 = vmatprep.subr.bf16.mxu0 0
      %5193 = vmatpush1.bf16.msra.mxu0 0
      %5194 = vmatprep.subr.bf16.mxu0 0
      %5195 = vmatpush1.bf16.msra.mxu0 0
      %5196 = vmatprep.mubr.bf16.mxu0 0
      %5197 = vmatmul.mubr.bf16.gmra.mrb[0].mxu0 %v5114
      %v5198 = vpop.f32.mrb[0].mxu0
      %v5199 = vadd.f32 %v4982, %v5198
      %v5200 = vpop.f32.mrb[0].mxu0
      %v5201 = vpop.f32.mrb[0].mxu0
      %v5202 = vadd.f32 %v4985, %v5201
      %v5203 = vpop.f32.mrb[0].mxu0
      %5204 = vmatprep.mubr.bf16.mxu0 0
      %5205 = vmatmul.mubr.bf16.gmra.mrb[0].mxu0 %v5117
      %v5206 = vpop.f32.mrb[0].mxu0
      %v5207 = vadd.f32 %v4990, %v5206
      %v5208 = vpop.f32.mrb[0].mxu0
      %v5209 = vpop.f32.mrb[0].mxu0
      %v5210 = vadd.f32 %v4993, %v5209
      %v5211 = vpop.f32.mrb[0].mxu0
      %5212 = vmatprep.mubr.bf16.mxu0 0
      %5213 = vmatmul.mubr.bf16.gmra.mrb[0].mxu0 %v5120
      %v5214 = vpop.f32.mrb[0].mxu0
      %v5215 = vadd.f32 %v4998, %v5214
      %v5216 = vpop.f32.mrb[0].mxu0
      %v5217 = vpop.f32.mrb[0].mxu0
      %v5218 = vadd.f32 %v5001, %v5217
      %v5219 = vpop.f32.mrb[0].mxu0
      %5220 = vmatprep.mubr.bf16.mxu0 0
      %5221 = vmatmul.mubr.bf16.gmra.mrb[0].mxu0 %v5123
      %v5222 = vpop.f32.mrb[0].mxu0
      %v5223 = vadd.f32 %v5006, %v5222
      %v5224 = vpop.f32.mrb[0].mxu0
      %v5225 = vpop.f32.mrb[0].mxu0
      %v5226 = vadd.f32 %v5009, %v5225
      %v5227 = vpop.f32.mrb[0].mxu0
      %5228 = vmatprep.mubr.bf16.mxu0 0
      %5229 = vmatmul.mubr.bf16.gmra.mrb[0].mxu0 %v5126
      %v5230 = vpop.f32.mrb[0].mxu0
      %v5231 = vadd.f32 %v5014, %v5230
      %v5232 = vpop.f32.mrb[0].mxu0
      %v5233 = vpop.f32.mrb[0].mxu0
      %v5234 = vadd.f32 %v5017, %v5233
      %v5235 = vpop.f32.mrb[0].mxu0
      %5236 = vmatprep.mubr.bf16.mxu0 0
      %5237 = vmatmul.mubr.bf16.gmra.mrb[0].mxu0 %v5129
      %v5238 = vpop.f32.mrb[0].mxu0
      %v5239 = vadd.f32 %v5022, %v5238
      %v5240 = vpop.f32.mrb[0].mxu0
      %v5241 = vpop.f32.mrb[0].mxu0
      %v5242 = vadd.f32 %v5025, %v5241
      %v5243 = vpop.f32.mrb[0].mxu0
      %5244 = vmatprep.mubr.bf16.mxu0 0
      %5245 = vmatmul.mubr.bf16.gmra.mrb[0].mxu0 %v5132
      %v5246 = vpop.f32.mrb[0].mxu0
      %v5247 = vadd.f32 %v5030, %v5246
      %v5248 = vpop.f32.mrb[0].mxu0
      %v5249 = vpop.f32.mrb[0].mxu0
      %v5250 = vadd.f32 %v5033, %v5249
      %v5251 = vpop.f32.mrb[0].mxu0
      %5252 = vmatprep.mubr.bf16.mxu0 0
      %5253 = vmatmul.mubr.bf16.gmra.mrb[0].mxu0 %v5135
      %v5254 = vpop.f32.mrb[0].mxu0
      %v5255 = vadd.f32 %v5038, %v5254
      %v5256 = vpop.f32.mrb[0].mxu0
      %v5257 = vpop.f32.mrb[0].mxu0
      %v5258 = vadd.f32 %v5041, %v5257
      %v5259 = vpop.f32.mrb[0].mxu0
      %5260 = vmatprep.mubr.bf16.mxu0 0
      %5261 = vmatmul.mubr.bf16.gmra.mrb[0].mxu0 %v5138
      %v5262 = vpop.f32.mrb[0].mxu0
      %v5263 = vadd.f32 %v5046, %v5262
      %v5264 = vpop.f32.mrb[0].mxu0
      %v5265 = vpop.f32.mrb[0].mxu0
      %v5266 = vadd.f32 %v5049, %v5265
      %v5267 = vpop.f32.mrb[0].mxu0
      %5268 = vmatprep.mubr.bf16.mxu0 0
      %5269 = vmatmul.mubr.bf16.gmra.mrb[0].mxu0 %v5141
      %v5270 = vpop.f32.mrb[0].mxu0
      %v5271 = vadd.f32 %v5054, %v5270
      %v5272 = vpop.f32.mrb[0].mxu0
      %v5273 = vpop.f32.mrb[0].mxu0
      %v5274 = vadd.f32 %v5057, %v5273
      %v5275 = vpop.f32.mrb[0].mxu0
      %5276 = vmatprep.mubr.bf16.mxu0 0
      %5277 = vmatmul.mubr.bf16.gmra.mrb[0].mxu0 %v5144
      %v5278 = vpop.f32.mrb[0].mxu0
      %v5279 = vadd.f32 %v5062, %v5278
      %v5280 = vpop.f32.mrb[0].mxu0
      %v5281 = vpop.f32.mrb[0].mxu0
      %v5282 = vadd.f32 %v5065, %v5281
      %v5283 = vpop.f32.mrb[0].mxu0
      %5284 = vmatprep.mubr.bf16.mxu0 0
      %5285 = vmatmul.mubr.bf16.gmra.mrb[0].mxu0 %v5147
      %v5286 = vpop.f32.mrb[0].mxu0
      %v5287 = vadd.f32 %v5070, %v5286
      %v5288 = vpop.f32.mrb[0].mxu0
      %v5289 = vpop.f32.mrb[0].mxu0
      %v5290 = vadd.f32 %v5073, %v5289
      %v5291 = vpop.f32.mrb[0].mxu0
      %5292 = vmatprep.mubr.bf16.mxu0 0
      %5293 = vmatmul.mubr.bf16.gmra.mrb[0].mxu0 %v5150
      %v5294 = vpop.f32.mrb[0].mxu0
      %v5295 = vadd.f32 %v5078, %v5294
      %v5296 = vpop.f32.mrb[0].mxu0
      %v5297 = vpop.f32.mrb[0].mxu0
      %v5298 = vadd.f32 %v5081, %v5297
      %v5299 = vpop.f32.mrb[0].mxu0
      %5300 = vmatprep.mubr.bf16.mxu0 0
      %5301 = vmatmul.mubr.bf16.gmra.mrb[0].mxu0 %v5153
      %v5302 = vpop.f32.mrb[0].mxu0
      %v5303 = vadd.f32 %v5086, %v5302
      %v5304 = vpop.f32.mrb[0].mxu0
      %v5305 = vpop.f32.mrb[0].mxu0
      %v5306 = vadd.f32 %v5089, %v5305
      %v5307 = vpop.f32.mrb[0].mxu0
      %5308 = vmatprep.mubr.bf16.mxu0 0
      %5309 = vmatmul.mubr.bf16.gmra.mrb[0].mxu0 %v5156
      %v5310 = vpop.f32.mrb[0].mxu0
      %v5311 = vadd.f32 %v5094, %v5310
      %v5312 = vpop.f32.mrb[0].mxu0
      %v5313 = vpop.f32.mrb[0].mxu0
      %v5314 = vadd.f32 %v5097, %v5313
      %v5315 = vpop.f32.mrb[0].mxu0
      %5316 = vmatprep.mubr.bf16.mxu0 0
      %5317 = vmatmul.mubr.bf16.gmra.mrb[0].mxu0 %v5159
      %v5318 = vpop.f32.mrb[0].mxu0
      %v5319 = vadd.f32 %v5102, %v5318
      %v5320 = vpop.f32.mrb[0].mxu0
      %v5321 = vpop.f32.mrb[0].mxu0
      %v5322 = vadd.f32 %v5105, %v5321
      %v5323 = vpop.f32.mrb[0].mxu0
      %5324 = vdwg.mxu0
      %v5325 = vld [vmem:[%s2505] sm:$0xff]
      %v5326 = vld [vmem:[%s2505 + $0x8] sm:$0xff]
      %v5327 = vld [vmem:[%s2505 + $0x10] sm:$0xff]
      %v5328 = vld [vmem:[%s2505 + $0x18] sm:$0xff]
      %v5329 = vld [vmem:[%s2505 + $0x20] sm:$0xff]
      %v5330 = vld [vmem:[%s2505 + $0x28] sm:$0xff]
      %v5331 = vld [vmem:[%s2505 + $0x30] sm:$0xff]
      %v5332 = vld [vmem:[%s2505 + $0x38] sm:$0xff]
      %v5333 = vld [vmem:[%s2505 + $0x40] sm:$0xff]
      %v5334 = vld [vmem:[%s2505 + $0x48] sm:$0xff]
      %v5335 = vld [vmem:[%s2505 + $0x50] sm:$0xff]
      %v5336 = vld [vmem:[%s2505 + $0x58] sm:$0xff]
      %v5337 = vld [vmem:[%s2505 + $0x60] sm:$0xff]
      %v5338 = vld [vmem:[%s2505 + $0x68] sm:$0xff]
      %v5339 = vld [vmem:[%s2505 + $0x70] sm:$0xff]
      %v5340 = vld [vmem:[%s2505 + $0x78] sm:$0xff]
      %s5341 = scalar_lea.vmem %s2, 16
      %v5342 = vld [vmem:[%s5341] sm:$0xf]
      %v5343 = vld [vmem:[%s5341 + $0x4] sm:$0x3]
      %v5346 = vunpack.c.l.b16 %v5342
      %v5347 = vunpack.c.l.b16 %v5343
      %v5348 = vpack.c.b16 %v5347, %v5346
      %v5350 = vsel %vm2074, %v5325, 0
      %v5353 = vsel %vm2074, %v5326, 0
      %v5356 = vsel %vm2074, %v5327, 0
      %v5359 = vsel %vm2074, %v5328, 0
      %v5362 = vsel %vm2074, %v5329, 0
      %v5365 = vsel %vm2074, %v5330, 0
      %v5368 = vsel %vm2074, %v5331, 0
      %v5371 = vsel %vm2074, %v5332, 0
      %v5374 = vsel %vm2074, %v5333, 0
      %v5377 = vsel %vm2074, %v5334, 0
      %v5380 = vsel %vm2074, %v5335, 0
      %v5383 = vsel %vm2074, %v5336, 0
      %v5386 = vsel %vm2074, %v5337, 0
      %v5389 = vsel %vm2074, %v5338, 0
      %v5392 = vsel %vm2074, %v5339, 0
      %v5395 = vsel %vm2074, %v5340, 0
      %v5398 = vsel %vm2123, %v5348, 0
      %5400 = vmatprep.subr.bf16.mxu0 0
      %5401 = vmatpush1.bf16.msra.mxu0 %v5398
      %5402 = vmatprep.subr.bf16.mxu0 0
      %5403 = vmatpush1.bf16.msra.mxu0 0
      %5404 = vmatprep.subr.bf16.mxu0 0
      %5405 = vmatpush1.bf16.msra.mxu0 0
      %5406 = vmatprep.subr.bf16.mxu0 0
      %5407 = vmatpush1.bf16.msra.mxu0 0
      %5408 = vmatprep.subr.bf16.mxu0 0
      %5409 = vmatpush1.bf16.msra.mxu0 0
      %5410 = vmatprep.subr.bf16.mxu0 0
      %5411 = vmatpush1.bf16.msra.mxu0 0
      %5412 = vmatprep.subr.bf16.mxu0 0
      %5413 = vmatpush1.bf16.msra.mxu0 0
      %5414 = vmatprep.subr.bf16.mxu0 0
      %5415 = vmatpush1.bf16.msra.mxu0 0
      %5416 = vmatprep.subr.bf16.mxu0 0
      %5417 = vmatpush1.bf16.msra.mxu0 0
      %5418 = vmatprep.subr.bf16.mxu0 0
      %5419 = vmatpush1.bf16.msra.mxu0 0
      %5420 = vmatprep.subr.bf16.mxu0 0
      %5421 = vmatpush1.bf16.msra.mxu0 0
      %5422 = vmatprep.subr.bf16.mxu0 0
      %5423 = vmatpush1.bf16.msra.mxu0 0
      %5424 = vmatprep.subr.bf16.mxu0 0
      %5425 = vmatpush1.bf16.msra.mxu0 0
      %5426 = vmatprep.subr.bf16.mxu0 0
      %5427 = vmatpush1.bf16.msra.mxu0 0
      %5428 = vmatprep.subr.bf16.mxu0 0
      %5429 = vmatpush1.bf16.msra.mxu0 0
      %5430 = vmatprep.subr.bf16.mxu0 0
      %5431 = vmatpush1.bf16.msra.mxu0 0
      %5432 = vmatprep.mubr.bf16.mxu0 0
      %5433 = vmatmul.mubr.bf16.gmra.mrb[0].mxu0 %v5350
      %v5434 = vpop.f32.mrb[0].mxu0
      %v5435 = vadd.f32 0.0, %v5434
      %v5436 = vpop.f32.mrb[0].mxu0
      %v5437 = vpop.f32.mrb[0].mxu0
      %v5438 = vadd.f32 0.0, %v5437
      %v5439 = vpop.f32.mrb[0].mxu0
      %5440 = vmatprep.mubr.bf16.mxu0 0
      %5441 = vmatmul.mubr.bf16.gmra.mrb[0].mxu0 %v5353
      %v5442 = vpop.f32.mrb[0].mxu0
      %v5443 = vadd.f32 0.0, %v5442
      %v5444 = vpop.f32.mrb[0].mxu0
      %v5445 = vpop.f32.mrb[0].mxu0
      %v5446 = vadd.f32 0.0, %v5445
      %v5447 = vpop.f32.mrb[0].mxu0
      %5448 = vmatprep.mubr.bf16.mxu0 0
      %5449 = vmatmul.mubr.bf16.gmra.mrb[0].mxu0 %v5356
      %v5450 = vpop.f32.mrb[0].mxu0
      %v5451 = vadd.f32 0.0, %v5450
      %v5452 = vpop.f32.mrb[0].mxu0
      %v5453 = vpop.f32.mrb[0].mxu0
      %v5454 = vadd.f32 0.0, %v5453
      %v5455 = vpop.f32.mrb[0].mxu0
      %5456 = vmatprep.mubr.bf16.mxu0 0
      %5457 = vmatmul.mubr.bf16.gmra.mrb[0].mxu0 %v5359
      %v5458 = vpop.f32.mrb[0].mxu0
      %v5459 = vadd.f32 0.0, %v5458
      %v5460 = vpop.f32.mrb[0].mxu0
      %v5461 = vpop.f32.mrb[0].mxu0
      %v5462 = vadd.f32 0.0, %v5461
      %v5463 = vpop.f32.mrb[0].mxu0
      %5464 = vmatprep.mubr.bf16.mxu0 0
      %5465 = vmatmul.mubr.bf16.gmra.mrb[0].mxu0 %v5362
      %v5466 = vpop.f32.mrb[0].mxu0
      %v5467 = vadd.f32 0.0, %v5466
      %v5468 = vpop.f32.mrb[0].mxu0
      %v5469 = vpop.f32.mrb[0].mxu0
      %v5470 = vadd.f32 0.0, %v5469
      %v5471 = vpop.f32.mrb[0].mxu0
      %5472 = vmatprep.mubr.bf16.mxu0 0
      %5473 = vmatmul.mubr.bf16.gmra.mrb[0].mxu0 %v5365
      %v5474 = vpop.f32.mrb[0].mxu0
      %v5475 = vadd.f32 0.0, %v5474
      %v5476 = vpop.f32.mrb[0].mxu0
      %v5477 = vpop.f32.mrb[0].mxu0
      %v5478 = vadd.f32 0.0, %v5477
      %v5479 = vpop.f32.mrb[0].mxu0
      %5480 = vmatprep.mubr.bf16.mxu0 0
      %5481 = vmatmul.mubr.bf16.gmra.mrb[0].mxu0 %v5368
      %v5482 = vpop.f32.mrb[0].mxu0
      %v5483 = vadd.f32 0.0, %v5482
      %v5484 = vpop.f32.mrb[0].mxu0
      %v5485 = vpop.f32.mrb[0].mxu0
      %v5486 = vadd.f32 0.0, %v5485
      %v5487 = vpop.f32.mrb[0].mxu0
      %5488 = vmatprep.mubr.bf16.mxu0 0
      %5489 = vmatmul.mubr.bf16.gmra.mrb[0].mxu0 %v5371
      %v5490 = vpop.f32.mrb[0].mxu0
      %v5491 = vadd.f32 0.0, %v5490
      %v5492 = vpop.f32.mrb[0].mxu0
      %v5493 = vpop.f32.mrb[0].mxu0
      %v5494 = vadd.f32 0.0, %v5493
      %v5495 = vpop.f32.mrb[0].mxu0
      %5496 = vmatprep.mubr.bf16.mxu0 0
      %5497 = vmatmul.mubr.bf16.gmra.mrb[0].mxu0 %v5374
      %v5498 = vpop.f32.mrb[0].mxu0
      %v5499 = vadd.f32 0.0, %v5498
      %v5500 = vpop.f32.mrb[0].mxu0
      %v5501 = vpop.f32.mrb[0].mxu0
      %v5502 = vadd.f32 0.0, %v5501
      %v5503 = vpop.f32.mrb[0].mxu0
      %5504 = vmatprep.mubr.bf16.mxu0 0
      %5505 = vmatmul.mubr.bf16.gmra.mrb[0].mxu0 %v5377
      %v5506 = vpop.f32.mrb[0].mxu0
      %v5507 = vadd.f32 0.0, %v5506
      %v5508 = vpop.f32.mrb[0].mxu0
      %v5509 = vpop.f32.mrb[0].mxu0
      %v5510 = vadd.f32 0.0, %v5509
      %v5511 = vpop.f32.mrb[0].mxu0
      %5512 = vmatprep.mubr.bf16.mxu0 0
      %5513 = vmatmul.mubr.bf16.gmra.mrb[0].mxu0 %v5380
      %v5514 = vpop.f32.mrb[0].mxu0
      %v5515 = vadd.f32 0.0, %v5514
      %v5516 = vpop.f32.mrb[0].mxu0
      %v5517 = vpop.f32.mrb[0].mxu0
      %v5518 = vadd.f32 0.0, %v5517
      %v5519 = vpop.f32.mrb[0].mxu0
      %5520 = vmatprep.mubr.bf16.mxu0 0
      %5521 = vmatmul.mubr.bf16.gmra.mrb[0].mxu0 %v5383
      %v5522 = vpop.f32.mrb[0].mxu0
      %v5523 = vadd.f32 0.0, %v5522
      %v5524 = vpop.f32.mrb[0].mxu0
      %v5525 = vpop.f32.mrb[0].mxu0
      %v5526 = vadd.f32 0.0, %v5525
      %v5527 = vpop.f32.mrb[0].mxu0
      %5528 = vmatprep.mubr.bf16.mxu0 0
      %5529 = vmatmul.mubr.bf16.gmra.mrb[0].mxu0 %v5386
      %v5530 = vpop.f32.mrb[0].mxu0
      %v5531 = vadd.f32 0.0, %v5530
      %v5532 = vpop.f32.mrb[0].mxu0
      %v5533 = vpop.f32.mrb[0].mxu0
      %v5534 = vadd.f32 0.0, %v5533
      %v5535 = vpop.f32.mrb[0].mxu0
      %5536 = vmatprep.mubr.bf16.mxu0 0
      %5537 = vmatmul.mubr.bf16.gmra.mrb[0].mxu0 %v5389
      %v5538 = vpop.f32.mrb[0].mxu0
      %v5539 = vadd.f32 0.0, %v5538
      %v5540 = vpop.f32.mrb[0].mxu0
      %v5541 = vpop.f32.mrb[0].mxu0
      %v5542 = vadd.f32 0.0, %v5541
      %v5543 = vpop.f32.mrb[0].mxu0
      %5544 = vmatprep.mubr.bf16.mxu0 0
      %5545 = vmatmul.mubr.bf16.gmra.mrb[0].mxu0 %v5392
      %v5546 = vpop.f32.mrb[0].mxu0
      %v5547 = vadd.f32 0.0, %v5546
      %v5548 = vpop.f32.mrb[0].mxu0
      %v5549 = vpop.f32.mrb[0].mxu0
      %v5550 = vadd.f32 0.0, %v5549
      %v5551 = vpop.f32.mrb[0].mxu0
      %5552 = vmatprep.mubr.bf16.mxu0 0
      %5553 = vmatmul.mubr.bf16.gmra.mrb[0].mxu0 %v5395
      %v5554 = vpop.f32.mrb[0].mxu0
      %v5555 = vadd.f32 0.0, %v5554
      %v5556 = vpop.f32.mrb[0].mxu0
      %v5557 = vpop.f32.mrb[0].mxu0
      %v5558 = vadd.f32 0.0, %v5557
      %v5559 = vpop.f32.mrb[0].mxu0
      %5560 = vdwg.mxu0
      %v5561 = vadd.f32 %v5199, %v5435
      %v5562 = vadd.f32 %v5202, %v5438
      %v5563 = vadd.f32 %v5207, %v5443
      %v5564 = vadd.f32 %v5210, %v5446
      %v5565 = vadd.f32 %v5215, %v5451
      %v5566 = vadd.f32 %v5218, %v5454
      %v5567 = vadd.f32 %v5223, %v5459
      %v5568 = vadd.f32 %v5226, %v5462
      %v5569 = vadd.f32 %v5231, %v5467
      %v5570 = vadd.f32 %v5234, %v5470
      %v5571 = vadd.f32 %v5239, %v5475
      %v5572 = vadd.f32 %v5242, %v5478
      %v5573 = vadd.f32 %v5247, %v5483
      %v5574 = vadd.f32 %v5250, %v5486
      %v5575 = vadd.f32 %v5255, %v5491
      %v5576 = vadd.f32 %v5258, %v5494
      %v5577 = vadd.f32 %v5263, %v5499
      %v5578 = vadd.f32 %v5266, %v5502
      %v5579 = vadd.f32 %v5271, %v5507
      %v5580 = vadd.f32 %v5274, %v5510
      %v5581 = vadd.f32 %v5279, %v5515
      %v5582 = vadd.f32 %v5282, %v5518
      %v5583 = vadd.f32 %v5287, %v5523
      %v5584 = vadd.f32 %v5290, %v5526
      %v5585 = vadd.f32 %v5295, %v5531
      %v5586 = vadd.f32 %v5298, %v5534
      %v5587 = vadd.f32 %v5303, %v5539
      %v5588 = vadd.f32 %v5306, %v5542
      %v5589 = vadd.f32 %v5311, %v5547
      %v5590 = vadd.f32 %v5314, %v5550
      %v5591 = vadd.f32 %v5319, %v5555
      %v5592 = vadd.f32 %v5322, %v5558
      %v5593 = vsel %vm1198, %v5561, 0.0
      %v5594 = vsel %vm1198, %v5562, 0.0
      %v5595 = vadd.f32 %v5593, %v5594
      %v5596 = vsel %vm1198, %v5563, 0.0
      %v5597 = vadd.f32 %v5595, %v5596
      %v5598 = vsel %vm1198, %v5564, 0.0
      %v5599 = vadd.f32 %v5597, %v5598
      %v5600 = vsel %vm1198, %v5565, 0.0
      %v5601 = vadd.f32 %v5599, %v5600
      %v5602 = vsel %vm1198, %v5566, 0.0
      %v5603 = vadd.f32 %v5601, %v5602
      %v5604 = vsel %vm1198, %v5567, 0.0
      %v5605 = vadd.f32 %v5603, %v5604
      %v5606 = vsel %vm1198, %v5568, 0.0
      %v5607 = vadd.f32 %v5605, %v5606
      %v5608 = vsel %vm1198, %v5569, 0.0
      %v5609 = vadd.f32 %v5607, %v5608
      %v5610 = vsel %vm1198, %v5570, 0.0
      %v5611 = vadd.f32 %v5609, %v5610
      %v5612 = vsel %vm1198, %v5571, 0.0
      %v5613 = vadd.f32 %v5611, %v5612
      %v5614 = vsel %vm1198, %v5572, 0.0
      %v5615 = vadd.f32 %v5613, %v5614
      %v5616 = vsel %vm1198, %v5573, 0.0
      %v5617 = vadd.f32 %v5615, %v5616
      %v5618 = vsel %vm1198, %v5574, 0.0
      %v5619 = vadd.f32 %v5617, %v5618
      %v5620 = vsel %vm1198, %v5575, 0.0
      %v5621 = vadd.f32 %v5619, %v5620
      %v5622 = vsel %vm1198, %v5576, 0.0
      %v5623 = vadd.f32 %v5621, %v5622
      %v5624 = vsel %vm1198, %v5577, 0.0
      %v5625 = vadd.f32 %v5623, %v5624
      %v5626 = vsel %vm1198, %v5578, 0.0
      %v5627 = vadd.f32 %v5625, %v5626
      %v5628 = vsel %vm1198, %v5579, 0.0
      %v5629 = vadd.f32 %v5627, %v5628
      %v5630 = vsel %vm1198, %v5580, 0.0
      %v5631 = vadd.f32 %v5629, %v5630
      %v5632 = vsel %vm1198, %v5581, 0.0
      %v5633 = vadd.f32 %v5631, %v5632
      %v5634 = vsel %vm1198, %v5582, 0.0
      %v5635 = vadd.f32 %v5633, %v5634
      %v5636 = vsel %vm1198, %v5583, 0.0
      %v5637 = vadd.f32 %v5635, %v5636
      %v5638 = vsel %vm1198, %v5584, 0.0
      %v5639 = vadd.f32 %v5637, %v5638
      %v5640 = vsel %vm1198, %v5585, 0.0
      %v5641 = vadd.f32 %v5639, %v5640
      %v5642 = vsel %vm1198, %v5586, 0.0
      %v5643 = vadd.f32 %v5641, %v5642
      %v5644 = vsel %vm1198, %v5587, 0.0
      %v5645 = vadd.f32 %v5643, %v5644
      %v5646 = vsel %vm1198, %v5588, 0.0
      %v5647 = vadd.f32 %v5645, %v5646
      %v5648 = vsel %vm1198, %v5589, 0.0
      %v5649 = vadd.f32 %v5647, %v5648
      %v5650 = vsel %vm1198, %v5590, 0.0
      %v5651 = vadd.f32 %v5649, %v5650
      %v5652 = vsel %vm1198, %v5591, 0.0
      %v5653 = vadd.f32 %v5651, %v5652
      %v5654 = vsel %vm1198, %v5592, 0.0
      %v5655 = vadd.f32 %v5653, %v5654
      %v5656 = vrot.slane %v5655, 4
      %v5657 = vadd.f32 %v5655, %v5656
      %v5658 = vrot.slane %v5657, 2
      %v5659 = vadd.f32 %v5657, %v5658
      %v5660 = vrot.slane %v5659, 1
      %v5661 = vadd.f32 %v5659, %v5660
      %v5662 = vmul.f32 %v5661, 0.00390625
      %v5663 = vmul.f32 %v5561, %v5561
      %v5664 = vmul.f32 %v5562, %v5562
      %v5665 = vmul.f32 %v5563, %v5563
      %v5666 = vmul.f32 %v5564, %v5564
      %v5667 = vmul.f32 %v5565, %v5565
      %v5668 = vmul.f32 %v5566, %v5566
      %v5669 = vmul.f32 %v5567, %v5567
      %v5670 = vmul.f32 %v5568, %v5568
      %v5671 = vmul.f32 %v5569, %v5569
      %v5672 = vmul.f32 %v5570, %v5570
      %v5673 = vmul.f32 %v5571, %v5571
      %v5674 = vmul.f32 %v5572, %v5572
      %v5675 = vmul.f32 %v5573, %v5573
      %v5676 = vmul.f32 %v5574, %v5574
      %v5677 = vmul.f32 %v5575, %v5575
      %v5678 = vmul.f32 %v5576, %v5576
      %v5679 = vmul.f32 %v5577, %v5577
      %v5680 = vmul.f32 %v5578, %v5578
      %v5681 = vmul.f32 %v5579, %v5579
      %v5682 = vmul.f32 %v5580, %v5580
      %v5683 = vmul.f32 %v5581, %v5581
      %v5684 = vmul.f32 %v5582, %v5582
      %v5685 = vmul.f32 %v5583, %v5583
      %v5686 = vmul.f32 %v5584, %v5584
      %v5687 = vmul.f32 %v5585, %v5585
      %v5688 = vmul.f32 %v5586, %v5586
      %v5689 = vmul.f32 %v5587, %v5587
      %v5690 = vmul.f32 %v5588, %v5588
      %v5691 = vmul.f32 %v5589, %v5589
      %v5692 = vmul.f32 %v5590, %v5590
      %v5693 = vmul.f32 %v5591, %v5591
      %v5694 = vmul.f32 %v5592, %v5592
      %v5695 = vsel %vm1198, %v5663, 0.0
      %v5696 = vsel %vm1198, %v5664, 0.0
      %v5697 = vadd.f32 %v5695, %v5696
      %v5698 = vsel %vm1198, %v5665, 0.0
      %v5699 = vadd.f32 %v5697, %v5698
      %v5700 = vsel %vm1198, %v5666, 0.0
      %v5701 = vadd.f32 %v5699, %v5700
      %v5702 = vsel %vm1198, %v5667, 0.0
      %v5703 = vadd.f32 %v5701, %v5702
      %v5704 = vsel %vm1198, %v5668, 0.0
      %v5705 = vadd.f32 %v5703, %v5704
      %v5706 = vsel %vm1198, %v5669, 0.0
      %v5707 = vadd.f32 %v5705, %v5706
      %v5708 = vsel %vm1198, %v5670, 0.0
      %v5709 = vadd.f32 %v5707, %v5708
      %v5710 = vsel %vm1198, %v5671, 0.0
      %v5711 = vadd.f32 %v5709, %v5710
      %v5712 = vsel %vm1198, %v5672, 0.0
      %v5713 = vadd.f32 %v5711, %v5712
      %v5714 = vsel %vm1198, %v5673, 0.0
      %v5715 = vadd.f32 %v5713, %v5714
      %v5716 = vsel %vm1198, %v5674, 0.0
      %v5717 = vadd.f32 %v5715, %v5716
      %v5718 = vsel %vm1198, %v5675, 0.0
      %v5719 = vadd.f32 %v5717, %v5718
      %v5720 = vsel %vm1198, %v5676, 0.0
      %v5721 = vadd.f32 %v5719, %v5720
      %v5722 = vsel %vm1198, %v5677, 0.0
      %v5723 = vadd.f32 %v5721, %v5722
      %v5724 = vsel %vm1198, %v5678, 0.0
      %v5725 = vadd.f32 %v5723, %v5724
      %v5726 = vsel %vm1198, %v5679, 0.0
      %v5727 = vadd.f32 %v5725, %v5726
      %v5728 = vsel %vm1198, %v5680, 0.0
      %v5729 = vadd.f32 %v5727, %v5728
      %v5730 = vsel %vm1198, %v5681, 0.0
      %v5731 = vadd.f32 %v5729, %v5730
      %v5732 = vsel %vm1198, %v5682, 0.0
      %v5733 = vadd.f32 %v5731, %v5732
      %v5734 = vsel %vm1198, %v5683, 0.0
      %v5735 = vadd.f32 %v5733, %v5734
      %v5736 = vsel %vm1198, %v5684, 0.0
      %v5737 = vadd.f32 %v5735, %v5736
      %v5738 = vsel %vm1198, %v5685, 0.0
      %v5739 = vadd.f32 %v5737, %v5738
      %v5740 = vsel %vm1198, %v5686, 0.0
      %v5741 = vadd.f32 %v5739, %v5740
      %v5742 = vsel %vm1198, %v5687, 0.0
      %v5743 = vadd.f32 %v5741, %v5742
      %v5744 = vsel %vm1198, %v5688, 0.0
      %v5745 = vadd.f32 %v5743, %v5744
      %v5746 = vsel %vm1198, %v5689, 0.0
      %v5747 = vadd.f32 %v5745, %v5746
      %v5748 = vsel %vm1198, %v5690, 0.0
      %v5749 = vadd.f32 %v5747, %v5748
      %v5750 = vsel %vm1198, %v5691, 0.0
      %v5751 = vadd.f32 %v5749, %v5750
      %v5752 = vsel %vm1198, %v5692, 0.0
      %v5753 = vadd.f32 %v5751, %v5752
      %v5754 = vsel %vm1198, %v5693, 0.0
      %v5755 = vadd.f32 %v5753, %v5754
      %v5756 = vsel %vm1198, %v5694, 0.0
      %v5757 = vadd.f32 %v5755, %v5756
      %v5758 = vrot.slane %v5757, 4
      %v5759 = vadd.f32 %v5757, %v5758
      %v5760 = vrot.slane %v5759, 2
      %v5761 = vadd.f32 %v5759, %v5760
      %v5762 = vrot.slane %v5761, 1
      %v5763 = vadd.f32 %v5761, %v5762
      %v5764 = vmul.f32 %v5763, 0.00390625
      %v5765 = vmul.f32 %v5662, %v5662
      %v5766 = vsub.f32 %v5764, %v5765
      %v5767 = vadd.f32 %v5766, 1e-05
      %v5768 = vrsqrt.pop %v5767
      %v5769 = vld [vmem:[%s165] sm:$0xff]
      %v5770 = vld [vmem:[%s165 + $0x8] sm:$0xff]
      %v5771 = vld [vmem:[%s165 + $0x10] sm:$0xff]
      %v5772 = vld [vmem:[%s165 + $0x18] sm:$0xff]
      %v5773 = vld [vmem:[%s165 + $0x20] sm:$0xff]
      %v5774 = vld [vmem:[%s165 + $0x28] sm:$0xff]
      %v5775 = vld [vmem:[%s165 + $0x30] sm:$0xff]
      %v5776 = vld [vmem:[%s165 + $0x38] sm:$0xff]
      %v5777 = vld [vmem:[%s165 + $0x40] sm:$0xff]
      %v5778 = vld [vmem:[%s165 + $0x48] sm:$0xff]
      %v5779 = vld [vmem:[%s165 + $0x50] sm:$0xff]
      %v5780 = vld [vmem:[%s165 + $0x58] sm:$0xff]
      %v5781 = vld [vmem:[%s165 + $0x60] sm:$0xff]
      %v5782 = vld [vmem:[%s165 + $0x68] sm:$0xff]
      %v5783 = vld [vmem:[%s165 + $0x70] sm:$0xff]
      %v5784 = vld [vmem:[%s165 + $0x78] sm:$0xff]
      %v5785 = vld [vmem:[%s165 + $0x80] sm:$0xff]
      %v5786 = vld [vmem:[%s165 + $0x88] sm:$0xff]
      %v5787 = vld [vmem:[%s165 + $0x90] sm:$0xff]
      %v5788 = vld [vmem:[%s165 + $0x98] sm:$0xff]
      %v5789 = vld [vmem:[%s165 + $0xa0] sm:$0xff]
      %v5790 = vld [vmem:[%s165 + $0xa8] sm:$0xff]
      %v5791 = vld [vmem:[%s165 + $0xb0] sm:$0xff]
      %v5792 = vld [vmem:[%s165 + $0xb8] sm:$0xff]
      %v5793 = vld [vmem:[%s165 + $0xc0] sm:$0xff]
      %v5794 = vld [vmem:[%s165 + $0xc8] sm:$0xff]
      %v5795 = vld [vmem:[%s165 + $0xd0] sm:$0xff]
      %v5796 = vld [vmem:[%s165 + $0xd8] sm:$0xff]
      %v5797 = vld [vmem:[%s165 + $0xe0] sm:$0xff]
      %v5798 = vld [vmem:[%s165 + $0xe8] sm:$0xff]
      %v5799 = vld [vmem:[%s165 + $0xf0] sm:$0xff]
      %v5800 = vld [vmem:[%s165 + $0xf8] sm:$0xff]
      %v5801 = vsub.f32 %v5561, %v5662
      %v5802 = vsub.f32 %v5562, %v5662
      %v5803 = vsub.f32 %v5563, %v5662
      %v5804 = vsub.f32 %v5564, %v5662
      %v5805 = vsub.f32 %v5565, %v5662
      %v5806 = vsub.f32 %v5566, %v5662
      %v5807 = vsub.f32 %v5567, %v5662
      %v5808 = vsub.f32 %v5568, %v5662
      %v5809 = vsub.f32 %v5569, %v5662
      %v5810 = vsub.f32 %v5570, %v5662
      %v5811 = vsub.f32 %v5571, %v5662
      %v5812 = vsub.f32 %v5572, %v5662
      %v5813 = vsub.f32 %v5573, %v5662
      %v5814 = vsub.f32 %v5574, %v5662
      %v5815 = vsub.f32 %v5575, %v5662
      %v5816 = vsub.f32 %v5576, %v5662
      %v5817 = vsub.f32 %v5577, %v5662
      %v5818 = vsub.f32 %v5578, %v5662
      %v5819 = vsub.f32 %v5579, %v5662
      %v5820 = vsub.f32 %v5580, %v5662
      %v5821 = vsub.f32 %v5581, %v5662
      %v5822 = vsub.f32 %v5582, %v5662
      %v5823 = vsub.f32 %v5583, %v5662
      %v5824 = vsub.f32 %v5584, %v5662
      %v5825 = vsub.f32 %v5585, %v5662
      %v5826 = vsub.f32 %v5586, %v5662
      %v5827 = vsub.f32 %v5587, %v5662
      %v5828 = vsub.f32 %v5588, %v5662
      %v5829 = vsub.f32 %v5589, %v5662
      %v5830 = vsub.f32 %v5590, %v5662
      %v5831 = vsub.f32 %v5591, %v5662
      %v5832 = vsub.f32 %v5592, %v5662
      %v5833 = vmul.f32 %v5801, %v5768
      %v5834 = vmul.f32 %v5802, %v5768
      %v5835 = vmul.f32 %v5803, %v5768
      %v5836 = vmul.f32 %v5804, %v5768
      %v5837 = vmul.f32 %v5805, %v5768
      %v5838 = vmul.f32 %v5806, %v5768
      %v5839 = vmul.f32 %v5807, %v5768
      %v5840 = vmul.f32 %v5808, %v5768
      %v5841 = vmul.f32 %v5809, %v5768
      %v5842 = vmul.f32 %v5810, %v5768
      %v5843 = vmul.f32 %v5811, %v5768
      %v5844 = vmul.f32 %v5812, %v5768
      %v5845 = vmul.f32 %v5813, %v5768
      %v5846 = vmul.f32 %v5814, %v5768
      %v5847 = vmul.f32 %v5815, %v5768
      %v5848 = vmul.f32 %v5816, %v5768
      %v5849 = vmul.f32 %v5817, %v5768
      %v5850 = vmul.f32 %v5818, %v5768
      %v5851 = vmul.f32 %v5819, %v5768
      %v5852 = vmul.f32 %v5820, %v5768
      %v5853 = vmul.f32 %v5821, %v5768
      %v5854 = vmul.f32 %v5822, %v5768
      %v5855 = vmul.f32 %v5823, %v5768
      %v5856 = vmul.f32 %v5824, %v5768
      %v5857 = vmul.f32 %v5825, %v5768
      %v5858 = vmul.f32 %v5826, %v5768
      %v5859 = vmul.f32 %v5827, %v5768
      %v5860 = vmul.f32 %v5828, %v5768
      %v5861 = vmul.f32 %v5829, %v5768
      %v5862 = vmul.f32 %v5830, %v5768
      %v5863 = vmul.f32 %v5831, %v5768
      %v5864 = vmul.f32 %v5832, %v5768
      %v5865 = vadd.f32 %v5769, %v5833
      %v5866 = vadd.f32 %v5770, %v5834
      %v5867 = vadd.f32 %v5771, %v5835
      %v5868 = vadd.f32 %v5772, %v5836
      %v5869 = vadd.f32 %v5773, %v5837
      %v5870 = vadd.f32 %v5774, %v5838
      %v5871 = vadd.f32 %v5775, %v5839
      %v5872 = vadd.f32 %v5776, %v5840
      %v5873 = vadd.f32 %v5777, %v5841
      %v5874 = vadd.f32 %v5778, %v5842
      %v5875 = vadd.f32 %v5779, %v5843
      %v5876 = vadd.f32 %v5780, %v5844
      %v5877 = vadd.f32 %v5781, %v5845
      %v5878 = vadd.f32 %v5782, %v5846
      %v5879 = vadd.f32 %v5783, %v5847
      %v5880 = vadd.f32 %v5784, %v5848
      %v5881 = vadd.f32 %v5785, %v5849
      %v5882 = vadd.f32 %v5786, %v5850
      %v5883 = vadd.f32 %v5787, %v5851
      %v5884 = vadd.f32 %v5788, %v5852
      %v5885 = vadd.f32 %v5789, %v5853
      %v5886 = vadd.f32 %v5790, %v5854
      %v5887 = vadd.f32 %v5791, %v5855
      %v5888 = vadd.f32 %v5792, %v5856
      %v5889 = vadd.f32 %v5793, %v5857
      %v5890 = vadd.f32 %v5794, %v5858
      %v5891 = vadd.f32 %v5795, %v5859
      %v5892 = vadd.f32 %v5796, %v5860
      %v5893 = vadd.f32 %v5797, %v5861
      %v5894 = vadd.f32 %v5798, %v5862
      %v5895 = vadd.f32 %v5799, %v5863
      %v5896 = vadd.f32 %v5800, %v5864
      %5897 = vst.msk [vmem:[%s170] sm:$0xff] %vm1198, %v5865
      %5898 = vst.msk [vmem:[%s170 + $0x8] sm:$0xff] %vm1198, %v5866
      %5899 = vst.msk [vmem:[%s170 + $0x10] sm:$0xff] %vm1198, %v5867
      %5900 = vst.msk [vmem:[%s170 + $0x18] sm:$0xff] %vm1198, %v5868
      %5901 = vst.msk [vmem:[%s170 + $0x20] sm:$0xff] %vm1198, %v5869
      %5902 = vst.msk [vmem:[%s170 + $0x28] sm:$0xff] %vm1198, %v5870
      %5903 = vst.msk [vmem:[%s170 + $0x30] sm:$0xff] %vm1198, %v5871
      %5904 = vst.msk [vmem:[%s170 + $0x38] sm:$0xff] %vm1198, %v5872
      %5905 = vst.msk [vmem:[%s170 + $0x40] sm:$0xff] %vm1198, %v5873
      %5906 = vst.msk [vmem:[%s170 + $0x48] sm:$0xff] %vm1198, %v5874
      %5907 = vst.msk [vmem:[%s170 + $0x50] sm:$0xff] %vm1198, %v5875
      %5908 = vst.msk [vmem:[%s170 + $0x58] sm:$0xff] %vm1198, %v5876
      %5909 = vst.msk [vmem:[%s170 + $0x60] sm:$0xff] %vm1198, %v5877
      %5910 = vst.msk [vmem:[%s170 + $0x68] sm:$0xff] %vm1198, %v5878
      %5911 = vst.msk [vmem:[%s170 + $0x70] sm:$0xff] %vm1198, %v5879
      %5912 = vst.msk [vmem:[%s170 + $0x78] sm:$0xff] %vm1198, %v5880
      %5913 = vst.msk [vmem:[%s170 + $0x80] sm:$0xff] %vm1198, %v5881
      %5914 = vst.msk [vmem:[%s170 + $0x88] sm:$0xff] %vm1198, %v5882
      %5915 = vst.msk [vmem:[%s170 + $0x90] sm:$0xff] %vm1198, %v5883
      %5916 = vst.msk [vmem:[%s170 + $0x98] sm:$0xff] %vm1198, %v5884
      %5917 = vst.msk [vmem:[%s170 + $0xa0] sm:$0xff] %vm1198, %v5885
      %5918 = vst.msk [vmem:[%s170 + $0xa8] sm:$0xff] %vm1198, %v5886
      %5919 = vst.msk [vmem:[%s170 + $0xb0] sm:$0xff] %vm1198, %v5887
      %5920 = vst.msk [vmem:[%s170 + $0xb8] sm:$0xff] %vm1198, %v5888
      %5921 = vst.msk [vmem:[%s170 + $0xc0] sm:$0xff] %vm1198, %v5889
      %5922 = vst.msk [vmem:[%s170 + $0xc8] sm:$0xff] %vm1198, %v5890
      %5923 = vst.msk [vmem:[%s170 + $0xd0] sm:$0xff] %vm1198, %v5891
      %5924 = vst.msk [vmem:[%s170 + $0xd8] sm:$0xff] %vm1198, %v5892
      %5925 = vst.msk [vmem:[%s170 + $0xe0] sm:$0xff] %vm1198, %v5893
      %5926 = vst.msk [vmem:[%s170 + $0xe8] sm:$0xff] %vm1198, %v5894
      %5927 = vst.msk [vmem:[%s170 + $0xf0] sm:$0xff] %vm1198, %v5895
      %5928 = vst.msk [vmem:[%s170 + $0xf8] sm:$0xff] %vm1198, %v5896
      %p5929 = scmp.lt.s32.totalorder %s14, 1
      %s5930 = scalar_select %p5929, %s14, 1
      %s5931 = smul.addr %s5930, 32
      %s5932 = smul.addr %s5931, 8
      %s5933 = scalar_lea.vmem %s3, %s5932
      // Predicated region
      $region33: #{resnet_block_nchw.1} parent=31 // pred_check
        %p5934 = pneg %p100
      $region34: #{resnet_block_nchw.1} parent=31 // pred_check_branch
        %5936 = sbr.rel (%p5934) target = $region36
      $region35: #{resnet_block_nchw.1} parent=31 // pred_region
        _
      $region36: #{resnet_block_nchw.1} parent=31 // pred_fallthru
        _
    $region32: #{resnet_block_nchw.1} parent=5 // pred_fallthru
      _
    %p5937 = scmp.le.s32.totalorder 2, %s9
    // Predicated region
    $region37: #{resnet_block_nchw.1} parent=5 // pred_check
      %p5938 = pneg %p5937
    $region38: #{resnet_block_nchw.1} parent=5 // pred_check_branch
      %5940 = sbr.rel (%p5938) target = $region40
    $region39: #{resnet_block_nchw.1} parent=5 // pred_region
      %s5941 = ssub.s32 %s9, 2
      // Predicated region
      $region41: #{resnet_block_nchw.1} parent=39 // pred_check
        %p5942 = pneg %p106
      $region42: #{resnet_block_nchw.1} parent=39 // pred_check_branch
        %5944 = sbr.rel (%p5942) target = $region44
      $region43: #{resnet_block_nchw.1} parent=39 // pred_region
        %p5945 = scmp.lt.s32.totalorder %s15, 1
        %s5946 = scalar_select %p5945, %s15, 1
        %s5947 = smul.addr %s5946, 32
        %s5948 = smul.addr %s5947, 8
        %s5949 = scalar_lea.vmem %s3, %s5948
      $region44: #{resnet_block_nchw.1} parent=39 // pred_fallthru
        _
    $region40: #{resnet_block_nchw.1} parent=5 // pred_fallthru
      _
  $region6: #{resnet_block_nchw.1} parent=0 // loop_footer
    %s13 = sadd.s32 1, %s9
  $region7: #{resnet_block_nchw.1} parent=0 // loop_footer_branch
    %8 = sbr.rel target = $region3
  $region8: #{resnet_block_nchw.1} parent=0 // loop_exit
    _

</llo_original>
